<compile_context>
chip_gen: v7x
topology: tpu7x:2x2x1
jax: 0.10.0
libtpu: 0.0.40
codegen_flags: <defaults>
</compile_context>

<pallas_src>
import functools

import jax
import jax.numpy as jnp
import numpy as np
from jax.experimental import pallas as pl
from jax.experimental.pallas import tpu as pltpu


# ------------------------------ fused kernel ------------------------------- #

def _mha_fused_kernel(x_ref, wq_ref, wk_ref, wv_ref, bq_ref, bk_ref, bv_ref,
                      kbias_ref, vbias_ref, wo_ref, bo_ref,
                      o_ref, wsum_ref, k_sc, v_sc, *, batch, heads):
    """Whole MHA forward for one call, all operands resident in VMEM.

    Shapes (B = batch * heads, S = L + 1):
      x_ref:      (B, L, E)   head-replicated input rows
      wq/wk/wv:   (B, E, d)   per-(batch,head) in-projection weights (q pre-scaled)
      bq/bk/bv:   (B, 1, d)   per-(batch,head) in-projection biases   (q pre-scaled)
      kbias/vbias:(B, 1, d)   appended bias_k / bias_v rows, per head
      wo_ref:     (B, d, E)   per-head slice of out_proj.weight^T
      bo_ref:     (1, E)      out_proj bias
      o_ref:      (N, L, E)   attention output (batch-major; host transposes back)
      wsum_ref:   (B, 1, S)   attention_weight.sum(dim=1) / heads
      k_sc, v_sc: (B, S, d)   VMEM scratch holding K/V with the bias row appended
    """
    _, L, E = x_ref.shape
    x = x_ref[...]

    # In-projection, batched over (batch*head).  1/sqrt(d) is folded into wq/bq.
    q = jnp.einsum('ble,bed->bld', x, wq_ref[...],
                   preferred_element_type=jnp.float32) + bq_ref[...]
    k = jnp.einsum('ble,bed->bld', x, wk_ref[...],
                   preferred_element_type=jnp.float32) + bk_ref[...]
    v = jnp.einsum('ble,bed->bld', x, wv_ref[...],
                   preferred_element_type=jnp.float32) + bv_ref[...]

    # Append bias_k / bias_v rows in VMEM (S = L + 1), no XLA concat.
    k_sc[:, :L, :] = k
    k_sc[:, L:, :] = kbias_ref[...]
    v_sc[:, :L, :] = v
    v_sc[:, L:, :] = vbias_ref[...]

    # Scaled-dot-product attention for all heads in one batched contraction.
    s = jnp.einsum('bld,bsd->bls', q, k_sc[...],
                   preferred_element_type=jnp.float32)               # (B, L, S)
    m = jnp.max(s, axis=-1, keepdims=True)
    e = jnp.exp(s - m)
    denom = jnp.sum(e, axis=-1, keepdims=True)
    p = e * pl.reciprocal(denom, approx=True)                        # softmax

    # attention_weight.sum over L, divided by head_num (matches the module).
    wsum_ref[...] = jnp.sum(p, axis=1, keepdims=True) * (1.0 / heads)

    o = jnp.einsum('bls,bsd->bld', p, v_sc[...],
                   preferred_element_type=jnp.float32)               # (B, L, d)

    # Out-projection decomposed per head: y = sum_h o_h @ Wo[:, h*d:(h+1)*d]^T + bo.
    y = jnp.einsum('bld,bde->ble', o, wo_ref[...],
                   preferred_element_type=jnp.float32)               # (B, L, E)
    y = jnp.sum(y.reshape(batch, heads, L, E), axis=1) + bo_ref[...] # (N, L, E)
    o_ref[...] = y


# --------------------------- parameter preparation -------------------------- #

def prepare_params(params, head_num, batch_size):
    """One-time, host-side restructuring of the module parameters.

    Splits the fused in_proj_weight into per-head, pre-transposed slices,
    folds the 1/sqrt(d) scaling into the q weights/bias, pre-tiles everything
    over the batch dimension, and pre-transposes out_proj.weight.
    """
    E = params["out_proj_weight"].shape[0]
    H = head_num
    d = E // H
    N = batch_size
    B = N * H
    scaling = float(d) ** -0.5

    w_in = params["in_proj_weight"]        # (3E, E)
    b_in = params["in_proj_bias"]          # (3E,)
    Wq, Wk, Wv = w_in[:E], w_in[E:2 * E], w_in[2 * E:]
    bq, bk, bv = b_in[:E], b_in[E:2 * E], b_in[2 * E:]

    def head_major_w(W, scale=1.0):
        # (E, E) -> per-head W_h^T: (H, E, d) -> tiled over batch: (B, E, d)
        wt = (W.T * scale).reshape(E, H, d).transpose(1, 0, 2)
        return jnp.broadcast_to(wt[None], (N, H, E, d)).reshape(B, E, d)

    def head_major_b(b, scale=1.0):
        bh = (b * scale).reshape(H, 1, d)
        return jnp.broadcast_to(bh[None], (N, H, 1, d)).reshape(B, 1, d)

    WoT = params["out_proj_weight"].T                      # (E, E)
    wo = WoT.reshape(H, d, E)
    wo = jnp.broadcast_to(wo[None], (N, H, d, E)).reshape(B, d, E)

    return {
        "wq": head_major_w(Wq, scaling),
        "wk": head_major_w(Wk),
        "wv": head_major_w(Wv),
        "bq": head_major_b(bq, scaling),
        "bk": head_major_b(bk),
        "bv": head_major_b(bv),
        "kbias": head_major_b(params["bias_k"].reshape(E)),
        "vbias": head_major_b(params["bias_v"].reshape(E)),
        "wo": wo,
        "bo": params["out_proj_bias"].reshape(1, E),
    }


# ------------------------------- forward pass ------------------------------ #

def multi_head_attention(query, key, value, prepped, head_num):
    """Fused Pallas implementation of MultiHeadAttention.forward."""
    del key, value  # the PyTorch module only uses `query` for the in-projection
    L, N, E = query.shape
    H = head_num
    d = E // H
    B = N * H
    S = L + 1

    # Input layout plumbing (tiny): (L, N, E) -> head-replicated (B, L, d*H input rows).
    xb = jnp.broadcast_to(
        jnp.transpose(query, (1, 0, 2))[:, None], (N, H, L, E)).reshape(B, L, E)

    def full(shape):
        return pl.BlockSpec(shape, lambda i, _s=shape: (0,) * len(_s))

    kern = functools.partial(_mha_fused_kernel, batch=N, heads=H)
    out_nle, wsum = pl.pallas_call(
        kern,
        out_shape=(jax.ShapeDtypeStruct((N, L, E), jnp.float32),
                   jax.ShapeDtypeStruct((B, 1, S), jnp.float32)),
        grid_spec=pltpu.PrefetchScalarGridSpec(
            num_scalar_prefetch=0,
            grid=(1,),  # single grid step: whole working set lives in VMEM
            in_specs=[
                full((B, L, E)),                       # xb
                full((B, E, d)), full((B, E, d)), full((B, E, d)),   # wq, wk, wv
                full((B, 1, d)), full((B, 1, d)), full((B, 1, d)),   # bq, bk, bv
                full((B, 1, d)), full((B, 1, d)),                    # kbias, vbias
                full((B, d, E)),                       # wo
                full((1, E)),                          # bo
            ],
            out_specs=[full((N, L, E)), full((B, 1, S))],
            scratch_shapes=[pltpu.VMEM((B, S, d), jnp.float32),
                            pltpu.VMEM((B, S, d), jnp.float32)],
        ),
    )(xb, prepped["wq"], prepped["wk"], prepped["wv"],
      prepped["bq"], prepped["bk"], prepped["bv"],
      prepped["kbias"], prepped["vbias"], prepped["wo"], prepped["bo"])

    attn_out = jnp.transpose(out_nle, (1, 0, 2))       # (L, N, E)
    return attn_out, wsum[:, 0, :]                     # (N*H, S)


# ------------------------------ pure-JAX reference ------------------------- #

def multi_head_attention_ref(query, key, value, params, head_num):
    del key, value
    L, N, E = query.shape
    d = E // head_num
    scaling = float(d) ** -0.5
    out = query @ params["in_proj_weight"].T + params["in_proj_bias"]
    q, k, v = jnp.split(out, 3, axis=-1)
    q = q * scaling
    k = jnp.concatenate([k, jnp.broadcast_to(params["bias_k"], (1, N, E))], axis=0)
    v = jnp.concatenate([v, jnp.broadcast_to(params["bias_v"], (1, N, E))], axis=0)
    S = L + 1
    qh = jnp.transpose(q.reshape(L, N * head_num, d), (1, 0, 2))
    kh = jnp.transpose(k.reshape(S, N * head_num, d), (1, 0, 2))
    vh = jnp.transpose(v.reshape(S, N * head_num, d), (1, 0, 2))
    w = jnp.einsum("bld,bsd->bls", qh, kh)
    w = jax.nn.softmax(w, axis=-1)
    o = jnp.einsum("bls,bsd->bld", w, vh)
    o = jnp.transpose(o, (1, 0, 2)).reshape(L, N, E)
    o = o @ params["out_proj_weight"].T + params["out_proj_bias"]
    return o, w.sum(axis=1) / head_num


# ----------------------------------- main ----------------------------------- #

if __name__ == "__main__":
    L, N, E, H = 8, 2, 32, 4   # seq, batch, embed_dim, head_num

    key0 = jax.random.PRNGKey(0)
    k_q, k_k, k_v, k_w1, k_b1, k_w2, k_b2, k_bk, k_bv = jax.random.split(key0, 9)

    query = jax.random.normal(k_q, (L, N, E), jnp.float32)
    key_in = jax.random.normal(k_k, (L, N, E), jnp.float32)    # unused by the module
    value_in = jax.random.normal(k_v, (L, N, E), jnp.float32)  # unused by the module

    params = {
        "in_proj_weight": 0.02 * jax.random.normal(k_w1, (3 * E, E), jnp.float32),
        "in_proj_bias": 0.02 * jax.random.normal(k_b1, (3 * E,), jnp.float32),
        "out_proj_weight": 0.02 * jax.random.normal(k_w2, (E, E), jnp.float32),
        "out_proj_bias": 0.02 * jax.random.normal(k_b2, (E,), jnp.float32),
        "bias_k": 0.02 * jax.random.normal(k_bk, (1, 1, E), jnp.float32),
        "bias_v": 0.02 * jax.random.normal(k_bv, (1, 1, E), jnp.float32),
    }

    # One-time parameter restructuring (hoisted off the per-call hot path).
    prepped = prepare_params(params, H, N)
    jax.block_until_ready(prepped)

    fwd = jax.jit(multi_head_attention, static_argnames=("head_num",))
    out, attn_w = fwd(query, key_in, value_in, prepped, head_num=H)
    jax.block_until_ready((out, attn_w))

    ref_out, ref_w = multi_head_attention_ref(query, key_in, value_in, params, H)
    np.testing.assert_allclose(np.asarray(out), np.asarray(ref_out), rtol=1e-2, atol=1e-3)
    np.testing.assert_allclose(np.asarray(attn_w), np.asarray(ref_w), rtol=1e-2, atol=1e-3)

    assert out.shape == (L, N, E)
    assert attn_w.shape == (N * H, L + 1)

    print("KERNEL_OK")
</pallas_src>

<mosaic_0001>
module attributes {stable_mosaic.version = 11 : i64} {
  func.func @_mha_fused_kernel(%arg0: i32, %arg1: memref<8x8x32xf32, #tpu.memory_space<vmem>>, %arg2: memref<8x32x8xf32, #tpu.memory_space<vmem>>, %arg3: memref<8x32x8xf32, #tpu.memory_space<vmem>>, %arg4: memref<8x32x8xf32, #tpu.memory_space<vmem>>, %arg5: memref<8x1x8xf32, #tpu.memory_space<vmem>>, %arg6: memref<8x1x8xf32, #tpu.memory_space<vmem>>, %arg7: memref<8x1x8xf32, #tpu.memory_space<vmem>>, %arg8: memref<8x1x8xf32, #tpu.memory_space<vmem>>, %arg9: memref<8x1x8xf32, #tpu.memory_space<vmem>>, %arg10: memref<8x8x32xf32, #tpu.memory_space<vmem>>, %arg11: memref<1x32xf32, #tpu.memory_space<vmem>>, %arg12: memref<2x8x32xf32, #tpu.memory_space<vmem>>, %arg13: memref<8x1x9xf32, #tpu.memory_space<vmem>>, %arg14: memref<8x9x8xf32, #tpu.memory_space<vmem>>, %arg15: memref<8x9x8xf32, #tpu.memory_space<vmem>>) attributes {dimension_semantics = [#tpu.dimension_semantics<arbitrary>], iteration_bounds = array<i64: 1>, scalar_prefetch = 0 : i64, scratch_operands = 2 : i64, tpu.core_type = #tpu.core_type<tc>, window_params = [{pipeline_mode = #tpu.pipeline_mode<synchronous>, transform_indices = @transform_0, window_bounds = array<i64: 8, 8, 32>}, {pipeline_mode = #tpu.pipeline_mode<synchronous>, transform_indices = @transform_1, window_bounds = array<i64: 8, 32, 8>}, {pipeline_mode = #tpu.pipeline_mode<synchronous>, transform_indices = @transform_2, window_bounds = array<i64: 8, 32, 8>}, {pipeline_mode = #tpu.pipeline_mode<synchronous>, transform_indices = @transform_3, window_bounds = array<i64: 8, 32, 8>}, {pipeline_mode = #tpu.pipeline_mode<synchronous>, transform_indices = @transform_4, window_bounds = array<i64: 8, 1, 8>}, {pipeline_mode = #tpu.pipeline_mode<synchronous>, transform_indices = @transform_5, window_bounds = array<i64: 8, 1, 8>}, {pipeline_mode = #tpu.pipeline_mode<synchronous>, transform_indices = @transform_6, window_bounds = array<i64: 8, 1, 8>}, {pipeline_mode = #tpu.pipeline_mode<synchronous>, transform_indices = @transform_7, window_bounds = array<i64: 8, 1, 8>}, {pipeline_mode = #tpu.pipeline_mode<synchronous>, transform_indices = @transform_8, window_bounds = array<i64: 8, 1, 8>}, {pipeline_mode = #tpu.pipeline_mode<synchronous>, transform_indices = @transform_9, window_bounds = array<i64: 8, 8, 32>}, {pipeline_mode = #tpu.pipeline_mode<synchronous>, transform_indices = @transform_10, window_bounds = array<i64: 1, 32>}, {pipeline_mode = #tpu.pipeline_mode<synchronous>, transform_indices = @transform_11, window_bounds = array<i64: 2, 8, 32>}, {pipeline_mode = #tpu.pipeline_mode<synchronous>, transform_indices = @transform_12, window_bounds = array<i64: 8, 1, 9>}]} {
    %c0 = arith.constant 0 : index
    %c0_0 = arith.constant 0 : index
    %c0_1 = arith.constant 0 : index
    %0 = vector.load %arg1[%c0, %c0_0, %c0_1] : memref<8x8x32xf32, #tpu.memory_space<vmem>>, vector<8x8x32xf32>
    %c0_2 = arith.constant 0 : index
    %c0_3 = arith.constant 0 : index
    %c0_4 = arith.constant 0 : index
    %1 = vector.load %arg2[%c0_2, %c0_3, %c0_4] : memref<8x32x8xf32, #tpu.memory_space<vmem>>, vector<8x32x8xf32>
    "tpu.trace_start"() <{level = 10 : i32, message = "ble,bed->bld"}> : () -> ()
    %cst = arith.constant dense<0.000000e+00> : vector<8x8x8xf32>
    %2 = tpu.matmul %0, %1, %cst {dimension_numbers = #tpu.dot_dimension_numbers<[2], [1], [1], [2], [0, 0, 0, 1, 1, 2], [0], [0]>} : vector<8x8x32xf32>, vector<8x32x8xf32>, vector<8x8x8xf32> -> vector<8x8x8xf32>
    "tpu.trace_stop"() : () -> ()
    %c0_5 = arith.constant 0 : index
    %c0_6 = arith.constant 0 : index
    %c0_7 = arith.constant 0 : index
    %3 = vector.load %arg5[%c0_5, %c0_6, %c0_7] : memref<8x1x8xf32, #tpu.memory_space<vmem>>, vector<8x1x8xf32>
    %4 = vector.broadcast %3 : vector<8x1x8xf32> to vector<8x8x8xf32>
    %5 = arith.addf %2, %4 : vector<8x8x8xf32>
    %c0_8 = arith.constant 0 : index
    %c0_9 = arith.constant 0 : index
    %c0_10 = arith.constant 0 : index
    %6 = vector.load %arg3[%c0_8, %c0_9, %c0_10] : memref<8x32x8xf32, #tpu.memory_space<vmem>>, vector<8x32x8xf32>
    "tpu.trace_start"() <{level = 10 : i32, message = "ble,bed->bld"}> : () -> ()
    %cst_11 = arith.constant dense<0.000000e+00> : vector<8x8x8xf32>
    %7 = tpu.matmul %0, %6, %cst_11 {dimension_numbers = #tpu.dot_dimension_numbers<[2], [1], [1], [2], [0, 0, 0, 1, 1, 2], [0], [0]>} : vector<8x8x32xf32>, vector<8x32x8xf32>, vector<8x8x8xf32> -> vector<8x8x8xf32>
    "tpu.trace_stop"() : () -> ()
    %c0_12 = arith.constant 0 : index
    %c0_13 = arith.constant 0 : index
    %c0_14 = arith.constant 0 : index
    %8 = vector.load %arg6[%c0_12, %c0_13, %c0_14] : memref<8x1x8xf32, #tpu.memory_space<vmem>>, vector<8x1x8xf32>
    %9 = vector.broadcast %8 : vector<8x1x8xf32> to vector<8x8x8xf32>
    %10 = arith.addf %7, %9 : vector<8x8x8xf32>
    %c0_15 = arith.constant 0 : index
    %c0_16 = arith.constant 0 : index
    %c0_17 = arith.constant 0 : index
    %11 = vector.load %arg4[%c0_15, %c0_16, %c0_17] : memref<8x32x8xf32, #tpu.memory_space<vmem>>, vector<8x32x8xf32>
    "tpu.trace_start"() <{level = 10 : i32, message = "ble,bed->bld"}> : () -> ()
    %cst_18 = arith.constant dense<0.000000e+00> : vector<8x8x8xf32>
    %12 = tpu.matmul %0, %11, %cst_18 {dimension_numbers = #tpu.dot_dimension_numbers<[2], [1], [1], [2], [0, 0, 0, 1, 1, 2], [0], [0]>} : vector<8x8x32xf32>, vector<8x32x8xf32>, vector<8x8x8xf32> -> vector<8x8x8xf32>
    "tpu.trace_stop"() : () -> ()
    %c0_19 = arith.constant 0 : index
    %c0_20 = arith.constant 0 : index
    %c0_21 = arith.constant 0 : index
    %13 = vector.load %arg7[%c0_19, %c0_20, %c0_21] : memref<8x1x8xf32, #tpu.memory_space<vmem>>, vector<8x1x8xf32>
    %14 = vector.broadcast %13 : vector<8x1x8xf32> to vector<8x8x8xf32>
    %15 = arith.addf %12, %14 : vector<8x8x8xf32>
    %c0_22 = arith.constant 0 : index
    %c0_23 = arith.constant 0 : index
    %c0_24 = arith.constant 0 : index
    %16 = vector.load %arg14[%c0_22, %c0_23, %c0_24] : memref<8x9x8xf32, #tpu.memory_space<vmem>>, vector<8x8x8xf32>
    tpu.vector_store %arg14[%c0_22, %c0_23, %c0_24], %10 {strides = array<i32>} : memref<8x9x8xf32, #tpu.memory_space<vmem>>, vector<8x8x8xf32>,
    %c0_25 = arith.constant 0 : index
    %c0_26 = arith.constant 0 : index
    %c0_27 = arith.constant 0 : index
    %17 = vector.load %arg8[%c0_25, %c0_26, %c0_27] : memref<8x1x8xf32, #tpu.memory_space<vmem>>, vector<8x1x8xf32>
    %c0_28 = arith.constant 0 : index
    %c8 = arith.constant 8 : index
    %c0_29 = arith.constant 0 : index
    %18 = vector.load %arg14[%c0_28, %c8, %c0_29] : memref<8x9x8xf32, #tpu.memory_space<vmem>>, vector<8x1x8xf32>
    tpu.vector_store %arg14[%c0_28, %c8, %c0_29], %17 {strides = array<i32>} : memref<8x9x8xf32, #tpu.memory_space<vmem>>, vector<8x1x8xf32>,
    %c0_30 = arith.constant 0 : index
    %c0_31 = arith.constant 0 : index
    %c0_32 = arith.constant 0 : index
    %19 = vector.load %arg15[%c0_30, %c0_31, %c0_32] : memref<8x9x8xf32, #tpu.memory_space<vmem>>, vector<8x8x8xf32>
    tpu.vector_store %arg15[%c0_30, %c0_31, %c0_32], %15 {strides = array<i32>} : memref<8x9x8xf32, #tpu.memory_space<vmem>>, vector<8x8x8xf32>,
    %c0_33 = arith.constant 0 : index
    %c0_34 = arith.constant 0 : index
    %c0_35 = arith.constant 0 : index
    %20 = vector.load %arg9[%c0_33, %c0_34, %c0_35] : memref<8x1x8xf32, #tpu.memory_space<vmem>>, vector<8x1x8xf32>
    %c0_36 = arith.constant 0 : index
    %c8_37 = arith.constant 8 : index
    %c0_38 = arith.constant 0 : index
    %21 = vector.load %arg15[%c0_36, %c8_37, %c0_38] : memref<8x9x8xf32, #tpu.memory_space<vmem>>, vector<8x1x8xf32>
    tpu.vector_store %arg15[%c0_36, %c8_37, %c0_38], %20 {strides = array<i32>} : memref<8x9x8xf32, #tpu.memory_space<vmem>>, vector<8x1x8xf32>,
    %c0_39 = arith.constant 0 : index
    %c0_40 = arith.constant 0 : index
    %c0_41 = arith.constant 0 : index
    %22 = vector.load %arg14[%c0_39, %c0_40, %c0_41] : memref<8x9x8xf32, #tpu.memory_space<vmem>>, vector<8x9x8xf32>
    "tpu.trace_start"() <{level = 10 : i32, message = "bld,bsd->bls"}> : () -> ()
    %cst_42 = arith.constant dense<0.000000e+00> : vector<8x8x9xf32>
    %23 = tpu.matmul %5, %22, %cst_42 {dimension_numbers = #tpu.dot_dimension_numbers<[2], [2], [1], [1], [0, 0, 0, 1, 1, 1], [0], [0]>} : vector<8x8x8xf32>, vector<8x9x8xf32>, vector<8x8x9xf32> -> vector<8x8x9xf32>
    "tpu.trace_stop"() : () -> ()
    %cst_43 = arith.constant dense<0xFF800000> : vector<8x8xf32>
    %24 = vector.multi_reduction <maximumf>, %23, %cst_43 [2] : vector<8x8x9xf32> to vector<8x8xf32>
    %25 = vector.shape_cast %24 : vector<8x8xf32> to vector<8x8x1xf32>
    %26 = vector.broadcast %25 : vector<8x8x1xf32> to vector<8x8x9xf32>
    %27 = arith.subf %23, %26 : vector<8x8x9xf32>
    %28 = math.exp %27 : vector<8x8x9xf32>
    %cst_44 = arith.constant dense<0.000000e+00> : vector<8x8xf32>
    %29 = vector.multi_reduction <add>, %28, %cst_44 [2] : vector<8x8x9xf32> to vector<8x8xf32>
    %30 = vector.shape_cast %29 : vector<8x8xf32> to vector<8x8x1xf32>
    %31 = tpu.reciprocal %30 {approx = true} : vector<8x8x1xf32> -> vector<8x8x1xf32>
    %32 = vector.broadcast %31 : vector<8x8x1xf32> to vector<8x8x9xf32>
    %33 = arith.mulf %28, %32 : vector<8x8x9xf32>
    %cst_45 = arith.constant dense<0.000000e+00> : vector<8x9xf32>
    %34 = vector.multi_reduction <add>, %33, %cst_45 [1] : vector<8x8x9xf32> to vector<8x9xf32>
    %35 = vector.shape_cast %34 : vector<8x9xf32> to vector<8x1x9xf32>
    %cst_46 = arith.constant 2.500000e-01 : f32
    %36 = vector.broadcast %cst_46 : f32 to vector<8x1x9xf32>
    %37 = arith.mulf %35, %36 : vector<8x1x9xf32>
    %c0_47 = arith.constant 0 : index
    %c0_48 = arith.constant 0 : index
    %c0_49 = arith.constant 0 : index
    %38 = vector.load %arg13[%c0_47, %c0_48, %c0_49] : memref<8x1x9xf32, #tpu.memory_space<vmem>>, vector<8x1x9xf32>
    tpu.vector_store %arg13[%c0_47, %c0_48, %c0_49], %37 {strides = array<i32>} : memref<8x1x9xf32, #tpu.memory_space<vmem>>, vector<8x1x9xf32>,
    %c0_50 = arith.constant 0 : index
    %c0_51 = arith.constant 0 : index
    %c0_52 = arith.constant 0 : index
    %39 = vector.load %arg15[%c0_50, %c0_51, %c0_52] : memref<8x9x8xf32, #tpu.memory_space<vmem>>, vector<8x9x8xf32>
    "tpu.trace_start"() <{level = 10 : i32, message = "bls,bsd->bld"}> : () -> ()
    %cst_53 = arith.constant dense<0.000000e+00> : vector<8x8x8xf32>
    %40 = tpu.matmul %33, %39, %cst_53 {dimension_numbers = #tpu.dot_dimension_numbers<[2], [1], [1], [2], [0, 0, 0, 1, 1, 2], [0], [0]>} : vector<8x8x9xf32>, vector<8x9x8xf32>, vector<8x8x8xf32> -> vector<8x8x8xf32>
    "tpu.trace_stop"() : () -> ()
    %c0_54 = arith.constant 0 : index
    %c0_55 = arith.constant 0 : index
    %c0_56 = arith.constant 0 : index
    %41 = vector.load %arg10[%c0_54, %c0_55, %c0_56] : memref<8x8x32xf32, #tpu.memory_space<vmem>>, vector<8x8x32xf32>
    "tpu.trace_start"() <{level = 10 : i32, message = "bld,bde->ble"}> : () -> ()
    %cst_57 = arith.constant dense<0.000000e+00> : vector<8x8x32xf32>
    %42 = tpu.matmul %40, %41, %cst_57 {dimension_numbers = #tpu.dot_dimension_numbers<[2], [1], [1], [2], [0, 0, 0, 1, 1, 2], [0], [0]>} : vector<8x8x8xf32>, vector<8x8x32xf32>, vector<8x8x32xf32> -> vector<8x8x32xf32>
    "tpu.trace_stop"() : () -> ()
    %43 = vector.shape_cast %42 : vector<8x8x32xf32> to vector<2x4x8x32xf32>
    %cst_58 = arith.constant dense<0.000000e+00> : vector<2x8x32xf32>
    %44 = vector.multi_reduction <add>, %43, %cst_58 [1] : vector<2x4x8x32xf32> to vector<2x8x32xf32>
    %c0_59 = arith.constant 0 : index
    %c0_60 = arith.constant 0 : index
    %45 = vector.load %arg11[%c0_59, %c0_60] : memref<1x32xf32, #tpu.memory_space<vmem>>, vector<1x32xf32>
    %46 = vector.shape_cast %45 : vector<1x32xf32> to vector<1x1x32xf32>
    %47 = vector.broadcast %46 : vector<1x1x32xf32> to vector<2x8x32xf32>
    %48 = arith.addf %44, %47 : vector<2x8x32xf32>
    %c0_61 = arith.constant 0 : index
    %c0_62 = arith.constant 0 : index
    %c0_63 = arith.constant 0 : index
    %49 = vector.load %arg12[%c0_61, %c0_62, %c0_63] : memref<2x8x32xf32, #tpu.memory_space<vmem>>, vector<2x8x32xf32>
    tpu.vector_store %arg12[%c0_61, %c0_62, %c0_63], %48 {strides = array<i32>} : memref<2x8x32xf32, #tpu.memory_space<vmem>>, vector<2x8x32xf32>,
    return
  }
  func.func @transform_0(%arg0: i32) -> (i32, i32, i32) {
    %c0_i32 = arith.constant 0 : i32
    %c0_i32_0 = arith.constant 0 : i32
    %c0_i32_1 = arith.constant 0 : i32
    %c0_i32_2 = arith.constant 0 : i32
    return %c0_i32, %c0_i32_0, %c0_i32_1 : i32, i32, i32
  }
  func.func @transform_1(%arg0: i32) -> (i32, i32, i32) {
    %c0_i32 = arith.constant 0 : i32
    %c0_i32_0 = arith.constant 0 : i32
    %c0_i32_1 = arith.constant 0 : i32
    %c0_i32_2 = arith.constant 0 : i32
    return %c0_i32, %c0_i32_0, %c0_i32_1 : i32, i32, i32
  }
  func.func @transform_2(%arg0: i32) -> (i32, i32, i32) {
    %c0_i32 = arith.constant 0 : i32
    %c0_i32_0 = arith.constant 0 : i32
    %c0_i32_1 = arith.constant 0 : i32
    %c0_i32_2 = arith.constant 0 : i32
    return %c0_i32, %c0_i32_0, %c0_i32_1 : i32, i32, i32
  }
  func.func @transform_3(%arg0: i32) -> (i32, i32, i32) {
    %c0_i32 = arith.constant 0 : i32
    %c0_i32_0 = arith.constant 0 : i32
    %c0_i32_1 = arith.constant 0 : i32
    %c0_i32_2 = arith.constant 0 : i32
    return %c0_i32, %c0_i32_0, %c0_i32_1 : i32, i32, i32
  }
  func.func @transform_4(%arg0: i32) -> (i32, i32, i32) {
    %c0_i32 = arith.constant 0 : i32
    %c0_i32_0 = arith.constant 0 : i32
    %c0_i32_1 = arith.constant 0 : i32
    %c0_i32_2 = arith.constant 0 : i32
    return %c0_i32, %c0_i32_0, %c0_i32_1 : i32, i32, i32
  }
  func.func @transform_5(%arg0: i32) -> (i32, i32, i32) {
    %c0_i32 = arith.constant 0 : i32
    %c0_i32_0 = arith.constant 0 : i32
    %c0_i32_1 = arith.constant 0 : i32
    %c0_i32_2 = arith.constant 0 : i32
    return %c0_i32, %c0_i32_0, %c0_i32_1 : i32, i32, i32
  }
  func.func @transform_6(%arg0: i32) -> (i32, i32, i32) {
    %c0_i32 = arith.constant 0 : i32
    %c0_i32_0 = arith.constant 0 : i32
    %c0_i32_1 = arith.constant 0 : i32
    %c0_i32_2 = arith.constant 0 : i32
    return %c0_i32, %c0_i32_0, %c0_i32_1 : i32, i32, i32
  }
  func.func @transform_7(%arg0: i32) -> (i32, i32, i32) {
    %c0_i32 = arith.constant 0 : i32
    %c0_i32_0 = arith.constant 0 : i32
    %c0_i32_1 = arith.constant 0 : i32
    %c0_i32_2 = arith.constant 0 : i32
    return %c0_i32, %c0_i32_0, %c0_i32_1 : i32, i32, i32
  }
  func.func @transform_8(%arg0: i32) -> (i32, i32, i32) {
    %c0_i32 = arith.constant 0 : i32
    %c0_i32_0 = arith.constant 0 : i32
    %c0_i32_1 = arith.constant 0 : i32
    %c0_i32_2 = arith.constant 0 : i32
    return %c0_i32, %c0_i32_0, %c0_i32_1 : i32, i32, i32
  }
  func.func @transform_9(%arg0: i32) -> (i32, i32, i32) {
    %c0_i32 = arith.constant 0 : i32
    %c0_i32_0 = arith.constant 0 : i32
    %c0_i32_1 = arith.constant 0 : i32
    %c0_i32_2 = arith.constant 0 : i32
    return %c0_i32, %c0_i32_0, %c0_i32_1 : i32, i32, i32
  }
  func.func @transform_10(%arg0: i32) -> (i32, i32) {
    %c0_i32 = arith.constant 0 : i32
    %c0_i32_0 = arith.constant 0 : i32
    %c0_i32_1 = arith.constant 0 : i32
    return %c0_i32, %c0_i32_0 : i32, i32
  }
  func.func @transform_11(%arg0: i32) -> (i32, i32, i32) {
    %c0_i32 = arith.constant 0 : i32
    %c0_i32_0 = arith.constant 0 : i32
    %c0_i32_1 = arith.constant 0 : i32
    %c0_i32_2 = arith.constant 0 : i32
    return %c0_i32, %c0_i32_0, %c0_i32_1 : i32, i32, i32
  }
  func.func @transform_12(%arg0: i32) -> (i32, i32, i32) {
    %c0_i32 = arith.constant 0 : i32
    %c0_i32_0 = arith.constant 0 : i32
    %c0_i32_1 = arith.constant 0 : i32
    %c0_i32_2 = arith.constant 0 : i32
    return %c0_i32, %c0_i32_0, %c0_i32_1 : i32, i32, i32
  }
}

</mosaic_0001>

<llo_original>
// kernel: multi_head_attention.1
$region0: #{multi_head_attention.1}
  #allocation0 [shape = 'u32[]', space=smem, size = 0x4, offset = 0x4, fixed_abs, tag = 'smem constant byte address 0x4 - core index']
  #allocation1 [shape = 'u32[144,128]{1,0:T(1,128)}', space=vmem, size = 0x12000, scoped, tag = 'internal scratch']
  #allocation2 [shape = 'f32[8,9,8]{2,1,0:T(8,128)}', space=vmem, size = 0x10000, scoped, tag = 'scratch operand']
  #allocation3 [shape = 'f32[8,9,8]{2,1,0:T(8,128)}', space=vmem, size = 0x10000, scoped, tag = 'scratch operand']
  %s0 = inlined_call_operand.vmem [shape: f32[8,8,32], index: 0, kind: input, shape index: {}]
  %s1 = inlined_call_operand.vmem [shape: f32[8,32,8], index: 1, kind: input, shape index: {}]
  %s2 = inlined_call_operand.vmem [shape: f32[8,32,8], index: 2, kind: input, shape index: {}]
  %s3 = inlined_call_operand.vmem [shape: f32[8,32,8], index: 3, kind: input, shape index: {}]
  %s4 = inlined_call_operand.vmem [shape: f32[8,1,8], index: 4, kind: input, shape index: {}]
  %s5 = inlined_call_operand.vmem [shape: f32[8,1,8], index: 5, kind: input, shape index: {}]
  %s6 = inlined_call_operand.vmem [shape: f32[8,1,8], index: 6, kind: input, shape index: {}]
  %s7 = inlined_call_operand.vmem [shape: f32[8,1,8], index: 7, kind: input, shape index: {}]
  %s8 = inlined_call_operand.vmem [shape: f32[8,1,8], index: 8, kind: input, shape index: {}]
  %s9 = inlined_call_operand.vmem [shape: f32[8,8,32], index: 9, kind: input, shape index: {}]
  %s10 = inlined_call_operand.vmem [shape: f32[1,32], index: 10, kind: input, shape index: {}]
  %s11 = inlined_call_operand.vmem [shape: f32[2,8,32], index: 11, kind: output, shape index: {0}]
  %s12 = inlined_call_operand.hbm [shape: f32[8,1,9], index: 12, kind: output, shape index: {1}]
  %13 = xla_tuple %s11, %s12
  %s14 = sld [smem:[#allocation0]]
  $region62: #{multi_head_attention.1} parent=0
    _
  %s16 = ssub.s32 1, %s14
  %s17 = scalar_select 0, %s16, %s14
  $region1: #{multi_head_attention.1} parent=0
    #allocation4 [shape = 'u8[4096]{0}', space=vmem, size = 0x1000, scoped, tag = 'output window, operand 1, single buffered']
    #allocation5 [shape = 's32[1]{0}', space=sflag, size = 0x4, scoped, tag = 'scoped memory for multi_head_attention.1']
    %18 = vsyncpa [#allocation5], 0
    // Predicated region
    $region2: #{multi_head_attention.1} parent=1 // pred_check
      _
    $region3: #{multi_head_attention.1} parent=1 // pred_check_branch
      %20 = sbr.rel (0) target = $region5
    $region4: #{multi_head_attention.1} parent=1 // pred_region
      _
    $region5: #{multi_head_attention.1} parent=1 // pred_fallthru
      _
    // Predicated region
    $region6: #{multi_head_attention.1} parent=1 // pred_check
      _
    $region7: #{multi_head_attention.1} parent=1 // pred_check_branch
      %22 = sbr.rel (0) target = $region9
    $region8: #{multi_head_attention.1} parent=1 // pred_region
      _
    $region9: #{multi_head_attention.1} parent=1 // pred_fallthru
      _
    // Predicated region
    $region10: #{multi_head_attention.1} parent=1 // pred_check
      _
    $region11: #{multi_head_attention.1} parent=1 // pred_check_branch
      %24 = sbr.rel (0) target = $region13
    $region12: #{multi_head_attention.1} parent=1 // pred_region
      _
    $region13: #{multi_head_attention.1} parent=1 // pred_fallthru
      _
    // Predicated region
    $region14: #{multi_head_attention.1} parent=1 // pred_check
      _
    $region15: #{multi_head_attention.1} parent=1 // pred_check_branch
      %26 = sbr.rel (0) target = $region17
    $region16: #{multi_head_attention.1} parent=1 // pred_region
      _
    $region17: #{multi_head_attention.1} parent=1 // pred_fallthru
      _
    // Predicated region
    $region18: #{multi_head_attention.1} parent=1 // pred_check
      _
    $region19: #{multi_head_attention.1} parent=1 // pred_check_branch
      %28 = sbr.rel (0) target = $region21
    $region20: #{multi_head_attention.1} parent=1 // pred_region
      _
    $region21: #{multi_head_attention.1} parent=1 // pred_fallthru
      _
    // Predicated region
    $region22: #{multi_head_attention.1} parent=1 // pred_check
      _
    $region23: #{multi_head_attention.1} parent=1 // pred_check_branch
      %30 = sbr.rel (0) target = $region25
    $region24: #{multi_head_attention.1} parent=1 // pred_region
      _
    $region25: #{multi_head_attention.1} parent=1 // pred_fallthru
      _
    // Predicated region
    $region26: #{multi_head_attention.1} parent=1 // pred_check
      _
    $region27: #{multi_head_attention.1} parent=1 // pred_check_branch
      %32 = sbr.rel (0) target = $region29
    $region28: #{multi_head_attention.1} parent=1 // pred_region
      _
    $region29: #{multi_head_attention.1} parent=1 // pred_fallthru
      _
    // Predicated region
    $region30: #{multi_head_attention.1} parent=1 // pred_check
      _
    $region31: #{multi_head_attention.1} parent=1 // pred_check_branch
      %34 = sbr.rel (0) target = $region33
    $region32: #{multi_head_attention.1} parent=1 // pred_region
      _
    $region33: #{multi_head_attention.1} parent=1 // pred_fallthru
      _
    // Predicated region
    $region34: #{multi_head_attention.1} parent=1 // pred_check
      _
    $region35: #{multi_head_attention.1} parent=1 // pred_check_branch
      %36 = sbr.rel (0) target = $region37
    $region36: #{multi_head_attention.1} parent=1 // pred_region
      _
    $region37: #{multi_head_attention.1} parent=1 // pred_fallthru
      _
    // Predicated region
    $region38: #{multi_head_attention.1} parent=1 // pred_check
      _
    $region39: #{multi_head_attention.1} parent=1 // pred_check_branch
      %38 = sbr.rel (0) target = $region41
    $region40: #{multi_head_attention.1} parent=1 // pred_region
      _
    $region41: #{multi_head_attention.1} parent=1 // pred_fallthru
      _
    // Predicated region
    $region42: #{multi_head_attention.1} parent=1 // pred_check
      _
    $region43: #{multi_head_attention.1} parent=1 // pred_check_branch
      %40 = sbr.rel (0) target = $region45
    $region44: #{multi_head_attention.1} parent=1 // pred_region
      _
    $region45: #{multi_head_attention.1} parent=1 // pred_fallthru
      _
    %v41 = vld [vmem:[%s0] sm:$0xff]
    %v42 = vld [vmem:[%s0 + $0x8] sm:$0xff]
    %v43 = vld [vmem:[%s0 + $0x10] sm:$0xff]
    %v44 = vld [vmem:[%s0 + $0x18] sm:$0xff]
    %v45 = vld [vmem:[%s0 + $0x20] sm:$0xff]
    %v46 = vld [vmem:[%s0 + $0x28] sm:$0xff]
    %v47 = vld [vmem:[%s0 + $0x30] sm:$0xff]
    %v48 = vld [vmem:[%s0 + $0x38] sm:$0xff]
    %v49 = vld [vmem:[%s1] sm:$0xff]
    %v50 = vld [vmem:[%s1 + $0x8] sm:$0xff]
    %v51 = vld [vmem:[%s1 + $0x10] sm:$0xff]
    %v52 = vld [vmem:[%s1 + $0x18] sm:$0xff]
    %v53 = vld [vmem:[%s1 + $0x20] sm:$0xff]
    %v54 = vld [vmem:[%s1 + $0x28] sm:$0xff]
    %v55 = vld [vmem:[%s1 + $0x30] sm:$0xff]
    %v56 = vld [vmem:[%s1 + $0x38] sm:$0xff]
    %v57 = vld [vmem:[%s1 + $0x40] sm:$0xff]
    %v58 = vld [vmem:[%s1 + $0x48] sm:$0xff]
    %v59 = vld [vmem:[%s1 + $0x50] sm:$0xff]
    %v60 = vld [vmem:[%s1 + $0x58] sm:$0xff]
    %v61 = vld [vmem:[%s1 + $0x60] sm:$0xff]
    %v62 = vld [vmem:[%s1 + $0x68] sm:$0xff]
    %v63 = vld [vmem:[%s1 + $0x70] sm:$0xff]
    %v64 = vld [vmem:[%s1 + $0x78] sm:$0xff]
    %v65 = vld [vmem:[%s1 + $0x80] sm:$0xff]
    %v66 = vld [vmem:[%s1 + $0x88] sm:$0xff]
    %v67 = vld [vmem:[%s1 + $0x90] sm:$0xff]
    %v68 = vld [vmem:[%s1 + $0x98] sm:$0xff]
    %v69 = vld [vmem:[%s1 + $0xa0] sm:$0xff]
    %v70 = vld [vmem:[%s1 + $0xa8] sm:$0xff]
    %v71 = vld [vmem:[%s1 + $0xb0] sm:$0xff]
    %v72 = vld [vmem:[%s1 + $0xb8] sm:$0xff]
    %v73 = vld [vmem:[%s1 + $0xc0] sm:$0xff]
    %v74 = vld [vmem:[%s1 + $0xc8] sm:$0xff]
    %v75 = vld [vmem:[%s1 + $0xd0] sm:$0xff]
    %v76 = vld [vmem:[%s1 + $0xd8] sm:$0xff]
    %v77 = vld [vmem:[%s1 + $0xe0] sm:$0xff]
    %v78 = vld [vmem:[%s1 + $0xe8] sm:$0xff]
    %v79 = vld [vmem:[%s1 + $0xf0] sm:$0xff]
    %v80 = vld [vmem:[%s1 + $0xf8] sm:$0xff]
    %v81 = vld [vmem:[%s4] sm:$0x1]
    %v82 = vld [vmem:[%s4 + $0x1] sm:$0x1]
    %v83 = vld [vmem:[%s4 + $0x2] sm:$0x1]
    %v84 = vld [vmem:[%s4 + $0x3] sm:$0x1]
    %v85 = vld [vmem:[%s4 + $0x4] sm:$0x1]
    %v86 = vld [vmem:[%s4 + $0x5] sm:$0x1]
    %v87 = vld [vmem:[%s4 + $0x6] sm:$0x1]
    %v88 = vld [vmem:[%s4 + $0x7] sm:$0x1]
    %v97 = vlaneseq
    %v98 = vshrl.u32 %v97, 7
    %v99 = vsub.s32 0, %v98
    %v100 = vrot.slane %v81, %v99
    %v101 = vlaneseq
    %v102 = vshrl.u32 %v101, 7
    %v103 = vsub.s32 0, %v102
    %v104 = vrot.slane %v82, %v103
    %v105 = vlaneseq
    %v106 = vshrl.u32 %v105, 7
    %v107 = vsub.s32 0, %v106
    %v108 = vrot.slane %v83, %v107
    %v109 = vlaneseq
    %v110 = vshrl.u32 %v109, 7
    %v111 = vsub.s32 0, %v110
    %v112 = vrot.slane %v84, %v111
    %v113 = vlaneseq
    %v114 = vshrl.u32 %v113, 7
    %v115 = vsub.s32 0, %v114
    %v116 = vrot.slane %v85, %v115
    %v117 = vlaneseq
    %v118 = vshrl.u32 %v117, 7
    %v119 = vsub.s32 0, %v118
    %v120 = vrot.slane %v86, %v119
    %v121 = vlaneseq
    %v122 = vshrl.u32 %v121, 7
    %v123 = vsub.s32 0, %v122
    %v124 = vrot.slane %v87, %v123
    %v125 = vlaneseq
    %v126 = vshrl.u32 %v125, 7
    %v127 = vsub.s32 0, %v126
    %v128 = vrot.slane %v88, %v127
    %vm137 = vcmask 261120
    %v139 = vsel %vm137, %v41, 0
    %141 = vmatprep.subr.mxu0 0.0
    %142 = vmatpush1.msra.mxu0 %v49
    %143 = vmatprep.subr.mxu0 0.0
    %144 = vmatpush1.msra.mxu0 %v50
    %145 = vmatprep.subr.mxu0 0.0
    %146 = vmatpush1.msra.mxu0 %v51
    %147 = vmatprep.subr.mxu0 0.0
    %148 = vmatpush1.msra.mxu0 %v52
    %149 = vmatprep.subr.mxu0 0.0
    %150 = vmatpush1.msra.mxu0 0.0
    %151 = vmatprep.subr.mxu0 0.0
    %152 = vmatpush1.msra.mxu0 0.0
    %153 = vmatprep.subr.mxu0 0.0
    %154 = vmatpush1.msra.mxu0 0.0
    %155 = vmatprep.subr.mxu0 0.0
    %156 = vmatpush1.msra.mxu0 0.0
    %157 = vmatprep.subr.mxu0 0.0
    %158 = vmatpush1.msra.mxu0 0.0
    %159 = vmatprep.subr.mxu0 0.0
    %160 = vmatpush1.msra.mxu0 0.0
    %161 = vmatprep.subr.mxu0 0.0
    %162 = vmatpush1.msra.mxu0 0.0
    %163 = vmatprep.subr.mxu0 0.0
    %164 = vmatpush1.msra.mxu0 0.0
    %165 = vmatprep.subr.mxu0 0.0
    %166 = vmatpush1.msra.mxu0 0.0
    %167 = vmatprep.subr.mxu0 0.0
    %168 = vmatpush1.msra.mxu0 0.0
    %169 = vmatprep.subr.mxu0 0.0
    %170 = vmatpush1.msra.mxu0 0.0
    %171 = vmatprep.subr.mxu0 0.0
    %172 = vmatpush1.msra.mxu0 0.0
    %173 = vmatprep.subr.mxu0 0.0
    %174 = vmatpush1.msra.mxu0 0.0
    %175 = vmatprep.subr.mxu0 0.0
    %176 = vmatpush1.msra.mxu0 0.0
    %177 = vmatprep.subr.mxu0 0.0
    %178 = vmatpush1.msra.mxu0 0.0
    %179 = vmatprep.subr.mxu0 0.0
    %180 = vmatpush1.msra.mxu0 0.0
    %181 = vmatprep.subr.mxu0 0.0
    %182 = vmatpush1.msra.mxu0 0.0
    %183 = vmatprep.subr.mxu0 0.0
    %184 = vmatpush1.msra.mxu0 0.0
    %185 = vmatprep.subr.mxu0 0.0
    %186 = vmatpush1.msra.mxu0 0.0
    %187 = vmatprep.subr.mxu0 0.0
    %188 = vmatpush1.msra.mxu0 0.0
    %189 = vmatprep.subr.mxu0 0.0
    %190 = vmatpush1.msra.mxu0 0.0
    %191 = vmatprep.subr.mxu0 0.0
    %192 = vmatpush1.msra.mxu0 0.0
    %193 = vmatprep.subr.mxu0 0.0
    %194 = vmatpush1.msra.mxu0 0.0
    %195 = vmatprep.subr.mxu0 0.0
    %196 = vmatpush1.msra.mxu0 0.0
    %197 = vmatprep.subr.mxu0 0.0
    %198 = vmatpush1.msra.mxu0 0.0
    %199 = vmatprep.subr.mxu0 0.0
    %200 = vmatpush1.msra.mxu0 0.0
    %201 = vmatprep.subr.mxu0 0.0
    %202 = vmatpush1.msra.mxu0 0.0
    %203 = vmatprep.subr.mxu0 0.0
    %204 = vmatpush1.msra.mxu0 0.0
    %205 = vmatprep.mubr.f32.mxu0 0.0
    %206 = vmatmul.mubr.f32.gmra.mrb[0].mxu0 %v139
    %v207 = vpop.f32.mrb[0].mxu0
    %v208 = vadd.f32 %v100, %v207
    %v209 = vpop.f32.mrb[0].mxu0
    %210 = vdwg.mxu0
    %v212 = vsel %vm137, %v42, 0
    %214 = vmatprep.subr.mxu0 0.0
    %215 = vmatpush1.msra.mxu0 %v53
    %216 = vmatprep.subr.mxu0 0.0
    %217 = vmatpush1.msra.mxu0 %v54
    %218 = vmatprep.subr.mxu0 0.0
    %219 = vmatpush1.msra.mxu0 %v55
    %220 = vmatprep.subr.mxu0 0.0
    %221 = vmatpush1.msra.mxu0 %v56
    %222 = vmatprep.subr.mxu0 0.0
    %223 = vmatpush1.msra.mxu0 0.0
    %224 = vmatprep.subr.mxu0 0.0
    %225 = vmatpush1.msra.mxu0 0.0
    %226 = vmatprep.subr.mxu0 0.0
    %227 = vmatpush1.msra.mxu0 0.0
    %228 = vmatprep.subr.mxu0 0.0
    %229 = vmatpush1.msra.mxu0 0.0
    %230 = vmatprep.subr.mxu0 0.0
    %231 = vmatpush1.msra.mxu0 0.0
    %232 = vmatprep.subr.mxu0 0.0
    %233 = vmatpush1.msra.mxu0 0.0
    %234 = vmatprep.subr.mxu0 0.0
    %235 = vmatpush1.msra.mxu0 0.0
    %236 = vmatprep.subr.mxu0 0.0
    %237 = vmatpush1.msra.mxu0 0.0
    %238 = vmatprep.subr.mxu0 0.0
    %239 = vmatpush1.msra.mxu0 0.0
    %240 = vmatprep.subr.mxu0 0.0
    %241 = vmatpush1.msra.mxu0 0.0
    %242 = vmatprep.subr.mxu0 0.0
    %243 = vmatpush1.msra.mxu0 0.0
    %244 = vmatprep.subr.mxu0 0.0
    %245 = vmatpush1.msra.mxu0 0.0
    %246 = vmatprep.subr.mxu0 0.0
    %247 = vmatpush1.msra.mxu0 0.0
    %248 = vmatprep.subr.mxu0 0.0
    %249 = vmatpush1.msra.mxu0 0.0
    %250 = vmatprep.subr.mxu0 0.0
    %251 = vmatpush1.msra.mxu0 0.0
    %252 = vmatprep.subr.mxu0 0.0
    %253 = vmatpush1.msra.mxu0 0.0
    %254 = vmatprep.subr.mxu0 0.0
    %255 = vmatpush1.msra.mxu0 0.0
    %256 = vmatprep.subr.mxu0 0.0
    %257 = vmatpush1.msra.mxu0 0.0
    %258 = vmatprep.subr.mxu0 0.0
    %259 = vmatpush1.msra.mxu0 0.0
    %260 = vmatprep.subr.mxu0 0.0
    %261 = vmatpush1.msra.mxu0 0.0
    %262 = vmatprep.subr.mxu0 0.0
    %263 = vmatpush1.msra.mxu0 0.0
    %264 = vmatprep.subr.mxu0 0.0
    %265 = vmatpush1.msra.mxu0 0.0
    %266 = vmatprep.subr.mxu0 0.0
    %267 = vmatpush1.msra.mxu0 0.0
    %268 = vmatprep.subr.mxu0 0.0
    %269 = vmatpush1.msra.mxu0 0.0
    %270 = vmatprep.subr.mxu0 0.0
    %271 = vmatpush1.msra.mxu0 0.0
    %272 = vmatprep.subr.mxu0 0.0
    %273 = vmatpush1.msra.mxu0 0.0
    %274 = vmatprep.subr.mxu0 0.0
    %275 = vmatpush1.msra.mxu0 0.0
    %276 = vmatprep.subr.mxu0 0.0
    %277 = vmatpush1.msra.mxu0 0.0
    %278 = vmatprep.mubr.f32.mxu0 0.0
    %279 = vmatmul.mubr.f32.gmra.mrb[0].mxu0 %v212
    %v280 = vpop.f32.mrb[0].mxu0
    %v281 = vadd.f32 %v104, %v280
    %v282 = vpop.f32.mrb[0].mxu0
    %283 = vdwg.mxu0
    %v285 = vsel %vm137, %v43, 0
    %287 = vmatprep.subr.mxu0 0.0
    %288 = vmatpush1.msra.mxu0 %v57
    %289 = vmatprep.subr.mxu0 0.0
    %290 = vmatpush1.msra.mxu0 %v58
    %291 = vmatprep.subr.mxu0 0.0
    %292 = vmatpush1.msra.mxu0 %v59
    %293 = vmatprep.subr.mxu0 0.0
    %294 = vmatpush1.msra.mxu0 %v60
    %295 = vmatprep.subr.mxu0 0.0
    %296 = vmatpush1.msra.mxu0 0.0
    %297 = vmatprep.subr.mxu0 0.0
    %298 = vmatpush1.msra.mxu0 0.0
    %299 = vmatprep.subr.mxu0 0.0
    %300 = vmatpush1.msra.mxu0 0.0
    %301 = vmatprep.subr.mxu0 0.0
    %302 = vmatpush1.msra.mxu0 0.0
    %303 = vmatprep.subr.mxu0 0.0
    %304 = vmatpush1.msra.mxu0 0.0
    %305 = vmatprep.subr.mxu0 0.0
    %306 = vmatpush1.msra.mxu0 0.0
    %307 = vmatprep.subr.mxu0 0.0
    %308 = vmatpush1.msra.mxu0 0.0
    %309 = vmatprep.subr.mxu0 0.0
    %310 = vmatpush1.msra.mxu0 0.0
    %311 = vmatprep.subr.mxu0 0.0
    %312 = vmatpush1.msra.mxu0 0.0
    %313 = vmatprep.subr.mxu0 0.0
    %314 = vmatpush1.msra.mxu0 0.0
    %315 = vmatprep.subr.mxu0 0.0
    %316 = vmatpush1.msra.mxu0 0.0
    %317 = vmatprep.subr.mxu0 0.0
    %318 = vmatpush1.msra.mxu0 0.0
    %319 = vmatprep.subr.mxu0 0.0
    %320 = vmatpush1.msra.mxu0 0.0
    %321 = vmatprep.subr.mxu0 0.0
    %322 = vmatpush1.msra.mxu0 0.0
    %323 = vmatprep.subr.mxu0 0.0
    %324 = vmatpush1.msra.mxu0 0.0
    %325 = vmatprep.subr.mxu0 0.0
    %326 = vmatpush1.msra.mxu0 0.0
    %327 = vmatprep.subr.mxu0 0.0
    %328 = vmatpush1.msra.mxu0 0.0
    %329 = vmatprep.subr.mxu0 0.0
    %330 = vmatpush1.msra.mxu0 0.0
    %331 = vmatprep.subr.mxu0 0.0
    %332 = vmatpush1.msra.mxu0 0.0
    %333 = vmatprep.subr.mxu0 0.0
    %334 = vmatpush1.msra.mxu0 0.0
    %335 = vmatprep.subr.mxu0 0.0
    %336 = vmatpush1.msra.mxu0 0.0
    %337 = vmatprep.subr.mxu0 0.0
    %338 = vmatpush1.msra.mxu0 0.0
    %339 = vmatprep.subr.mxu0 0.0
    %340 = vmatpush1.msra.mxu0 0.0
    %341 = vmatprep.subr.mxu0 0.0
    %342 = vmatpush1.msra.mxu0 0.0
    %343 = vmatprep.subr.mxu0 0.0
    %344 = vmatpush1.msra.mxu0 0.0
    %345 = vmatprep.subr.mxu0 0.0
    %346 = vmatpush1.msra.mxu0 0.0
    %347 = vmatprep.subr.mxu0 0.0
    %348 = vmatpush1.msra.mxu0 0.0
    %349 = vmatprep.subr.mxu0 0.0
    %350 = vmatpush1.msra.mxu0 0.0
    %351 = vmatprep.mubr.f32.mxu0 0.0
    %352 = vmatmul.mubr.f32.gmra.mrb[0].mxu0 %v285
    %v353 = vpop.f32.mrb[0].mxu0
    %v354 = vadd.f32 %v108, %v353
    %v355 = vpop.f32.mrb[0].mxu0
    %356 = vdwg.mxu0
    %v358 = vsel %vm137, %v44, 0
    %360 = vmatprep.subr.mxu0 0.0
    %361 = vmatpush1.msra.mxu0 %v61
    %362 = vmatprep.subr.mxu0 0.0
    %363 = vmatpush1.msra.mxu0 %v62
    %364 = vmatprep.subr.mxu0 0.0
    %365 = vmatpush1.msra.mxu0 %v63
    %366 = vmatprep.subr.mxu0 0.0
    %367 = vmatpush1.msra.mxu0 %v64
    %368 = vmatprep.subr.mxu0 0.0
    %369 = vmatpush1.msra.mxu0 0.0
    %370 = vmatprep.subr.mxu0 0.0
    %371 = vmatpush1.msra.mxu0 0.0
    %372 = vmatprep.subr.mxu0 0.0
    %373 = vmatpush1.msra.mxu0 0.0
    %374 = vmatprep.subr.mxu0 0.0
    %375 = vmatpush1.msra.mxu0 0.0
    %376 = vmatprep.subr.mxu0 0.0
    %377 = vmatpush1.msra.mxu0 0.0
    %378 = vmatprep.subr.mxu0 0.0
    %379 = vmatpush1.msra.mxu0 0.0
    %380 = vmatprep.subr.mxu0 0.0
    %381 = vmatpush1.msra.mxu0 0.0
    %382 = vmatprep.subr.mxu0 0.0
    %383 = vmatpush1.msra.mxu0 0.0
    %384 = vmatprep.subr.mxu0 0.0
    %385 = vmatpush1.msra.mxu0 0.0
    %386 = vmatprep.subr.mxu0 0.0
    %387 = vmatpush1.msra.mxu0 0.0
    %388 = vmatprep.subr.mxu0 0.0
    %389 = vmatpush1.msra.mxu0 0.0
    %390 = vmatprep.subr.mxu0 0.0
    %391 = vmatpush1.msra.mxu0 0.0
    %392 = vmatprep.subr.mxu0 0.0
    %393 = vmatpush1.msra.mxu0 0.0
    %394 = vmatprep.subr.mxu0 0.0
    %395 = vmatpush1.msra.mxu0 0.0
    %396 = vmatprep.subr.mxu0 0.0
    %397 = vmatpush1.msra.mxu0 0.0
    %398 = vmatprep.subr.mxu0 0.0
    %399 = vmatpush1.msra.mxu0 0.0
    %400 = vmatprep.subr.mxu0 0.0
    %401 = vmatpush1.msra.mxu0 0.0
    %402 = vmatprep.subr.mxu0 0.0
    %403 = vmatpush1.msra.mxu0 0.0
    %404 = vmatprep.subr.mxu0 0.0
    %405 = vmatpush1.msra.mxu0 0.0
    %406 = vmatprep.subr.mxu0 0.0
    %407 = vmatpush1.msra.mxu0 0.0
    %408 = vmatprep.subr.mxu0 0.0
    %409 = vmatpush1.msra.mxu0 0.0
    %410 = vmatprep.subr.mxu0 0.0
    %411 = vmatpush1.msra.mxu0 0.0
    %412 = vmatprep.subr.mxu0 0.0
    %413 = vmatpush1.msra.mxu0 0.0
    %414 = vmatprep.subr.mxu0 0.0
    %415 = vmatpush1.msra.mxu0 0.0
    %416 = vmatprep.subr.mxu0 0.0
    %417 = vmatpush1.msra.mxu0 0.0
    %418 = vmatprep.subr.mxu0 0.0
    %419 = vmatpush1.msra.mxu0 0.0
    %420 = vmatprep.subr.mxu0 0.0
    %421 = vmatpush1.msra.mxu0 0.0
    %422 = vmatprep.subr.mxu0 0.0
    %423 = vmatpush1.msra.mxu0 0.0
    %424 = vmatprep.mubr.f32.mxu0 0.0
    %425 = vmatmul.mubr.f32.gmra.mrb[0].mxu0 %v358
    %v426 = vpop.f32.mrb[0].mxu0
    %v427 = vadd.f32 %v112, %v426
    %v428 = vpop.f32.mrb[0].mxu0
    %429 = vdwg.mxu0
    %v431 = vsel %vm137, %v45, 0
    %433 = vmatprep.subr.mxu0 0.0
    %434 = vmatpush1.msra.mxu0 %v65
    %435 = vmatprep.subr.mxu0 0.0
    %436 = vmatpush1.msra.mxu0 %v66
    %437 = vmatprep.subr.mxu0 0.0
    %438 = vmatpush1.msra.mxu0 %v67
    %439 = vmatprep.subr.mxu0 0.0
    %440 = vmatpush1.msra.mxu0 %v68
    %441 = vmatprep.subr.mxu0 0.0
    %442 = vmatpush1.msra.mxu0 0.0
    %443 = vmatprep.subr.mxu0 0.0
    %444 = vmatpush1.msra.mxu0 0.0
    %445 = vmatprep.subr.mxu0 0.0
    %446 = vmatpush1.msra.mxu0 0.0
    %447 = vmatprep.subr.mxu0 0.0
    %448 = vmatpush1.msra.mxu0 0.0
    %449 = vmatprep.subr.mxu0 0.0
    %450 = vmatpush1.msra.mxu0 0.0
    %451 = vmatprep.subr.mxu0 0.0
    %452 = vmatpush1.msra.mxu0 0.0
    %453 = vmatprep.subr.mxu0 0.0
    %454 = vmatpush1.msra.mxu0 0.0
    %455 = vmatprep.subr.mxu0 0.0
    %456 = vmatpush1.msra.mxu0 0.0
    %457 = vmatprep.subr.mxu0 0.0
    %458 = vmatpush1.msra.mxu0 0.0
    %459 = vmatprep.subr.mxu0 0.0
    %460 = vmatpush1.msra.mxu0 0.0
    %461 = vmatprep.subr.mxu0 0.0
    %462 = vmatpush1.msra.mxu0 0.0
    %463 = vmatprep.subr.mxu0 0.0
    %464 = vmatpush1.msra.mxu0 0.0
    %465 = vmatprep.subr.mxu0 0.0
    %466 = vmatpush1.msra.mxu0 0.0
    %467 = vmatprep.subr.mxu0 0.0
    %468 = vmatpush1.msra.mxu0 0.0
    %469 = vmatprep.subr.mxu0 0.0
    %470 = vmatpush1.msra.mxu0 0.0
    %471 = vmatprep.subr.mxu0 0.0
    %472 = vmatpush1.msra.mxu0 0.0
    %473 = vmatprep.subr.mxu0 0.0
    %474 = vmatpush1.msra.mxu0 0.0
    %475 = vmatprep.subr.mxu0 0.0
    %476 = vmatpush1.msra.mxu0 0.0
    %477 = vmatprep.subr.mxu0 0.0
    %478 = vmatpush1.msra.mxu0 0.0
    %479 = vmatprep.subr.mxu0 0.0
    %480 = vmatpush1.msra.mxu0 0.0
    %481 = vmatprep.subr.mxu0 0.0
    %482 = vmatpush1.msra.mxu0 0.0
    %483 = vmatprep.subr.mxu0 0.0
    %484 = vmatpush1.msra.mxu0 0.0
    %485 = vmatprep.subr.mxu0 0.0
    %486 = vmatpush1.msra.mxu0 0.0
    %487 = vmatprep.subr.mxu0 0.0
    %488 = vmatpush1.msra.mxu0 0.0
    %489 = vmatprep.subr.mxu0 0.0
    %490 = vmatpush1.msra.mxu0 0.0
    %491 = vmatprep.subr.mxu0 0.0
    %492 = vmatpush1.msra.mxu0 0.0
    %493 = vmatprep.subr.mxu0 0.0
    %494 = vmatpush1.msra.mxu0 0.0
    %495 = vmatprep.subr.mxu0 0.0
    %496 = vmatpush1.msra.mxu0 0.0
    %497 = vmatprep.mubr.f32.mxu0 0.0
    %498 = vmatmul.mubr.f32.gmra.mrb[0].mxu0 %v431
    %v499 = vpop.f32.mrb[0].mxu0
    %v500 = vadd.f32 %v116, %v499
    %v501 = vpop.f32.mrb[0].mxu0
    %502 = vdwg.mxu0
    %v504 = vsel %vm137, %v46, 0
    %506 = vmatprep.subr.mxu0 0.0
    %507 = vmatpush1.msra.mxu0 %v69
    %508 = vmatprep.subr.mxu0 0.0
    %509 = vmatpush1.msra.mxu0 %v70
    %510 = vmatprep.subr.mxu0 0.0
    %511 = vmatpush1.msra.mxu0 %v71
    %512 = vmatprep.subr.mxu0 0.0
    %513 = vmatpush1.msra.mxu0 %v72
    %514 = vmatprep.subr.mxu0 0.0
    %515 = vmatpush1.msra.mxu0 0.0
    %516 = vmatprep.subr.mxu0 0.0
    %517 = vmatpush1.msra.mxu0 0.0
    %518 = vmatprep.subr.mxu0 0.0
    %519 = vmatpush1.msra.mxu0 0.0
    %520 = vmatprep.subr.mxu0 0.0
    %521 = vmatpush1.msra.mxu0 0.0
    %522 = vmatprep.subr.mxu0 0.0
    %523 = vmatpush1.msra.mxu0 0.0
    %524 = vmatprep.subr.mxu0 0.0
    %525 = vmatpush1.msra.mxu0 0.0
    %526 = vmatprep.subr.mxu0 0.0
    %527 = vmatpush1.msra.mxu0 0.0
    %528 = vmatprep.subr.mxu0 0.0
    %529 = vmatpush1.msra.mxu0 0.0
    %530 = vmatprep.subr.mxu0 0.0
    %531 = vmatpush1.msra.mxu0 0.0
    %532 = vmatprep.subr.mxu0 0.0
    %533 = vmatpush1.msra.mxu0 0.0
    %534 = vmatprep.subr.mxu0 0.0
    %535 = vmatpush1.msra.mxu0 0.0
    %536 = vmatprep.subr.mxu0 0.0
    %537 = vmatpush1.msra.mxu0 0.0
    %538 = vmatprep.subr.mxu0 0.0
    %539 = vmatpush1.msra.mxu0 0.0
    %540 = vmatprep.subr.mxu0 0.0
    %541 = vmatpush1.msra.mxu0 0.0
    %542 = vmatprep.subr.mxu0 0.0
    %543 = vmatpush1.msra.mxu0 0.0
    %544 = vmatprep.subr.mxu0 0.0
    %545 = vmatpush1.msra.mxu0 0.0
    %546 = vmatprep.subr.mxu0 0.0
    %547 = vmatpush1.msra.mxu0 0.0
    %548 = vmatprep.subr.mxu0 0.0
    %549 = vmatpush1.msra.mxu0 0.0
    %550 = vmatprep.subr.mxu0 0.0
    %551 = vmatpush1.msra.mxu0 0.0
    %552 = vmatprep.subr.mxu0 0.0
    %553 = vmatpush1.msra.mxu0 0.0
    %554 = vmatprep.subr.mxu0 0.0
    %555 = vmatpush1.msra.mxu0 0.0
    %556 = vmatprep.subr.mxu0 0.0
    %557 = vmatpush1.msra.mxu0 0.0
    %558 = vmatprep.subr.mxu0 0.0
    %559 = vmatpush1.msra.mxu0 0.0
    %560 = vmatprep.subr.mxu0 0.0
    %561 = vmatpush1.msra.mxu0 0.0
    %562 = vmatprep.subr.mxu0 0.0
    %563 = vmatpush1.msra.mxu0 0.0
    %564 = vmatprep.subr.mxu0 0.0
    %565 = vmatpush1.msra.mxu0 0.0
    %566 = vmatprep.subr.mxu0 0.0
    %567 = vmatpush1.msra.mxu0 0.0
    %568 = vmatprep.subr.mxu0 0.0
    %569 = vmatpush1.msra.mxu0 0.0
    %570 = vmatprep.mubr.f32.mxu0 0.0
    %571 = vmatmul.mubr.f32.gmra.mrb[0].mxu0 %v504
    %v572 = vpop.f32.mrb[0].mxu0
    %v573 = vadd.f32 %v120, %v572
    %v574 = vpop.f32.mrb[0].mxu0
    %575 = vdwg.mxu0
    %v577 = vsel %vm137, %v47, 0
    %579 = vmatprep.subr.mxu0 0.0
    %580 = vmatpush1.msra.mxu0 %v73
    %581 = vmatprep.subr.mxu0 0.0
    %582 = vmatpush1.msra.mxu0 %v74
    %583 = vmatprep.subr.mxu0 0.0
    %584 = vmatpush1.msra.mxu0 %v75
    %585 = vmatprep.subr.mxu0 0.0
    %586 = vmatpush1.msra.mxu0 %v76
    %587 = vmatprep.subr.mxu0 0.0
    %588 = vmatpush1.msra.mxu0 0.0
    %589 = vmatprep.subr.mxu0 0.0
    %590 = vmatpush1.msra.mxu0 0.0
    %591 = vmatprep.subr.mxu0 0.0
    %592 = vmatpush1.msra.mxu0 0.0
    %593 = vmatprep.subr.mxu0 0.0
    %594 = vmatpush1.msra.mxu0 0.0
    %595 = vmatprep.subr.mxu0 0.0
    %596 = vmatpush1.msra.mxu0 0.0
    %597 = vmatprep.subr.mxu0 0.0
    %598 = vmatpush1.msra.mxu0 0.0
    %599 = vmatprep.subr.mxu0 0.0
    %600 = vmatpush1.msra.mxu0 0.0
    %601 = vmatprep.subr.mxu0 0.0
    %602 = vmatpush1.msra.mxu0 0.0
    %603 = vmatprep.subr.mxu0 0.0
    %604 = vmatpush1.msra.mxu0 0.0
    %605 = vmatprep.subr.mxu0 0.0
    %606 = vmatpush1.msra.mxu0 0.0
    %607 = vmatprep.subr.mxu0 0.0
    %608 = vmatpush1.msra.mxu0 0.0
    %609 = vmatprep.subr.mxu0 0.0
    %610 = vmatpush1.msra.mxu0 0.0
    %611 = vmatprep.subr.mxu0 0.0
    %612 = vmatpush1.msra.mxu0 0.0
    %613 = vmatprep.subr.mxu0 0.0
    %614 = vmatpush1.msra.mxu0 0.0
    %615 = vmatprep.subr.mxu0 0.0
    %616 = vmatpush1.msra.mxu0 0.0
    %617 = vmatprep.subr.mxu0 0.0
    %618 = vmatpush1.msra.mxu0 0.0
    %619 = vmatprep.subr.mxu0 0.0
    %620 = vmatpush1.msra.mxu0 0.0
    %621 = vmatprep.subr.mxu0 0.0
    %622 = vmatpush1.msra.mxu0 0.0
    %623 = vmatprep.subr.mxu0 0.0
    %624 = vmatpush1.msra.mxu0 0.0
    %625 = vmatprep.subr.mxu0 0.0
    %626 = vmatpush1.msra.mxu0 0.0
    %627 = vmatprep.subr.mxu0 0.0
    %628 = vmatpush1.msra.mxu0 0.0
    %629 = vmatprep.subr.mxu0 0.0
    %630 = vmatpush1.msra.mxu0 0.0
    %631 = vmatprep.subr.mxu0 0.0
    %632 = vmatpush1.msra.mxu0 0.0
    %633 = vmatprep.subr.mxu0 0.0
    %634 = vmatpush1.msra.mxu0 0.0
    %635 = vmatprep.subr.mxu0 0.0
    %636 = vmatpush1.msra.mxu0 0.0
    %637 = vmatprep.subr.mxu0 0.0
    %638 = vmatpush1.msra.mxu0 0.0
    %639 = vmatprep.subr.mxu0 0.0
    %640 = vmatpush1.msra.mxu0 0.0
    %641 = vmatprep.subr.mxu0 0.0
    %642 = vmatpush1.msra.mxu0 0.0
    %643 = vmatprep.mubr.f32.mxu0 0.0
    %644 = vmatmul.mubr.f32.gmra.mrb[0].mxu0 %v577
    %v645 = vpop.f32.mrb[0].mxu0
    %v646 = vadd.f32 %v124, %v645
    %v647 = vpop.f32.mrb[0].mxu0
    %648 = vdwg.mxu0
    %v650 = vsel %vm137, %v48, 0
    %652 = vmatprep.subr.mxu0 0.0
    %653 = vmatpush1.msra.mxu0 %v77
    %654 = vmatprep.subr.mxu0 0.0
    %655 = vmatpush1.msra.mxu0 %v78
    %656 = vmatprep.subr.mxu0 0.0
    %657 = vmatpush1.msra.mxu0 %v79
    %658 = vmatprep.subr.mxu0 0.0
    %659 = vmatpush1.msra.mxu0 %v80
    %660 = vmatprep.subr.mxu0 0.0
    %661 = vmatpush1.msra.mxu0 0.0
    %662 = vmatprep.subr.mxu0 0.0
    %663 = vmatpush1.msra.mxu0 0.0
    %664 = vmatprep.subr.mxu0 0.0
    %665 = vmatpush1.msra.mxu0 0.0
    %666 = vmatprep.subr.mxu0 0.0
    %667 = vmatpush1.msra.mxu0 0.0
    %668 = vmatprep.subr.mxu0 0.0
    %669 = vmatpush1.msra.mxu0 0.0
    %670 = vmatprep.subr.mxu0 0.0
    %671 = vmatpush1.msra.mxu0 0.0
    %672 = vmatprep.subr.mxu0 0.0
    %673 = vmatpush1.msra.mxu0 0.0
    %674 = vmatprep.subr.mxu0 0.0
    %675 = vmatpush1.msra.mxu0 0.0
    %676 = vmatprep.subr.mxu0 0.0
    %677 = vmatpush1.msra.mxu0 0.0
    %678 = vmatprep.subr.mxu0 0.0
    %679 = vmatpush1.msra.mxu0 0.0
    %680 = vmatprep.subr.mxu0 0.0
    %681 = vmatpush1.msra.mxu0 0.0
    %682 = vmatprep.subr.mxu0 0.0
    %683 = vmatpush1.msra.mxu0 0.0
    %684 = vmatprep.subr.mxu0 0.0
    %685 = vmatpush1.msra.mxu0 0.0
    %686 = vmatprep.subr.mxu0 0.0
    %687 = vmatpush1.msra.mxu0 0.0
    %688 = vmatprep.subr.mxu0 0.0
    %689 = vmatpush1.msra.mxu0 0.0
    %690 = vmatprep.subr.mxu0 0.0
    %691 = vmatpush1.msra.mxu0 0.0
    %692 = vmatprep.subr.mxu0 0.0
    %693 = vmatpush1.msra.mxu0 0.0
    %694 = vmatprep.subr.mxu0 0.0
    %695 = vmatpush1.msra.mxu0 0.0
    %696 = vmatprep.subr.mxu0 0.0
    %697 = vmatpush1.msra.mxu0 0.0
    %698 = vmatprep.subr.mxu0 0.0
    %699 = vmatpush1.msra.mxu0 0.0
    %700 = vmatprep.subr.mxu0 0.0
    %701 = vmatpush1.msra.mxu0 0.0
    %702 = vmatprep.subr.mxu0 0.0
    %703 = vmatpush1.msra.mxu0 0.0
    %704 = vmatprep.subr.mxu0 0.0
    %705 = vmatpush1.msra.mxu0 0.0
    %706 = vmatprep.subr.mxu0 0.0
    %707 = vmatpush1.msra.mxu0 0.0
    %708 = vmatprep.subr.mxu0 0.0
    %709 = vmatpush1.msra.mxu0 0.0
    %710 = vmatprep.subr.mxu0 0.0
    %711 = vmatpush1.msra.mxu0 0.0
    %712 = vmatprep.subr.mxu0 0.0
    %713 = vmatpush1.msra.mxu0 0.0
    %714 = vmatprep.subr.mxu0 0.0
    %715 = vmatpush1.msra.mxu0 0.0
    %716 = vmatprep.mubr.f32.mxu0 0.0
    %717 = vmatmul.mubr.f32.gmra.mrb[0].mxu0 %v650
    %v718 = vpop.f32.mrb[0].mxu0
    %v719 = vadd.f32 %v128, %v718
    %v720 = vpop.f32.mrb[0].mxu0
    %721 = vdwg.mxu0
    %v722 = vld [vmem:[%s2] sm:$0xff]
    %v723 = vld [vmem:[%s2 + $0x8] sm:$0xff]
    %v724 = vld [vmem:[%s2 + $0x10] sm:$0xff]
    %v725 = vld [vmem:[%s2 + $0x18] sm:$0xff]
    %v726 = vld [vmem:[%s2 + $0x20] sm:$0xff]
    %v727 = vld [vmem:[%s2 + $0x28] sm:$0xff]
    %v728 = vld [vmem:[%s2 + $0x30] sm:$0xff]
    %v729 = vld [vmem:[%s2 + $0x38] sm:$0xff]
    %v730 = vld [vmem:[%s2 + $0x40] sm:$0xff]
    %v731 = vld [vmem:[%s2 + $0x48] sm:$0xff]
    %v732 = vld [vmem:[%s2 + $0x50] sm:$0xff]
    %v733 = vld [vmem:[%s2 + $0x58] sm:$0xff]
    %v734 = vld [vmem:[%s2 + $0x60] sm:$0xff]
    %v735 = vld [vmem:[%s2 + $0x68] sm:$0xff]
    %v736 = vld [vmem:[%s2 + $0x70] sm:$0xff]
    %v737 = vld [vmem:[%s2 + $0x78] sm:$0xff]
    %v738 = vld [vmem:[%s2 + $0x80] sm:$0xff]
    %v739 = vld [vmem:[%s2 + $0x88] sm:$0xff]
    %v740 = vld [vmem:[%s2 + $0x90] sm:$0xff]
    %v741 = vld [vmem:[%s2 + $0x98] sm:$0xff]
    %v742 = vld [vmem:[%s2 + $0xa0] sm:$0xff]
    %v743 = vld [vmem:[%s2 + $0xa8] sm:$0xff]
    %v744 = vld [vmem:[%s2 + $0xb0] sm:$0xff]
    %v745 = vld [vmem:[%s2 + $0xb8] sm:$0xff]
    %v746 = vld [vmem:[%s2 + $0xc0] sm:$0xff]
    %v747 = vld [vmem:[%s2 + $0xc8] sm:$0xff]
    %v748 = vld [vmem:[%s2 + $0xd0] sm:$0xff]
    %v749 = vld [vmem:[%s2 + $0xd8] sm:$0xff]
    %v750 = vld [vmem:[%s2 + $0xe0] sm:$0xff]
    %v751 = vld [vmem:[%s2 + $0xe8] sm:$0xff]
    %v752 = vld [vmem:[%s2 + $0xf0] sm:$0xff]
    %v753 = vld [vmem:[%s2 + $0xf8] sm:$0xff]
    %v754 = vld [vmem:[%s5] sm:$0x1]
    %v755 = vld [vmem:[%s5 + $0x1] sm:$0x1]
    %v756 = vld [vmem:[%s5 + $0x2] sm:$0x1]
    %v757 = vld [vmem:[%s5 + $0x3] sm:$0x1]
    %v758 = vld [vmem:[%s5 + $0x4] sm:$0x1]
    %v759 = vld [vmem:[%s5 + $0x5] sm:$0x1]
    %v760 = vld [vmem:[%s5 + $0x6] sm:$0x1]
    %v761 = vld [vmem:[%s5 + $0x7] sm:$0x1]
    %v770 = vlaneseq
    %v771 = vshrl.u32 %v770, 7
    %v772 = vsub.s32 0, %v771
    %v773 = vrot.slane %v754, %v772
    %v774 = vlaneseq
    %v775 = vshrl.u32 %v774, 7
    %v776 = vsub.s32 0, %v775
    %v777 = vrot.slane %v755, %v776
    %v778 = vlaneseq
    %v779 = vshrl.u32 %v778, 7
    %v780 = vsub.s32 0, %v779
    %v781 = vrot.slane %v756, %v780
    %v782 = vlaneseq
    %v783 = vshrl.u32 %v782, 7
    %v784 = vsub.s32 0, %v783
    %v785 = vrot.slane %v757, %v784
    %v786 = vlaneseq
    %v787 = vshrl.u32 %v786, 7
    %v788 = vsub.s32 0, %v787
    %v789 = vrot.slane %v758, %v788
    %v790 = vlaneseq
    %v791 = vshrl.u32 %v790, 7
    %v792 = vsub.s32 0, %v791
    %v793 = vrot.slane %v759, %v792
    %v794 = vlaneseq
    %v795 = vshrl.u32 %v794, 7
    %v796 = vsub.s32 0, %v795
    %v797 = vrot.slane %v760, %v796
    %v798 = vlaneseq
    %v799 = vshrl.u32 %v798, 7
    %v800 = vsub.s32 0, %v799
    %v801 = vrot.slane %v761, %v800
    %810 = vmatprep.subr.mxu0 0.0
    %811 = vmatpush1.msra.mxu0 %v722
    %812 = vmatprep.subr.mxu0 0.0
    %813 = vmatpush1.msra.mxu0 %v723
    %814 = vmatprep.subr.mxu0 0.0
    %815 = vmatpush1.msra.mxu0 %v724
    %816 = vmatprep.subr.mxu0 0.0
    %817 = vmatpush1.msra.mxu0 %v725
    %818 = vmatprep.subr.mxu0 0.0
    %819 = vmatpush1.msra.mxu0 0.0
    %820 = vmatprep.subr.mxu0 0.0
    %821 = vmatpush1.msra.mxu0 0.0
    %822 = vmatprep.subr.mxu0 0.0
    %823 = vmatpush1.msra.mxu0 0.0
    %824 = vmatprep.subr.mxu0 0.0
    %825 = vmatpush1.msra.mxu0 0.0
    %826 = vmatprep.subr.mxu0 0.0
    %827 = vmatpush1.msra.mxu0 0.0
    %828 = vmatprep.subr.mxu0 0.0
    %829 = vmatpush1.msra.mxu0 0.0
    %830 = vmatprep.subr.mxu0 0.0
    %831 = vmatpush1.msra.mxu0 0.0
    %832 = vmatprep.subr.mxu0 0.0
    %833 = vmatpush1.msra.mxu0 0.0
    %834 = vmatprep.subr.mxu0 0.0
    %835 = vmatpush1.msra.mxu0 0.0
    %836 = vmatprep.subr.mxu0 0.0
    %837 = vmatpush1.msra.mxu0 0.0
    %838 = vmatprep.subr.mxu0 0.0
    %839 = vmatpush1.msra.mxu0 0.0
    %840 = vmatprep.subr.mxu0 0.0
    %841 = vmatpush1.msra.mxu0 0.0
    %842 = vmatprep.subr.mxu0 0.0
    %843 = vmatpush1.msra.mxu0 0.0
    %844 = vmatprep.subr.mxu0 0.0
    %845 = vmatpush1.msra.mxu0 0.0
    %846 = vmatprep.subr.mxu0 0.0
    %847 = vmatpush1.msra.mxu0 0.0
    %848 = vmatprep.subr.mxu0 0.0
    %849 = vmatpush1.msra.mxu0 0.0
    %850 = vmatprep.subr.mxu0 0.0
    %851 = vmatpush1.msra.mxu0 0.0
    %852 = vmatprep.subr.mxu0 0.0
    %853 = vmatpush1.msra.mxu0 0.0
    %854 = vmatprep.subr.mxu0 0.0
    %855 = vmatpush1.msra.mxu0 0.0
    %856 = vmatprep.subr.mxu0 0.0
    %857 = vmatpush1.msra.mxu0 0.0
    %858 = vmatprep.subr.mxu0 0.0
    %859 = vmatpush1.msra.mxu0 0.0
    %860 = vmatprep.subr.mxu0 0.0
    %861 = vmatpush1.msra.mxu0 0.0
    %862 = vmatprep.subr.mxu0 0.0
    %863 = vmatpush1.msra.mxu0 0.0
    %864 = vmatprep.subr.mxu0 0.0
    %865 = vmatpush1.msra.mxu0 0.0
    %866 = vmatprep.subr.mxu0 0.0
    %867 = vmatpush1.msra.mxu0 0.0
    %868 = vmatprep.subr.mxu0 0.0
    %869 = vmatpush1.msra.mxu0 0.0
    %870 = vmatprep.subr.mxu0 0.0
    %871 = vmatpush1.msra.mxu0 0.0
    %872 = vmatprep.subr.mxu0 0.0
    %873 = vmatpush1.msra.mxu0 0.0
    %874 = vmatprep.mubr.f32.mxu0 0.0
    %875 = vmatmul.mubr.f32.gmra.mrb[0].mxu0 %v139
    %v876 = vpop.f32.mrb[0].mxu0
    %v877 = vadd.f32 %v773, %v876
    %v878 = vpop.f32.mrb[0].mxu0
    %879 = vdwg.mxu0
    %880 = vmatprep.subr.mxu0 0.0
    %881 = vmatpush1.msra.mxu0 %v726
    %882 = vmatprep.subr.mxu0 0.0
    %883 = vmatpush1.msra.mxu0 %v727
    %884 = vmatprep.subr.mxu0 0.0
    %885 = vmatpush1.msra.mxu0 %v728
    %886 = vmatprep.subr.mxu0 0.0
    %887 = vmatpush1.msra.mxu0 %v729
    %888 = vmatprep.subr.mxu0 0.0
    %889 = vmatpush1.msra.mxu0 0.0
    %890 = vmatprep.subr.mxu0 0.0
    %891 = vmatpush1.msra.mxu0 0.0
    %892 = vmatprep.subr.mxu0 0.0
    %893 = vmatpush1.msra.mxu0 0.0
    %894 = vmatprep.subr.mxu0 0.0
    %895 = vmatpush1.msra.mxu0 0.0
    %896 = vmatprep.subr.mxu0 0.0
    %897 = vmatpush1.msra.mxu0 0.0
    %898 = vmatprep.subr.mxu0 0.0
    %899 = vmatpush1.msra.mxu0 0.0
    %900 = vmatprep.subr.mxu0 0.0
    %901 = vmatpush1.msra.mxu0 0.0
    %902 = vmatprep.subr.mxu0 0.0
    %903 = vmatpush1.msra.mxu0 0.0
    %904 = vmatprep.subr.mxu0 0.0
    %905 = vmatpush1.msra.mxu0 0.0
    %906 = vmatprep.subr.mxu0 0.0
    %907 = vmatpush1.msra.mxu0 0.0
    %908 = vmatprep.subr.mxu0 0.0
    %909 = vmatpush1.msra.mxu0 0.0
    %910 = vmatprep.subr.mxu0 0.0
    %911 = vmatpush1.msra.mxu0 0.0
    %912 = vmatprep.subr.mxu0 0.0
    %913 = vmatpush1.msra.mxu0 0.0
    %914 = vmatprep.subr.mxu0 0.0
    %915 = vmatpush1.msra.mxu0 0.0
    %916 = vmatprep.subr.mxu0 0.0
    %917 = vmatpush1.msra.mxu0 0.0
    %918 = vmatprep.subr.mxu0 0.0
    %919 = vmatpush1.msra.mxu0 0.0
    %920 = vmatprep.subr.mxu0 0.0
    %921 = vmatpush1.msra.mxu0 0.0
    %922 = vmatprep.subr.mxu0 0.0
    %923 = vmatpush1.msra.mxu0 0.0
    %924 = vmatprep.subr.mxu0 0.0
    %925 = vmatpush1.msra.mxu0 0.0
    %926 = vmatprep.subr.mxu0 0.0
    %927 = vmatpush1.msra.mxu0 0.0
    %928 = vmatprep.subr.mxu0 0.0
    %929 = vmatpush1.msra.mxu0 0.0
    %930 = vmatprep.subr.mxu0 0.0
    %931 = vmatpush1.msra.mxu0 0.0
    %932 = vmatprep.subr.mxu0 0.0
    %933 = vmatpush1.msra.mxu0 0.0
    %934 = vmatprep.subr.mxu0 0.0
    %935 = vmatpush1.msra.mxu0 0.0
    %936 = vmatprep.subr.mxu0 0.0
    %937 = vmatpush1.msra.mxu0 0.0
    %938 = vmatprep.subr.mxu0 0.0
    %939 = vmatpush1.msra.mxu0 0.0
    %940 = vmatprep.subr.mxu0 0.0
    %941 = vmatpush1.msra.mxu0 0.0
    %942 = vmatprep.subr.mxu0 0.0
    %943 = vmatpush1.msra.mxu0 0.0
    %944 = vmatprep.mubr.f32.mxu0 0.0
    %945 = vmatmul.mubr.f32.gmra.mrb[0].mxu0 %v212
    %v946 = vpop.f32.mrb[0].mxu0
    %v947 = vadd.f32 %v777, %v946
    %v948 = vpop.f32.mrb[0].mxu0
    %949 = vdwg.mxu0
    %950 = vmatprep.subr.mxu0 0.0
    %951 = vmatpush1.msra.mxu0 %v730
    %952 = vmatprep.subr.mxu0 0.0
    %953 = vmatpush1.msra.mxu0 %v731
    %954 = vmatprep.subr.mxu0 0.0
    %955 = vmatpush1.msra.mxu0 %v732
    %956 = vmatprep.subr.mxu0 0.0
    %957 = vmatpush1.msra.mxu0 %v733
    %958 = vmatprep.subr.mxu0 0.0
    %959 = vmatpush1.msra.mxu0 0.0
    %960 = vmatprep.subr.mxu0 0.0
    %961 = vmatpush1.msra.mxu0 0.0
    %962 = vmatprep.subr.mxu0 0.0
    %963 = vmatpush1.msra.mxu0 0.0
    %964 = vmatprep.subr.mxu0 0.0
    %965 = vmatpush1.msra.mxu0 0.0
    %966 = vmatprep.subr.mxu0 0.0
    %967 = vmatpush1.msra.mxu0 0.0
    %968 = vmatprep.subr.mxu0 0.0
    %969 = vmatpush1.msra.mxu0 0.0
    %970 = vmatprep.subr.mxu0 0.0
    %971 = vmatpush1.msra.mxu0 0.0
    %972 = vmatprep.subr.mxu0 0.0
    %973 = vmatpush1.msra.mxu0 0.0
    %974 = vmatprep.subr.mxu0 0.0
    %975 = vmatpush1.msra.mxu0 0.0
    %976 = vmatprep.subr.mxu0 0.0
    %977 = vmatpush1.msra.mxu0 0.0
    %978 = vmatprep.subr.mxu0 0.0
    %979 = vmatpush1.msra.mxu0 0.0
    %980 = vmatprep.subr.mxu0 0.0
    %981 = vmatpush1.msra.mxu0 0.0
    %982 = vmatprep.subr.mxu0 0.0
    %983 = vmatpush1.msra.mxu0 0.0
    %984 = vmatprep.subr.mxu0 0.0
    %985 = vmatpush1.msra.mxu0 0.0
    %986 = vmatprep.subr.mxu0 0.0
    %987 = vmatpush1.msra.mxu0 0.0
    %988 = vmatprep.subr.mxu0 0.0
    %989 = vmatpush1.msra.mxu0 0.0
    %990 = vmatprep.subr.mxu0 0.0
    %991 = vmatpush1.msra.mxu0 0.0
    %992 = vmatprep.subr.mxu0 0.0
    %993 = vmatpush1.msra.mxu0 0.0
    %994 = vmatprep.subr.mxu0 0.0
    %995 = vmatpush1.msra.mxu0 0.0
    %996 = vmatprep.subr.mxu0 0.0
    %997 = vmatpush1.msra.mxu0 0.0
    %998 = vmatprep.subr.mxu0 0.0
    %999 = vmatpush1.msra.mxu0 0.0
    %1000 = vmatprep.subr.mxu0 0.0
    %1001 = vmatpush1.msra.mxu0 0.0
    %1002 = vmatprep.subr.mxu0 0.0
    %1003 = vmatpush1.msra.mxu0 0.0
    %1004 = vmatprep.subr.mxu0 0.0
    %1005 = vmatpush1.msra.mxu0 0.0
    %1006 = vmatprep.subr.mxu0 0.0
    %1007 = vmatpush1.msra.mxu0 0.0
    %1008 = vmatprep.subr.mxu0 0.0
    %1009 = vmatpush1.msra.mxu0 0.0
    %1010 = vmatprep.subr.mxu0 0.0
    %1011 = vmatpush1.msra.mxu0 0.0
    %1012 = vmatprep.subr.mxu0 0.0
    %1013 = vmatpush1.msra.mxu0 0.0
    %1014 = vmatprep.mubr.f32.mxu0 0.0
    %1015 = vmatmul.mubr.f32.gmra.mrb[0].mxu0 %v285
    %v1016 = vpop.f32.mrb[0].mxu0
    %v1017 = vadd.f32 %v781, %v1016
    %v1018 = vpop.f32.mrb[0].mxu0
    %1019 = vdwg.mxu0
    %1020 = vmatprep.subr.mxu0 0.0
    %1021 = vmatpush1.msra.mxu0 %v734
    %1022 = vmatprep.subr.mxu0 0.0
    %1023 = vmatpush1.msra.mxu0 %v735
    %1024 = vmatprep.subr.mxu0 0.0
    %1025 = vmatpush1.msra.mxu0 %v736
    %1026 = vmatprep.subr.mxu0 0.0
    %1027 = vmatpush1.msra.mxu0 %v737
    %1028 = vmatprep.subr.mxu0 0.0
    %1029 = vmatpush1.msra.mxu0 0.0
    %1030 = vmatprep.subr.mxu0 0.0
    %1031 = vmatpush1.msra.mxu0 0.0
    %1032 = vmatprep.subr.mxu0 0.0
    %1033 = vmatpush1.msra.mxu0 0.0
    %1034 = vmatprep.subr.mxu0 0.0
    %1035 = vmatpush1.msra.mxu0 0.0
    %1036 = vmatprep.subr.mxu0 0.0
    %1037 = vmatpush1.msra.mxu0 0.0
    %1038 = vmatprep.subr.mxu0 0.0
    %1039 = vmatpush1.msra.mxu0 0.0
    %1040 = vmatprep.subr.mxu0 0.0
    %1041 = vmatpush1.msra.mxu0 0.0
    %1042 = vmatprep.subr.mxu0 0.0
    %1043 = vmatpush1.msra.mxu0 0.0
    %1044 = vmatprep.subr.mxu0 0.0
    %1045 = vmatpush1.msra.mxu0 0.0
    %1046 = vmatprep.subr.mxu0 0.0
    %1047 = vmatpush1.msra.mxu0 0.0
    %1048 = vmatprep.subr.mxu0 0.0
    %1049 = vmatpush1.msra.mxu0 0.0
    %1050 = vmatprep.subr.mxu0 0.0
    %1051 = vmatpush1.msra.mxu0 0.0
    %1052 = vmatprep.subr.mxu0 0.0
    %1053 = vmatpush1.msra.mxu0 0.0
    %1054 = vmatprep.subr.mxu0 0.0
    %1055 = vmatpush1.msra.mxu0 0.0
    %1056 = vmatprep.subr.mxu0 0.0
    %1057 = vmatpush1.msra.mxu0 0.0
    %1058 = vmatprep.subr.mxu0 0.0
    %1059 = vmatpush1.msra.mxu0 0.0
    %1060 = vmatprep.subr.mxu0 0.0
    %1061 = vmatpush1.msra.mxu0 0.0
    %1062 = vmatprep.subr.mxu0 0.0
    %1063 = vmatpush1.msra.mxu0 0.0
    %1064 = vmatprep.subr.mxu0 0.0
    %1065 = vmatpush1.msra.mxu0 0.0
    %1066 = vmatprep.subr.mxu0 0.0
    %1067 = vmatpush1.msra.mxu0 0.0
    %1068 = vmatprep.subr.mxu0 0.0
    %1069 = vmatpush1.msra.mxu0 0.0
    %1070 = vmatprep.subr.mxu0 0.0
    %1071 = vmatpush1.msra.mxu0 0.0
    %1072 = vmatprep.subr.mxu0 0.0
    %1073 = vmatpush1.msra.mxu0 0.0
    %1074 = vmatprep.subr.mxu0 0.0
    %1075 = vmatpush1.msra.mxu0 0.0
    %1076 = vmatprep.subr.mxu0 0.0
    %1077 = vmatpush1.msra.mxu0 0.0
    %1078 = vmatprep.subr.mxu0 0.0
    %1079 = vmatpush1.msra.mxu0 0.0
    %1080 = vmatprep.subr.mxu0 0.0
    %1081 = vmatpush1.msra.mxu0 0.0
    %1082 = vmatprep.subr.mxu0 0.0
    %1083 = vmatpush1.msra.mxu0 0.0
    %1084 = vmatprep.mubr.f32.mxu0 0.0
    %1085 = vmatmul.mubr.f32.gmra.mrb[0].mxu0 %v358
    %v1086 = vpop.f32.mrb[0].mxu0
    %v1087 = vadd.f32 %v785, %v1086
    %v1088 = vpop.f32.mrb[0].mxu0
    %1089 = vdwg.mxu0
    %1090 = vmatprep.subr.mxu0 0.0
    %1091 = vmatpush1.msra.mxu0 %v738
    %1092 = vmatprep.subr.mxu0 0.0
    %1093 = vmatpush1.msra.mxu0 %v739
    %1094 = vmatprep.subr.mxu0 0.0
    %1095 = vmatpush1.msra.mxu0 %v740
    %1096 = vmatprep.subr.mxu0 0.0
    %1097 = vmatpush1.msra.mxu0 %v741
    %1098 = vmatprep.subr.mxu0 0.0
    %1099 = vmatpush1.msra.mxu0 0.0
    %1100 = vmatprep.subr.mxu0 0.0
    %1101 = vmatpush1.msra.mxu0 0.0
    %1102 = vmatprep.subr.mxu0 0.0
    %1103 = vmatpush1.msra.mxu0 0.0
    %1104 = vmatprep.subr.mxu0 0.0
    %1105 = vmatpush1.msra.mxu0 0.0
    %1106 = vmatprep.subr.mxu0 0.0
    %1107 = vmatpush1.msra.mxu0 0.0
    %1108 = vmatprep.subr.mxu0 0.0
    %1109 = vmatpush1.msra.mxu0 0.0
    %1110 = vmatprep.subr.mxu0 0.0
    %1111 = vmatpush1.msra.mxu0 0.0
    %1112 = vmatprep.subr.mxu0 0.0
    %1113 = vmatpush1.msra.mxu0 0.0
    %1114 = vmatprep.subr.mxu0 0.0
    %1115 = vmatpush1.msra.mxu0 0.0
    %1116 = vmatprep.subr.mxu0 0.0
    %1117 = vmatpush1.msra.mxu0 0.0
    %1118 = vmatprep.subr.mxu0 0.0
    %1119 = vmatpush1.msra.mxu0 0.0
    %1120 = vmatprep.subr.mxu0 0.0
    %1121 = vmatpush1.msra.mxu0 0.0
    %1122 = vmatprep.subr.mxu0 0.0
    %1123 = vmatpush1.msra.mxu0 0.0
    %1124 = vmatprep.subr.mxu0 0.0
    %1125 = vmatpush1.msra.mxu0 0.0
    %1126 = vmatprep.subr.mxu0 0.0
    %1127 = vmatpush1.msra.mxu0 0.0
    %1128 = vmatprep.subr.mxu0 0.0
    %1129 = vmatpush1.msra.mxu0 0.0
    %1130 = vmatprep.subr.mxu0 0.0
    %1131 = vmatpush1.msra.mxu0 0.0
    %1132 = vmatprep.subr.mxu0 0.0
    %1133 = vmatpush1.msra.mxu0 0.0
    %1134 = vmatprep.subr.mxu0 0.0
    %1135 = vmatpush1.msra.mxu0 0.0
    %1136 = vmatprep.subr.mxu0 0.0
    %1137 = vmatpush1.msra.mxu0 0.0
    %1138 = vmatprep.subr.mxu0 0.0
    %1139 = vmatpush1.msra.mxu0 0.0
    %1140 = vmatprep.subr.mxu0 0.0
    %1141 = vmatpush1.msra.mxu0 0.0
    %1142 = vmatprep.subr.mxu0 0.0
    %1143 = vmatpush1.msra.mxu0 0.0
    %1144 = vmatprep.subr.mxu0 0.0
    %1145 = vmatpush1.msra.mxu0 0.0
    %1146 = vmatprep.subr.mxu0 0.0
    %1147 = vmatpush1.msra.mxu0 0.0
    %1148 = vmatprep.subr.mxu0 0.0
    %1149 = vmatpush1.msra.mxu0 0.0
    %1150 = vmatprep.subr.mxu0 0.0
    %1151 = vmatpush1.msra.mxu0 0.0
    %1152 = vmatprep.subr.mxu0 0.0
    %1153 = vmatpush1.msra.mxu0 0.0
    %1154 = vmatprep.mubr.f32.mxu0 0.0
    %1155 = vmatmul.mubr.f32.gmra.mrb[0].mxu0 %v431
    %v1156 = vpop.f32.mrb[0].mxu0
    %v1157 = vadd.f32 %v789, %v1156
    %v1158 = vpop.f32.mrb[0].mxu0
    %1159 = vdwg.mxu0
    %1160 = vmatprep.subr.mxu0 0.0
    %1161 = vmatpush1.msra.mxu0 %v742
    %1162 = vmatprep.subr.mxu0 0.0
    %1163 = vmatpush1.msra.mxu0 %v743
    %1164 = vmatprep.subr.mxu0 0.0
    %1165 = vmatpush1.msra.mxu0 %v744
    %1166 = vmatprep.subr.mxu0 0.0
    %1167 = vmatpush1.msra.mxu0 %v745
    %1168 = vmatprep.subr.mxu0 0.0
    %1169 = vmatpush1.msra.mxu0 0.0
    %1170 = vmatprep.subr.mxu0 0.0
    %1171 = vmatpush1.msra.mxu0 0.0
    %1172 = vmatprep.subr.mxu0 0.0
    %1173 = vmatpush1.msra.mxu0 0.0
    %1174 = vmatprep.subr.mxu0 0.0
    %1175 = vmatpush1.msra.mxu0 0.0
    %1176 = vmatprep.subr.mxu0 0.0
    %1177 = vmatpush1.msra.mxu0 0.0
    %1178 = vmatprep.subr.mxu0 0.0
    %1179 = vmatpush1.msra.mxu0 0.0
    %1180 = vmatprep.subr.mxu0 0.0
    %1181 = vmatpush1.msra.mxu0 0.0
    %1182 = vmatprep.subr.mxu0 0.0
    %1183 = vmatpush1.msra.mxu0 0.0
    %1184 = vmatprep.subr.mxu0 0.0
    %1185 = vmatpush1.msra.mxu0 0.0
    %1186 = vmatprep.subr.mxu0 0.0
    %1187 = vmatpush1.msra.mxu0 0.0
    %1188 = vmatprep.subr.mxu0 0.0
    %1189 = vmatpush1.msra.mxu0 0.0
    %1190 = vmatprep.subr.mxu0 0.0
    %1191 = vmatpush1.msra.mxu0 0.0
    %1192 = vmatprep.subr.mxu0 0.0
    %1193 = vmatpush1.msra.mxu0 0.0
    %1194 = vmatprep.subr.mxu0 0.0
    %1195 = vmatpush1.msra.mxu0 0.0
    %1196 = vmatprep.subr.mxu0 0.0
    %1197 = vmatpush1.msra.mxu0 0.0
    %1198 = vmatprep.subr.mxu0 0.0
    %1199 = vmatpush1.msra.mxu0 0.0
    %1200 = vmatprep.subr.mxu0 0.0
    %1201 = vmatpush1.msra.mxu0 0.0
    %1202 = vmatprep.subr.mxu0 0.0
    %1203 = vmatpush1.msra.mxu0 0.0
    %1204 = vmatprep.subr.mxu0 0.0
    %1205 = vmatpush1.msra.mxu0 0.0
    %1206 = vmatprep.subr.mxu0 0.0
    %1207 = vmatpush1.msra.mxu0 0.0
    %1208 = vmatprep.subr.mxu0 0.0
    %1209 = vmatpush1.msra.mxu0 0.0
    %1210 = vmatprep.subr.mxu0 0.0
    %1211 = vmatpush1.msra.mxu0 0.0
    %1212 = vmatprep.subr.mxu0 0.0
    %1213 = vmatpush1.msra.mxu0 0.0
    %1214 = vmatprep.subr.mxu0 0.0
    %1215 = vmatpush1.msra.mxu0 0.0
    %1216 = vmatprep.subr.mxu0 0.0
    %1217 = vmatpush1.msra.mxu0 0.0
    %1218 = vmatprep.subr.mxu0 0.0
    %1219 = vmatpush1.msra.mxu0 0.0
    %1220 = vmatprep.subr.mxu0 0.0
    %1221 = vmatpush1.msra.mxu0 0.0
    %1222 = vmatprep.subr.mxu0 0.0
    %1223 = vmatpush1.msra.mxu0 0.0
    %1224 = vmatprep.mubr.f32.mxu0 0.0
    %1225 = vmatmul.mubr.f32.gmra.mrb[0].mxu0 %v504
    %v1226 = vpop.f32.mrb[0].mxu0
    %v1227 = vadd.f32 %v793, %v1226
    %v1228 = vpop.f32.mrb[0].mxu0
    %1229 = vdwg.mxu0
    %1230 = vmatprep.subr.mxu0 0.0
    %1231 = vmatpush1.msra.mxu0 %v746
    %1232 = vmatprep.subr.mxu0 0.0
    %1233 = vmatpush1.msra.mxu0 %v747
    %1234 = vmatprep.subr.mxu0 0.0
    %1235 = vmatpush1.msra.mxu0 %v748
    %1236 = vmatprep.subr.mxu0 0.0
    %1237 = vmatpush1.msra.mxu0 %v749
    %1238 = vmatprep.subr.mxu0 0.0
    %1239 = vmatpush1.msra.mxu0 0.0
    %1240 = vmatprep.subr.mxu0 0.0
    %1241 = vmatpush1.msra.mxu0 0.0
    %1242 = vmatprep.subr.mxu0 0.0
    %1243 = vmatpush1.msra.mxu0 0.0
    %1244 = vmatprep.subr.mxu0 0.0
    %1245 = vmatpush1.msra.mxu0 0.0
    %1246 = vmatprep.subr.mxu0 0.0
    %1247 = vmatpush1.msra.mxu0 0.0
    %1248 = vmatprep.subr.mxu0 0.0
    %1249 = vmatpush1.msra.mxu0 0.0
    %1250 = vmatprep.subr.mxu0 0.0
    %1251 = vmatpush1.msra.mxu0 0.0
    %1252 = vmatprep.subr.mxu0 0.0
    %1253 = vmatpush1.msra.mxu0 0.0
    %1254 = vmatprep.subr.mxu0 0.0
    %1255 = vmatpush1.msra.mxu0 0.0
    %1256 = vmatprep.subr.mxu0 0.0
    %1257 = vmatpush1.msra.mxu0 0.0
    %1258 = vmatprep.subr.mxu0 0.0
    %1259 = vmatpush1.msra.mxu0 0.0
    %1260 = vmatprep.subr.mxu0 0.0
    %1261 = vmatpush1.msra.mxu0 0.0
    %1262 = vmatprep.subr.mxu0 0.0
    %1263 = vmatpush1.msra.mxu0 0.0
    %1264 = vmatprep.subr.mxu0 0.0
    %1265 = vmatpush1.msra.mxu0 0.0
    %1266 = vmatprep.subr.mxu0 0.0
    %1267 = vmatpush1.msra.mxu0 0.0
    %1268 = vmatprep.subr.mxu0 0.0
    %1269 = vmatpush1.msra.mxu0 0.0
    %1270 = vmatprep.subr.mxu0 0.0
    %1271 = vmatpush1.msra.mxu0 0.0
    %1272 = vmatprep.subr.mxu0 0.0
    %1273 = vmatpush1.msra.mxu0 0.0
    %1274 = vmatprep.subr.mxu0 0.0
    %1275 = vmatpush1.msra.mxu0 0.0
    %1276 = vmatprep.subr.mxu0 0.0
    %1277 = vmatpush1.msra.mxu0 0.0
    %1278 = vmatprep.subr.mxu0 0.0
    %1279 = vmatpush1.msra.mxu0 0.0
    %1280 = vmatprep.subr.mxu0 0.0
    %1281 = vmatpush1.msra.mxu0 0.0
    %1282 = vmatprep.subr.mxu0 0.0
    %1283 = vmatpush1.msra.mxu0 0.0
    %1284 = vmatprep.subr.mxu0 0.0
    %1285 = vmatpush1.msra.mxu0 0.0
    %1286 = vmatprep.subr.mxu0 0.0
    %1287 = vmatpush1.msra.mxu0 0.0
    %1288 = vmatprep.subr.mxu0 0.0
    %1289 = vmatpush1.msra.mxu0 0.0
    %1290 = vmatprep.subr.mxu0 0.0
    %1291 = vmatpush1.msra.mxu0 0.0
    %1292 = vmatprep.subr.mxu0 0.0
    %1293 = vmatpush1.msra.mxu0 0.0
    %1294 = vmatprep.mubr.f32.mxu0 0.0
    %1295 = vmatmul.mubr.f32.gmra.mrb[0].mxu0 %v577
    %v1296 = vpop.f32.mrb[0].mxu0
    %v1297 = vadd.f32 %v797, %v1296
    %v1298 = vpop.f32.mrb[0].mxu0
    %1299 = vdwg.mxu0
    %1300 = vmatprep.subr.mxu0 0.0
    %1301 = vmatpush1.msra.mxu0 %v750
    %1302 = vmatprep.subr.mxu0 0.0
    %1303 = vmatpush1.msra.mxu0 %v751
    %1304 = vmatprep.subr.mxu0 0.0
    %1305 = vmatpush1.msra.mxu0 %v752
    %1306 = vmatprep.subr.mxu0 0.0
    %1307 = vmatpush1.msra.mxu0 %v753
    %1308 = vmatprep.subr.mxu0 0.0
    %1309 = vmatpush1.msra.mxu0 0.0
    %1310 = vmatprep.subr.mxu0 0.0
    %1311 = vmatpush1.msra.mxu0 0.0
    %1312 = vmatprep.subr.mxu0 0.0
    %1313 = vmatpush1.msra.mxu0 0.0
    %1314 = vmatprep.subr.mxu0 0.0
    %1315 = vmatpush1.msra.mxu0 0.0
    %1316 = vmatprep.subr.mxu0 0.0
    %1317 = vmatpush1.msra.mxu0 0.0
    %1318 = vmatprep.subr.mxu0 0.0
    %1319 = vmatpush1.msra.mxu0 0.0
    %1320 = vmatprep.subr.mxu0 0.0
    %1321 = vmatpush1.msra.mxu0 0.0
    %1322 = vmatprep.subr.mxu0 0.0
    %1323 = vmatpush1.msra.mxu0 0.0
    %1324 = vmatprep.subr.mxu0 0.0
    %1325 = vmatpush1.msra.mxu0 0.0
    %1326 = vmatprep.subr.mxu0 0.0
    %1327 = vmatpush1.msra.mxu0 0.0
    %1328 = vmatprep.subr.mxu0 0.0
    %1329 = vmatpush1.msra.mxu0 0.0
    %1330 = vmatprep.subr.mxu0 0.0
    %1331 = vmatpush1.msra.mxu0 0.0
    %1332 = vmatprep.subr.mxu0 0.0
    %1333 = vmatpush1.msra.mxu0 0.0
    %1334 = vmatprep.subr.mxu0 0.0
    %1335 = vmatpush1.msra.mxu0 0.0
    %1336 = vmatprep.subr.mxu0 0.0
    %1337 = vmatpush1.msra.mxu0 0.0
    %1338 = vmatprep.subr.mxu0 0.0
    %1339 = vmatpush1.msra.mxu0 0.0
    %1340 = vmatprep.subr.mxu0 0.0
    %1341 = vmatpush1.msra.mxu0 0.0
    %1342 = vmatprep.subr.mxu0 0.0
    %1343 = vmatpush1.msra.mxu0 0.0
    %1344 = vmatprep.subr.mxu0 0.0
    %1345 = vmatpush1.msra.mxu0 0.0
    %1346 = vmatprep.subr.mxu0 0.0
    %1347 = vmatpush1.msra.mxu0 0.0
    %1348 = vmatprep.subr.mxu0 0.0
    %1349 = vmatpush1.msra.mxu0 0.0
    %1350 = vmatprep.subr.mxu0 0.0
    %1351 = vmatpush1.msra.mxu0 0.0
    %1352 = vmatprep.subr.mxu0 0.0
    %1353 = vmatpush1.msra.mxu0 0.0
    %1354 = vmatprep.subr.mxu0 0.0
    %1355 = vmatpush1.msra.mxu0 0.0
    %1356 = vmatprep.subr.mxu0 0.0
    %1357 = vmatpush1.msra.mxu0 0.0
    %1358 = vmatprep.subr.mxu0 0.0
    %1359 = vmatpush1.msra.mxu0 0.0
    %1360 = vmatprep.subr.mxu0 0.0
    %1361 = vmatpush1.msra.mxu0 0.0
    %1362 = vmatprep.subr.mxu0 0.0
    %1363 = vmatpush1.msra.mxu0 0.0
    %1364 = vmatprep.mubr.f32.mxu0 0.0
    %1365 = vmatmul.mubr.f32.gmra.mrb[0].mxu0 %v650
    %v1366 = vpop.f32.mrb[0].mxu0
    %v1367 = vadd.f32 %v801, %v1366
    %v1368 = vpop.f32.mrb[0].mxu0
    %1369 = vdwg.mxu0
    %v1370 = vld [vmem:[%s3] sm:$0xff]
    %v1371 = vld [vmem:[%s3 + $0x8] sm:$0xff]
    %v1372 = vld [vmem:[%s3 + $0x10] sm:$0xff]
    %v1373 = vld [vmem:[%s3 + $0x18] sm:$0xff]
    %v1374 = vld [vmem:[%s3 + $0x20] sm:$0xff]
    %v1375 = vld [vmem:[%s3 + $0x28] sm:$0xff]
    %v1376 = vld [vmem:[%s3 + $0x30] sm:$0xff]
    %v1377 = vld [vmem:[%s3 + $0x38] sm:$0xff]
    %v1378 = vld [vmem:[%s3 + $0x40] sm:$0xff]
    %v1379 = vld [vmem:[%s3 + $0x48] sm:$0xff]
    %v1380 = vld [vmem:[%s3 + $0x50] sm:$0xff]
    %v1381 = vld [vmem:[%s3 + $0x58] sm:$0xff]
    %v1382 = vld [vmem:[%s3 + $0x60] sm:$0xff]
    %v1383 = vld [vmem:[%s3 + $0x68] sm:$0xff]
    %v1384 = vld [vmem:[%s3 + $0x70] sm:$0xff]
    %v1385 = vld [vmem:[%s3 + $0x78] sm:$0xff]
    %v1386 = vld [vmem:[%s3 + $0x80] sm:$0xff]
    %v1387 = vld [vmem:[%s3 + $0x88] sm:$0xff]
    %v1388 = vld [vmem:[%s3 + $0x90] sm:$0xff]
    %v1389 = vld [vmem:[%s3 + $0x98] sm:$0xff]
    %v1390 = vld [vmem:[%s3 + $0xa0] sm:$0xff]
    %v1391 = vld [vmem:[%s3 + $0xa8] sm:$0xff]
    %v1392 = vld [vmem:[%s3 + $0xb0] sm:$0xff]
    %v1393 = vld [vmem:[%s3 + $0xb8] sm:$0xff]
    %v1394 = vld [vmem:[%s3 + $0xc0] sm:$0xff]
    %v1395 = vld [vmem:[%s3 + $0xc8] sm:$0xff]
    %v1396 = vld [vmem:[%s3 + $0xd0] sm:$0xff]
    %v1397 = vld [vmem:[%s3 + $0xd8] sm:$0xff]
    %v1398 = vld [vmem:[%s3 + $0xe0] sm:$0xff]
    %v1399 = vld [vmem:[%s3 + $0xe8] sm:$0xff]
    %v1400 = vld [vmem:[%s3 + $0xf0] sm:$0xff]
    %v1401 = vld [vmem:[%s3 + $0xf8] sm:$0xff]
    %v1402 = vld [vmem:[%s6] sm:$0x1]
    %v1403 = vld [vmem:[%s6 + $0x1] sm:$0x1]
    %v1404 = vld [vmem:[%s6 + $0x2] sm:$0x1]
    %v1405 = vld [vmem:[%s6 + $0x3] sm:$0x1]
    %v1406 = vld [vmem:[%s6 + $0x4] sm:$0x1]
    %v1407 = vld [vmem:[%s6 + $0x5] sm:$0x1]
    %v1408 = vld [vmem:[%s6 + $0x6] sm:$0x1]
    %v1409 = vld [vmem:[%s6 + $0x7] sm:$0x1]
    %v1418 = vlaneseq
    %v1419 = vshrl.u32 %v1418, 7
    %v1420 = vsub.s32 0, %v1419
    %v1421 = vrot.slane %v1402, %v1420
    %v1422 = vlaneseq
    %v1423 = vshrl.u32 %v1422, 7
    %v1424 = vsub.s32 0, %v1423
    %v1425 = vrot.slane %v1403, %v1424
    %v1426 = vlaneseq
    %v1427 = vshrl.u32 %v1426, 7
    %v1428 = vsub.s32 0, %v1427
    %v1429 = vrot.slane %v1404, %v1428
    %v1430 = vlaneseq
    %v1431 = vshrl.u32 %v1430, 7
    %v1432 = vsub.s32 0, %v1431
    %v1433 = vrot.slane %v1405, %v1432
    %v1434 = vlaneseq
    %v1435 = vshrl.u32 %v1434, 7
    %v1436 = vsub.s32 0, %v1435
    %v1437 = vrot.slane %v1406, %v1436
    %v1438 = vlaneseq
    %v1439 = vshrl.u32 %v1438, 7
    %v1440 = vsub.s32 0, %v1439
    %v1441 = vrot.slane %v1407, %v1440
    %v1442 = vlaneseq
    %v1443 = vshrl.u32 %v1442, 7
    %v1444 = vsub.s32 0, %v1443
    %v1445 = vrot.slane %v1408, %v1444
    %v1446 = vlaneseq
    %v1447 = vshrl.u32 %v1446, 7
    %v1448 = vsub.s32 0, %v1447
    %v1449 = vrot.slane %v1409, %v1448
    %1458 = vmatprep.subr.mxu0 0.0
    %1459 = vmatpush1.msra.mxu0 %v1370
    %1460 = vmatprep.subr.mxu0 0.0
    %1461 = vmatpush1.msra.mxu0 %v1371
    %1462 = vmatprep.subr.mxu0 0.0
    %1463 = vmatpush1.msra.mxu0 %v1372
    %1464 = vmatprep.subr.mxu0 0.0
    %1465 = vmatpush1.msra.mxu0 %v1373
    %1466 = vmatprep.subr.mxu0 0.0
    %1467 = vmatpush1.msra.mxu0 0.0
    %1468 = vmatprep.subr.mxu0 0.0
    %1469 = vmatpush1.msra.mxu0 0.0
    %1470 = vmatprep.subr.mxu0 0.0
    %1471 = vmatpush1.msra.mxu0 0.0
    %1472 = vmatprep.subr.mxu0 0.0
    %1473 = vmatpush1.msra.mxu0 0.0
    %1474 = vmatprep.subr.mxu0 0.0
    %1475 = vmatpush1.msra.mxu0 0.0
    %1476 = vmatprep.subr.mxu0 0.0
    %1477 = vmatpush1.msra.mxu0 0.0
    %1478 = vmatprep.subr.mxu0 0.0
    %1479 = vmatpush1.msra.mxu0 0.0
    %1480 = vmatprep.subr.mxu0 0.0
    %1481 = vmatpush1.msra.mxu0 0.0
    %1482 = vmatprep.subr.mxu0 0.0
    %1483 = vmatpush1.msra.mxu0 0.0
    %1484 = vmatprep.subr.mxu0 0.0
    %1485 = vmatpush1.msra.mxu0 0.0
    %1486 = vmatprep.subr.mxu0 0.0
    %1487 = vmatpush1.msra.mxu0 0.0
    %1488 = vmatprep.subr.mxu0 0.0
    %1489 = vmatpush1.msra.mxu0 0.0
    %1490 = vmatprep.subr.mxu0 0.0
    %1491 = vmatpush1.msra.mxu0 0.0
    %1492 = vmatprep.subr.mxu0 0.0
    %1493 = vmatpush1.msra.mxu0 0.0
    %1494 = vmatprep.subr.mxu0 0.0
    %1495 = vmatpush1.msra.mxu0 0.0
    %1496 = vmatprep.subr.mxu0 0.0
    %1497 = vmatpush1.msra.mxu0 0.0
    %1498 = vmatprep.subr.mxu0 0.0
    %1499 = vmatpush1.msra.mxu0 0.0
    %1500 = vmatprep.subr.mxu0 0.0
    %1501 = vmatpush1.msra.mxu0 0.0
    %1502 = vmatprep.subr.mxu0 0.0
    %1503 = vmatpush1.msra.mxu0 0.0
    %1504 = vmatprep.subr.mxu0 0.0
    %1505 = vmatpush1.msra.mxu0 0.0
    %1506 = vmatprep.subr.mxu0 0.0
    %1507 = vmatpush1.msra.mxu0 0.0
    %1508 = vmatprep.subr.mxu0 0.0
    %1509 = vmatpush1.msra.mxu0 0.0
    %1510 = vmatprep.subr.mxu0 0.0
    %1511 = vmatpush1.msra.mxu0 0.0
    %1512 = vmatprep.subr.mxu0 0.0
    %1513 = vmatpush1.msra.mxu0 0.0
    %1514 = vmatprep.subr.mxu0 0.0
    %1515 = vmatpush1.msra.mxu0 0.0
    %1516 = vmatprep.subr.mxu0 0.0
    %1517 = vmatpush1.msra.mxu0 0.0
    %1518 = vmatprep.subr.mxu0 0.0
    %1519 = vmatpush1.msra.mxu0 0.0
    %1520 = vmatprep.subr.mxu0 0.0
    %1521 = vmatpush1.msra.mxu0 0.0
    %1522 = vmatprep.mubr.f32.mxu0 0.0
    %1523 = vmatmul.mubr.f32.gmra.mrb[0].mxu0 %v139
    %v1524 = vpop.f32.mrb[0].mxu0
    %v1525 = vadd.f32 %v1421, %v1524
    %v1526 = vpop.f32.mrb[0].mxu0
    %1527 = vdwg.mxu0
    %1528 = vmatprep.subr.mxu0 0.0
    %1529 = vmatpush1.msra.mxu0 %v1374
    %1530 = vmatprep.subr.mxu0 0.0
    %1531 = vmatpush1.msra.mxu0 %v1375
    %1532 = vmatprep.subr.mxu0 0.0
    %1533 = vmatpush1.msra.mxu0 %v1376
    %1534 = vmatprep.subr.mxu0 0.0
    %1535 = vmatpush1.msra.mxu0 %v1377
    %1536 = vmatprep.subr.mxu0 0.0
    %1537 = vmatpush1.msra.mxu0 0.0
    %1538 = vmatprep.subr.mxu0 0.0
    %1539 = vmatpush1.msra.mxu0 0.0
    %1540 = vmatprep.subr.mxu0 0.0
    %1541 = vmatpush1.msra.mxu0 0.0
    %1542 = vmatprep.subr.mxu0 0.0
    %1543 = vmatpush1.msra.mxu0 0.0
    %1544 = vmatprep.subr.mxu0 0.0
    %1545 = vmatpush1.msra.mxu0 0.0
    %1546 = vmatprep.subr.mxu0 0.0
    %1547 = vmatpush1.msra.mxu0 0.0
    %1548 = vmatprep.subr.mxu0 0.0
    %1549 = vmatpush1.msra.mxu0 0.0
    %1550 = vmatprep.subr.mxu0 0.0
    %1551 = vmatpush1.msra.mxu0 0.0
    %1552 = vmatprep.subr.mxu0 0.0
    %1553 = vmatpush1.msra.mxu0 0.0
    %1554 = vmatprep.subr.mxu0 0.0
    %1555 = vmatpush1.msra.mxu0 0.0
    %1556 = vmatprep.subr.mxu0 0.0
    %1557 = vmatpush1.msra.mxu0 0.0
    %1558 = vmatprep.subr.mxu0 0.0
    %1559 = vmatpush1.msra.mxu0 0.0
    %1560 = vmatprep.subr.mxu0 0.0
    %1561 = vmatpush1.msra.mxu0 0.0
    %1562 = vmatprep.subr.mxu0 0.0
    %1563 = vmatpush1.msra.mxu0 0.0
    %1564 = vmatprep.subr.mxu0 0.0
    %1565 = vmatpush1.msra.mxu0 0.0
    %1566 = vmatprep.subr.mxu0 0.0
    %1567 = vmatpush1.msra.mxu0 0.0
    %1568 = vmatprep.subr.mxu0 0.0
    %1569 = vmatpush1.msra.mxu0 0.0
    %1570 = vmatprep.subr.mxu0 0.0
    %1571 = vmatpush1.msra.mxu0 0.0
    %1572 = vmatprep.subr.mxu0 0.0
    %1573 = vmatpush1.msra.mxu0 0.0
    %1574 = vmatprep.subr.mxu0 0.0
    %1575 = vmatpush1.msra.mxu0 0.0
    %1576 = vmatprep.subr.mxu0 0.0
    %1577 = vmatpush1.msra.mxu0 0.0
    %1578 = vmatprep.subr.mxu0 0.0
    %1579 = vmatpush1.msra.mxu0 0.0
    %1580 = vmatprep.subr.mxu0 0.0
    %1581 = vmatpush1.msra.mxu0 0.0
    %1582 = vmatprep.subr.mxu0 0.0
    %1583 = vmatpush1.msra.mxu0 0.0
    %1584 = vmatprep.subr.mxu0 0.0
    %1585 = vmatpush1.msra.mxu0 0.0
    %1586 = vmatprep.subr.mxu0 0.0
    %1587 = vmatpush1.msra.mxu0 0.0
    %1588 = vmatprep.subr.mxu0 0.0
    %1589 = vmatpush1.msra.mxu0 0.0
    %1590 = vmatprep.subr.mxu0 0.0
    %1591 = vmatpush1.msra.mxu0 0.0
    %1592 = vmatprep.mubr.f32.mxu0 0.0
    %1593 = vmatmul.mubr.f32.gmra.mrb[0].mxu0 %v212
    %v1594 = vpop.f32.mrb[0].mxu0
    %v1595 = vadd.f32 %v1425, %v1594
    %v1596 = vpop.f32.mrb[0].mxu0
    %1597 = vdwg.mxu0
    %1598 = vmatprep.subr.mxu0 0.0
    %1599 = vmatpush1.msra.mxu0 %v1378
    %1600 = vmatprep.subr.mxu0 0.0
    %1601 = vmatpush1.msra.mxu0 %v1379
    %1602 = vmatprep.subr.mxu0 0.0
    %1603 = vmatpush1.msra.mxu0 %v1380
    %1604 = vmatprep.subr.mxu0 0.0
    %1605 = vmatpush1.msra.mxu0 %v1381
    %1606 = vmatprep.subr.mxu0 0.0
    %1607 = vmatpush1.msra.mxu0 0.0
    %1608 = vmatprep.subr.mxu0 0.0
    %1609 = vmatpush1.msra.mxu0 0.0
    %1610 = vmatprep.subr.mxu0 0.0
    %1611 = vmatpush1.msra.mxu0 0.0
    %1612 = vmatprep.subr.mxu0 0.0
    %1613 = vmatpush1.msra.mxu0 0.0
    %1614 = vmatprep.subr.mxu0 0.0
    %1615 = vmatpush1.msra.mxu0 0.0
    %1616 = vmatprep.subr.mxu0 0.0
    %1617 = vmatpush1.msra.mxu0 0.0
    %1618 = vmatprep.subr.mxu0 0.0
    %1619 = vmatpush1.msra.mxu0 0.0
    %1620 = vmatprep.subr.mxu0 0.0
    %1621 = vmatpush1.msra.mxu0 0.0
    %1622 = vmatprep.subr.mxu0 0.0
    %1623 = vmatpush1.msra.mxu0 0.0
    %1624 = vmatprep.subr.mxu0 0.0
    %1625 = vmatpush1.msra.mxu0 0.0
    %1626 = vmatprep.subr.mxu0 0.0
    %1627 = vmatpush1.msra.mxu0 0.0
    %1628 = vmatprep.subr.mxu0 0.0
    %1629 = vmatpush1.msra.mxu0 0.0
    %1630 = vmatprep.subr.mxu0 0.0
    %1631 = vmatpush1.msra.mxu0 0.0
    %1632 = vmatprep.subr.mxu0 0.0
    %1633 = vmatpush1.msra.mxu0 0.0
    %1634 = vmatprep.subr.mxu0 0.0
    %1635 = vmatpush1.msra.mxu0 0.0
    %1636 = vmatprep.subr.mxu0 0.0
    %1637 = vmatpush1.msra.mxu0 0.0
    %1638 = vmatprep.subr.mxu0 0.0
    %1639 = vmatpush1.msra.mxu0 0.0
    %1640 = vmatprep.subr.mxu0 0.0
    %1641 = vmatpush1.msra.mxu0 0.0
    %1642 = vmatprep.subr.mxu0 0.0
    %1643 = vmatpush1.msra.mxu0 0.0
    %1644 = vmatprep.subr.mxu0 0.0
    %1645 = vmatpush1.msra.mxu0 0.0
    %1646 = vmatprep.subr.mxu0 0.0
    %1647 = vmatpush1.msra.mxu0 0.0
    %1648 = vmatprep.subr.mxu0 0.0
    %1649 = vmatpush1.msra.mxu0 0.0
    %1650 = vmatprep.subr.mxu0 0.0
    %1651 = vmatpush1.msra.mxu0 0.0
    %1652 = vmatprep.subr.mxu0 0.0
    %1653 = vmatpush1.msra.mxu0 0.0
    %1654 = vmatprep.subr.mxu0 0.0
    %1655 = vmatpush1.msra.mxu0 0.0
    %1656 = vmatprep.subr.mxu0 0.0
    %1657 = vmatpush1.msra.mxu0 0.0
    %1658 = vmatprep.subr.mxu0 0.0
    %1659 = vmatpush1.msra.mxu0 0.0
    %1660 = vmatprep.subr.mxu0 0.0
    %1661 = vmatpush1.msra.mxu0 0.0
    %1662 = vmatprep.mubr.f32.mxu0 0.0
    %1663 = vmatmul.mubr.f32.gmra.mrb[0].mxu0 %v285
    %v1664 = vpop.f32.mrb[0].mxu0
    %v1665 = vadd.f32 %v1429, %v1664
    %v1666 = vpop.f32.mrb[0].mxu0
    %1667 = vdwg.mxu0
    %1668 = vmatprep.subr.mxu0 0.0
    %1669 = vmatpush1.msra.mxu0 %v1382
    %1670 = vmatprep.subr.mxu0 0.0
    %1671 = vmatpush1.msra.mxu0 %v1383
    %1672 = vmatprep.subr.mxu0 0.0
    %1673 = vmatpush1.msra.mxu0 %v1384
    %1674 = vmatprep.subr.mxu0 0.0
    %1675 = vmatpush1.msra.mxu0 %v1385
    %1676 = vmatprep.subr.mxu0 0.0
    %1677 = vmatpush1.msra.mxu0 0.0
    %1678 = vmatprep.subr.mxu0 0.0
    %1679 = vmatpush1.msra.mxu0 0.0
    %1680 = vmatprep.subr.mxu0 0.0
    %1681 = vmatpush1.msra.mxu0 0.0
    %1682 = vmatprep.subr.mxu0 0.0
    %1683 = vmatpush1.msra.mxu0 0.0
    %1684 = vmatprep.subr.mxu0 0.0
    %1685 = vmatpush1.msra.mxu0 0.0
    %1686 = vmatprep.subr.mxu0 0.0
    %1687 = vmatpush1.msra.mxu0 0.0
    %1688 = vmatprep.subr.mxu0 0.0
    %1689 = vmatpush1.msra.mxu0 0.0
    %1690 = vmatprep.subr.mxu0 0.0
    %1691 = vmatpush1.msra.mxu0 0.0
    %1692 = vmatprep.subr.mxu0 0.0
    %1693 = vmatpush1.msra.mxu0 0.0
    %1694 = vmatprep.subr.mxu0 0.0
    %1695 = vmatpush1.msra.mxu0 0.0
    %1696 = vmatprep.subr.mxu0 0.0
    %1697 = vmatpush1.msra.mxu0 0.0
    %1698 = vmatprep.subr.mxu0 0.0
    %1699 = vmatpush1.msra.mxu0 0.0
    %1700 = vmatprep.subr.mxu0 0.0
    %1701 = vmatpush1.msra.mxu0 0.0
    %1702 = vmatprep.subr.mxu0 0.0
    %1703 = vmatpush1.msra.mxu0 0.0
    %1704 = vmatprep.subr.mxu0 0.0
    %1705 = vmatpush1.msra.mxu0 0.0
    %1706 = vmatprep.subr.mxu0 0.0
    %1707 = vmatpush1.msra.mxu0 0.0
    %1708 = vmatprep.subr.mxu0 0.0
    %1709 = vmatpush1.msra.mxu0 0.0
    %1710 = vmatprep.subr.mxu0 0.0
    %1711 = vmatpush1.msra.mxu0 0.0
    %1712 = vmatprep.subr.mxu0 0.0
    %1713 = vmatpush1.msra.mxu0 0.0
    %1714 = vmatprep.subr.mxu0 0.0
    %1715 = vmatpush1.msra.mxu0 0.0
    %1716 = vmatprep.subr.mxu0 0.0
    %1717 = vmatpush1.msra.mxu0 0.0
    %1718 = vmatprep.subr.mxu0 0.0
    %1719 = vmatpush1.msra.mxu0 0.0
    %1720 = vmatprep.subr.mxu0 0.0
    %1721 = vmatpush1.msra.mxu0 0.0
    %1722 = vmatprep.subr.mxu0 0.0
    %1723 = vmatpush1.msra.mxu0 0.0
    %1724 = vmatprep.subr.mxu0 0.0
    %1725 = vmatpush1.msra.mxu0 0.0
    %1726 = vmatprep.subr.mxu0 0.0
    %1727 = vmatpush1.msra.mxu0 0.0
    %1728 = vmatprep.subr.mxu0 0.0
    %1729 = vmatpush1.msra.mxu0 0.0
    %1730 = vmatprep.subr.mxu0 0.0
    %1731 = vmatpush1.msra.mxu0 0.0
    %1732 = vmatprep.mubr.f32.mxu0 0.0
    %1733 = vmatmul.mubr.f32.gmra.mrb[0].mxu0 %v358
    %v1734 = vpop.f32.mrb[0].mxu0
    %v1735 = vadd.f32 %v1433, %v1734
    %v1736 = vpop.f32.mrb[0].mxu0
    %1737 = vdwg.mxu0
    %1738 = vmatprep.subr.mxu0 0.0
    %1739 = vmatpush1.msra.mxu0 %v1386
    %1740 = vmatprep.subr.mxu0 0.0
    %1741 = vmatpush1.msra.mxu0 %v1387
    %1742 = vmatprep.subr.mxu0 0.0
    %1743 = vmatpush1.msra.mxu0 %v1388
    %1744 = vmatprep.subr.mxu0 0.0
    %1745 = vmatpush1.msra.mxu0 %v1389
    %1746 = vmatprep.subr.mxu0 0.0
    %1747 = vmatpush1.msra.mxu0 0.0
    %1748 = vmatprep.subr.mxu0 0.0
    %1749 = vmatpush1.msra.mxu0 0.0
    %1750 = vmatprep.subr.mxu0 0.0
    %1751 = vmatpush1.msra.mxu0 0.0
    %1752 = vmatprep.subr.mxu0 0.0
    %1753 = vmatpush1.msra.mxu0 0.0
    %1754 = vmatprep.subr.mxu0 0.0
    %1755 = vmatpush1.msra.mxu0 0.0
    %1756 = vmatprep.subr.mxu0 0.0
    %1757 = vmatpush1.msra.mxu0 0.0
    %1758 = vmatprep.subr.mxu0 0.0
    %1759 = vmatpush1.msra.mxu0 0.0
    %1760 = vmatprep.subr.mxu0 0.0
    %1761 = vmatpush1.msra.mxu0 0.0
    %1762 = vmatprep.subr.mxu0 0.0
    %1763 = vmatpush1.msra.mxu0 0.0
    %1764 = vmatprep.subr.mxu0 0.0
    %1765 = vmatpush1.msra.mxu0 0.0
    %1766 = vmatprep.subr.mxu0 0.0
    %1767 = vmatpush1.msra.mxu0 0.0
    %1768 = vmatprep.subr.mxu0 0.0
    %1769 = vmatpush1.msra.mxu0 0.0
    %1770 = vmatprep.subr.mxu0 0.0
    %1771 = vmatpush1.msra.mxu0 0.0
    %1772 = vmatprep.subr.mxu0 0.0
    %1773 = vmatpush1.msra.mxu0 0.0
    %1774 = vmatprep.subr.mxu0 0.0
    %1775 = vmatpush1.msra.mxu0 0.0
    %1776 = vmatprep.subr.mxu0 0.0
    %1777 = vmatpush1.msra.mxu0 0.0
    %1778 = vmatprep.subr.mxu0 0.0
    %1779 = vmatpush1.msra.mxu0 0.0
    %1780 = vmatprep.subr.mxu0 0.0
    %1781 = vmatpush1.msra.mxu0 0.0
    %1782 = vmatprep.subr.mxu0 0.0
    %1783 = vmatpush1.msra.mxu0 0.0
    %1784 = vmatprep.subr.mxu0 0.0
    %1785 = vmatpush1.msra.mxu0 0.0
    %1786 = vmatprep.subr.mxu0 0.0
    %1787 = vmatpush1.msra.mxu0 0.0
    %1788 = vmatprep.subr.mxu0 0.0
    %1789 = vmatpush1.msra.mxu0 0.0
    %1790 = vmatprep.subr.mxu0 0.0
    %1791 = vmatpush1.msra.mxu0 0.0
    %1792 = vmatprep.subr.mxu0 0.0
    %1793 = vmatpush1.msra.mxu0 0.0
    %1794 = vmatprep.subr.mxu0 0.0
    %1795 = vmatpush1.msra.mxu0 0.0
    %1796 = vmatprep.subr.mxu0 0.0
    %1797 = vmatpush1.msra.mxu0 0.0
    %1798 = vmatprep.subr.mxu0 0.0
    %1799 = vmatpush1.msra.mxu0 0.0
    %1800 = vmatprep.subr.mxu0 0.0
    %1801 = vmatpush1.msra.mxu0 0.0
    %1802 = vmatprep.mubr.f32.mxu0 0.0
    %1803 = vmatmul.mubr.f32.gmra.mrb[0].mxu0 %v431
    %v1804 = vpop.f32.mrb[0].mxu0
    %v1805 = vadd.f32 %v1437, %v1804
    %v1806 = vpop.f32.mrb[0].mxu0
    %1807 = vdwg.mxu0
    %1808 = vmatprep.subr.mxu0 0.0
    %1809 = vmatpush1.msra.mxu0 %v1390
    %1810 = vmatprep.subr.mxu0 0.0
    %1811 = vmatpush1.msra.mxu0 %v1391
    %1812 = vmatprep.subr.mxu0 0.0
    %1813 = vmatpush1.msra.mxu0 %v1392
    %1814 = vmatprep.subr.mxu0 0.0
    %1815 = vmatpush1.msra.mxu0 %v1393
    %1816 = vmatprep.subr.mxu0 0.0
    %1817 = vmatpush1.msra.mxu0 0.0
    %1818 = vmatprep.subr.mxu0 0.0
    %1819 = vmatpush1.msra.mxu0 0.0
    %1820 = vmatprep.subr.mxu0 0.0
    %1821 = vmatpush1.msra.mxu0 0.0
    %1822 = vmatprep.subr.mxu0 0.0
    %1823 = vmatpush1.msra.mxu0 0.0
    %1824 = vmatprep.subr.mxu0 0.0
    %1825 = vmatpush1.msra.mxu0 0.0
    %1826 = vmatprep.subr.mxu0 0.0
    %1827 = vmatpush1.msra.mxu0 0.0
    %1828 = vmatprep.subr.mxu0 0.0
    %1829 = vmatpush1.msra.mxu0 0.0
    %1830 = vmatprep.subr.mxu0 0.0
    %1831 = vmatpush1.msra.mxu0 0.0
    %1832 = vmatprep.subr.mxu0 0.0
    %1833 = vmatpush1.msra.mxu0 0.0
    %1834 = vmatprep.subr.mxu0 0.0
    %1835 = vmatpush1.msra.mxu0 0.0
    %1836 = vmatprep.subr.mxu0 0.0
    %1837 = vmatpush1.msra.mxu0 0.0
    %1838 = vmatprep.subr.mxu0 0.0
    %1839 = vmatpush1.msra.mxu0 0.0
    %1840 = vmatprep.subr.mxu0 0.0
    %1841 = vmatpush1.msra.mxu0 0.0
    %1842 = vmatprep.subr.mxu0 0.0
    %1843 = vmatpush1.msra.mxu0 0.0
    %1844 = vmatprep.subr.mxu0 0.0
    %1845 = vmatpush1.msra.mxu0 0.0
    %1846 = vmatprep.subr.mxu0 0.0
    %1847 = vmatpush1.msra.mxu0 0.0
    %1848 = vmatprep.subr.mxu0 0.0
    %1849 = vmatpush1.msra.mxu0 0.0
    %1850 = vmatprep.subr.mxu0 0.0
    %1851 = vmatpush1.msra.mxu0 0.0
    %1852 = vmatprep.subr.mxu0 0.0
    %1853 = vmatpush1.msra.mxu0 0.0
    %1854 = vmatprep.subr.mxu0 0.0
    %1855 = vmatpush1.msra.mxu0 0.0
    %1856 = vmatprep.subr.mxu0 0.0
    %1857 = vmatpush1.msra.mxu0 0.0
    %1858 = vmatprep.subr.mxu0 0.0
    %1859 = vmatpush1.msra.mxu0 0.0
    %1860 = vmatprep.subr.mxu0 0.0
    %1861 = vmatpush1.msra.mxu0 0.0
    %1862 = vmatprep.subr.mxu0 0.0
    %1863 = vmatpush1.msra.mxu0 0.0
    %1864 = vmatprep.subr.mxu0 0.0
    %1865 = vmatpush1.msra.mxu0 0.0
    %1866 = vmatprep.subr.mxu0 0.0
    %1867 = vmatpush1.msra.mxu0 0.0
    %1868 = vmatprep.subr.mxu0 0.0
    %1869 = vmatpush1.msra.mxu0 0.0
    %1870 = vmatprep.subr.mxu0 0.0
    %1871 = vmatpush1.msra.mxu0 0.0
    %1872 = vmatprep.mubr.f32.mxu0 0.0
    %1873 = vmatmul.mubr.f32.gmra.mrb[0].mxu0 %v504
    %v1874 = vpop.f32.mrb[0].mxu0
    %v1875 = vadd.f32 %v1441, %v1874
    %v1876 = vpop.f32.mrb[0].mxu0
    %1877 = vdwg.mxu0
    %1878 = vmatprep.subr.mxu0 0.0
    %1879 = vmatpush1.msra.mxu0 %v1394
    %1880 = vmatprep.subr.mxu0 0.0
    %1881 = vmatpush1.msra.mxu0 %v1395
    %1882 = vmatprep.subr.mxu0 0.0
    %1883 = vmatpush1.msra.mxu0 %v1396
    %1884 = vmatprep.subr.mxu0 0.0
    %1885 = vmatpush1.msra.mxu0 %v1397
    %1886 = vmatprep.subr.mxu0 0.0
    %1887 = vmatpush1.msra.mxu0 0.0
    %1888 = vmatprep.subr.mxu0 0.0
    %1889 = vmatpush1.msra.mxu0 0.0
    %1890 = vmatprep.subr.mxu0 0.0
    %1891 = vmatpush1.msra.mxu0 0.0
    %1892 = vmatprep.subr.mxu0 0.0
    %1893 = vmatpush1.msra.mxu0 0.0
    %1894 = vmatprep.subr.mxu0 0.0
    %1895 = vmatpush1.msra.mxu0 0.0
    %1896 = vmatprep.subr.mxu0 0.0
    %1897 = vmatpush1.msra.mxu0 0.0
    %1898 = vmatprep.subr.mxu0 0.0
    %1899 = vmatpush1.msra.mxu0 0.0
    %1900 = vmatprep.subr.mxu0 0.0
    %1901 = vmatpush1.msra.mxu0 0.0
    %1902 = vmatprep.subr.mxu0 0.0
    %1903 = vmatpush1.msra.mxu0 0.0
    %1904 = vmatprep.subr.mxu0 0.0
    %1905 = vmatpush1.msra.mxu0 0.0
    %1906 = vmatprep.subr.mxu0 0.0
    %1907 = vmatpush1.msra.mxu0 0.0
    %1908 = vmatprep.subr.mxu0 0.0
    %1909 = vmatpush1.msra.mxu0 0.0
    %1910 = vmatprep.subr.mxu0 0.0
    %1911 = vmatpush1.msra.mxu0 0.0
    %1912 = vmatprep.subr.mxu0 0.0
    %1913 = vmatpush1.msra.mxu0 0.0
    %1914 = vmatprep.subr.mxu0 0.0
    %1915 = vmatpush1.msra.mxu0 0.0
    %1916 = vmatprep.subr.mxu0 0.0
    %1917 = vmatpush1.msra.mxu0 0.0
    %1918 = vmatprep.subr.mxu0 0.0
    %1919 = vmatpush1.msra.mxu0 0.0
    %1920 = vmatprep.subr.mxu0 0.0
    %1921 = vmatpush1.msra.mxu0 0.0
    %1922 = vmatprep.subr.mxu0 0.0
    %1923 = vmatpush1.msra.mxu0 0.0
    %1924 = vmatprep.subr.mxu0 0.0
    %1925 = vmatpush1.msra.mxu0 0.0
    %1926 = vmatprep.subr.mxu0 0.0
    %1927 = vmatpush1.msra.mxu0 0.0
    %1928 = vmatprep.subr.mxu0 0.0
    %1929 = vmatpush1.msra.mxu0 0.0
    %1930 = vmatprep.subr.mxu0 0.0
    %1931 = vmatpush1.msra.mxu0 0.0
    %1932 = vmatprep.subr.mxu0 0.0
    %1933 = vmatpush1.msra.mxu0 0.0
    %1934 = vmatprep.subr.mxu0 0.0
    %1935 = vmatpush1.msra.mxu0 0.0
    %1936 = vmatprep.subr.mxu0 0.0
    %1937 = vmatpush1.msra.mxu0 0.0
    %1938 = vmatprep.subr.mxu0 0.0
    %1939 = vmatpush1.msra.mxu0 0.0
    %1940 = vmatprep.subr.mxu0 0.0
    %1941 = vmatpush1.msra.mxu0 0.0
    %1942 = vmatprep.mubr.f32.mxu0 0.0
    %1943 = vmatmul.mubr.f32.gmra.mrb[0].mxu0 %v577
    %v1944 = vpop.f32.mrb[0].mxu0
    %v1945 = vadd.f32 %v1445, %v1944
    %v1946 = vpop.f32.mrb[0].mxu0
    %1947 = vdwg.mxu0
    %1948 = vmatprep.subr.mxu0 0.0
    %1949 = vmatpush1.msra.mxu0 %v1398
    %1950 = vmatprep.subr.mxu0 0.0
    %1951 = vmatpush1.msra.mxu0 %v1399
    %1952 = vmatprep.subr.mxu0 0.0
    %1953 = vmatpush1.msra.mxu0 %v1400
    %1954 = vmatprep.subr.mxu0 0.0
    %1955 = vmatpush1.msra.mxu0 %v1401
    %1956 = vmatprep.subr.mxu0 0.0
    %1957 = vmatpush1.msra.mxu0 0.0
    %1958 = vmatprep.subr.mxu0 0.0
    %1959 = vmatpush1.msra.mxu0 0.0
    %1960 = vmatprep.subr.mxu0 0.0
    %1961 = vmatpush1.msra.mxu0 0.0
    %1962 = vmatprep.subr.mxu0 0.0
    %1963 = vmatpush1.msra.mxu0 0.0
    %1964 = vmatprep.subr.mxu0 0.0
    %1965 = vmatpush1.msra.mxu0 0.0
    %1966 = vmatprep.subr.mxu0 0.0
    %1967 = vmatpush1.msra.mxu0 0.0
    %1968 = vmatprep.subr.mxu0 0.0
    %1969 = vmatpush1.msra.mxu0 0.0
    %1970 = vmatprep.subr.mxu0 0.0
    %1971 = vmatpush1.msra.mxu0 0.0
    %1972 = vmatprep.subr.mxu0 0.0
    %1973 = vmatpush1.msra.mxu0 0.0
    %1974 = vmatprep.subr.mxu0 0.0
    %1975 = vmatpush1.msra.mxu0 0.0
    %1976 = vmatprep.subr.mxu0 0.0
    %1977 = vmatpush1.msra.mxu0 0.0
    %1978 = vmatprep.subr.mxu0 0.0
    %1979 = vmatpush1.msra.mxu0 0.0
    %1980 = vmatprep.subr.mxu0 0.0
    %1981 = vmatpush1.msra.mxu0 0.0
    %1982 = vmatprep.subr.mxu0 0.0
    %1983 = vmatpush1.msra.mxu0 0.0
    %1984 = vmatprep.subr.mxu0 0.0
    %1985 = vmatpush1.msra.mxu0 0.0
    %1986 = vmatprep.subr.mxu0 0.0
    %1987 = vmatpush1.msra.mxu0 0.0
    %1988 = vmatprep.subr.mxu0 0.0
    %1989 = vmatpush1.msra.mxu0 0.0
    %1990 = vmatprep.subr.mxu0 0.0
    %1991 = vmatpush1.msra.mxu0 0.0
    %1992 = vmatprep.subr.mxu0 0.0
    %1993 = vmatpush1.msra.mxu0 0.0
    %1994 = vmatprep.subr.mxu0 0.0
    %1995 = vmatpush1.msra.mxu0 0.0
    %1996 = vmatprep.subr.mxu0 0.0
    %1997 = vmatpush1.msra.mxu0 0.0
    %1998 = vmatprep.subr.mxu0 0.0
    %1999 = vmatpush1.msra.mxu0 0.0
    %2000 = vmatprep.subr.mxu0 0.0
    %2001 = vmatpush1.msra.mxu0 0.0
    %2002 = vmatprep.subr.mxu0 0.0
    %2003 = vmatpush1.msra.mxu0 0.0
    %2004 = vmatprep.subr.mxu0 0.0
    %2005 = vmatpush1.msra.mxu0 0.0
    %2006 = vmatprep.subr.mxu0 0.0
    %2007 = vmatpush1.msra.mxu0 0.0
    %2008 = vmatprep.subr.mxu0 0.0
    %2009 = vmatpush1.msra.mxu0 0.0
    %2010 = vmatprep.subr.mxu0 0.0
    %2011 = vmatpush1.msra.mxu0 0.0
    %2012 = vmatprep.mubr.f32.mxu0 0.0
    %2013 = vmatmul.mubr.f32.gmra.mrb[0].mxu0 %v650
    %v2014 = vpop.f32.mrb[0].mxu0
    %v2015 = vadd.f32 %v1449, %v2014
    %v2016 = vpop.f32.mrb[0].mxu0
    %2017 = vdwg.mxu0
    %vm2018 = vcmask 64512
    %2019 = vst.msk [vmem:[#allocation2] sm:$0xff] %vm2018, %v877
    %2020 = vst.msk [vmem:[#allocation2 + $0x10] sm:$0xff] %vm2018, %v947
    %2021 = vst.msk [vmem:[#allocation2 + $0x20] sm:$0xff] %vm2018, %v1017
    %2022 = vst.msk [vmem:[#allocation2 + $0x30] sm:$0xff] %vm2018, %v1087
    %2023 = vst.msk [vmem:[#allocation2 + $0x40] sm:$0xff] %vm2018, %v1157
    %2024 = vst.msk [vmem:[#allocation2 + $0x50] sm:$0xff] %vm2018, %v1227
    %2025 = vst.msk [vmem:[#allocation2 + $0x60] sm:$0xff] %vm2018, %v1297
    %2026 = vst.msk [vmem:[#allocation2 + $0x70] sm:$0xff] %vm2018, %v1367
    %v2027 = vld [vmem:[%s7] sm:$0x1]
    %v2028 = vld [vmem:[%s7 + $0x1] sm:$0x1]
    %v2029 = vld [vmem:[%s7 + $0x2] sm:$0x1]
    %v2030 = vld [vmem:[%s7 + $0x3] sm:$0x1]
    %v2031 = vld [vmem:[%s7 + $0x4] sm:$0x1]
    %v2032 = vld [vmem:[%s7 + $0x5] sm:$0x1]
    %v2033 = vld [vmem:[%s7 + $0x6] sm:$0x1]
    %v2034 = vld [vmem:[%s7 + $0x7] sm:$0x1]
    %vm2035 = vcmask 57344
    %2036 = vst.msk [vmem:[#allocation2 + $0x8] sm:$0x1] %vm2035, %v2027
    %2037 = vst.msk [vmem:[#allocation2 + $0x18] sm:$0x1] %vm2035, %v2028
    %2038 = vst.msk [vmem:[#allocation2 + $0x28] sm:$0x1] %vm2035, %v2029
    %2039 = vst.msk [vmem:[#allocation2 + $0x38] sm:$0x1] %vm2035, %v2030
    %2040 = vst.msk [vmem:[#allocation2 + $0x48] sm:$0x1] %vm2035, %v2031
    %2041 = vst.msk [vmem:[#allocation2 + $0x58] sm:$0x1] %vm2035, %v2032
    %2042 = vst.msk [vmem:[#allocation2 + $0x68] sm:$0x1] %vm2035, %v2033
    %2043 = vst.msk [vmem:[#allocation2 + $0x78] sm:$0x1] %vm2035, %v2034
    %2044 = vst.msk [vmem:[#allocation3] sm:$0xff] %vm2018, %v1525
    %2045 = vst.msk [vmem:[#allocation3 + $0x10] sm:$0xff] %vm2018, %v1595
    %2046 = vst.msk [vmem:[#allocation3 + $0x20] sm:$0xff] %vm2018, %v1665
    %2047 = vst.msk [vmem:[#allocation3 + $0x30] sm:$0xff] %vm2018, %v1735
    %2048 = vst.msk [vmem:[#allocation3 + $0x40] sm:$0xff] %vm2018, %v1805
    %2049 = vst.msk [vmem:[#allocation3 + $0x50] sm:$0xff] %vm2018, %v1875
    %2050 = vst.msk [vmem:[#allocation3 + $0x60] sm:$0xff] %vm2018, %v1945
    %2051 = vst.msk [vmem:[#allocation3 + $0x70] sm:$0xff] %vm2018, %v2015
    %v2052 = vld [vmem:[%s8] sm:$0x1]
    %v2053 = vld [vmem:[%s8 + $0x1] sm:$0x1]
    %v2054 = vld [vmem:[%s8 + $0x2] sm:$0x1]
    %v2055 = vld [vmem:[%s8 + $0x3] sm:$0x1]
    %v2056 = vld [vmem:[%s8 + $0x4] sm:$0x1]
    %v2057 = vld [vmem:[%s8 + $0x5] sm:$0x1]
    %v2058 = vld [vmem:[%s8 + $0x6] sm:$0x1]
    %v2059 = vld [vmem:[%s8 + $0x7] sm:$0x1]
    %2060 = vst.msk [vmem:[#allocation3 + $0x8] sm:$0x1] %vm2035, %v2052
    %2061 = vst.msk [vmem:[#allocation3 + $0x18] sm:$0x1] %vm2035, %v2053
    %2062 = vst.msk [vmem:[#allocation3 + $0x28] sm:$0x1] %vm2035, %v2054
    %2063 = vst.msk [vmem:[#allocation3 + $0x38] sm:$0x1] %vm2035, %v2055
    %2064 = vst.msk [vmem:[#allocation3 + $0x48] sm:$0x1] %vm2035, %v2056
    %2065 = vst.msk [vmem:[#allocation3 + $0x58] sm:$0x1] %vm2035, %v2057
    %2066 = vst.msk [vmem:[#allocation3 + $0x68] sm:$0x1] %vm2035, %v2058
    %2067 = vst.msk [vmem:[#allocation3 + $0x78] sm:$0x1] %vm2035, %v2059
    %v2068 = vld [vmem:[#allocation2] sm:$0xff]
    %v2069 = vld [vmem:[#allocation2 + $0x8] sm:$0x1]
    %v2070 = vld [vmem:[#allocation2 + $0x10] sm:$0xff]
    %v2071 = vld [vmem:[#allocation2 + $0x18] sm:$0x1]
    %v2072 = vld [vmem:[#allocation2 + $0x20] sm:$0xff]
    %v2073 = vld [vmem:[#allocation2 + $0x28] sm:$0x1]
    %v2074 = vld [vmem:[#allocation2 + $0x30] sm:$0xff]
    %v2075 = vld [vmem:[#allocation2 + $0x38] sm:$0x1]
    %v2076 = vld [vmem:[#allocation2 + $0x40] sm:$0xff]
    %v2077 = vld [vmem:[#allocation2 + $0x48] sm:$0x1]
    %v2078 = vld [vmem:[#allocation2 + $0x50] sm:$0xff]
    %v2079 = vld [vmem:[#allocation2 + $0x58] sm:$0x1]
    %v2080 = vld [vmem:[#allocation2 + $0x60] sm:$0xff]
    %v2081 = vld [vmem:[#allocation2 + $0x68] sm:$0x1]
    %v2082 = vld [vmem:[#allocation2 + $0x70] sm:$0xff]
    %v2083 = vld [vmem:[#allocation2 + $0x78] sm:$0x1]
    %v2085 = vsel %vm2018, %v208, 0
    %v2088 = vsel %vm2018, %v2068, 0
    %v2091 = vsel %vm2018, %v2069, 0
    %2093 = vmatprep.subr.mxu0 0.0
    %2094 = vmatpush1.xpose.msra.mxu0 %v2088
    %2095 = vmatprep.subr.mxu0 0.0
    %2096 = vmatpush1.xpose.msra.mxu0 %v2091
    %2097 = vmatprep.subr.mxu0 0.0
    %2098 = vmatpush1.xpose.msra.mxu0 0.0
    %2099 = vmatprep.subr.mxu0 0.0
    %2100 = vmatpush1.xpose.msra.mxu0 0.0
    %2101 = vmatprep.subr.mxu0 0.0
    %2102 = vmatpush1.xpose.msra.mxu0 0.0
    %2103 = vmatprep.subr.mxu0 0.0
    %2104 = vmatpush1.xpose.msra.mxu0 0.0
    %2105 = vmatprep.subr.mxu0 0.0
    %2106 = vmatpush1.xpose.msra.mxu0 0.0
    %2107 = vmatprep.subr.mxu0 0.0
    %2108 = vmatpush1.xpose.msra.mxu0 0.0
    %2109 = vmatprep.subr.mxu0 0.0
    %2110 = vmatpush1.xpose.msra.mxu0 0.0
    %2111 = vmatprep.subr.mxu0 0.0
    %2112 = vmatpush1.xpose.msra.mxu0 0.0
    %2113 = vmatprep.subr.mxu0 0.0
    %2114 = vmatpush1.xpose.msra.mxu0 0.0
    %2115 = vmatprep.subr.mxu0 0.0
    %2116 = vmatpush1.xpose.msra.mxu0 0.0
    %2117 = vmatprep.subr.mxu0 0.0
    %2118 = vmatpush1.xpose.msra.mxu0 0.0
    %2119 = vmatprep.subr.mxu0 0.0
    %2120 = vmatpush1.xpose.msra.mxu0 0.0
    %2121 = vmatprep.subr.mxu0 0.0
    %2122 = vmatpush1.xpose.msra.mxu0 0.0
    %2123 = vmatprep.subr.mxu0 0.0
    %2124 = vmatpush1.xpose.msra.mxu0 0.0
    %2125 = vmatprep.subr.mxu0 0.0
    %2126 = vmatpush1.xpose.msra.mxu0 0.0
    %2127 = vmatprep.subr.mxu0 0.0
    %2128 = vmatpush1.xpose.msra.mxu0 0.0
    %2129 = vmatprep.subr.mxu0 0.0
    %2130 = vmatpush1.xpose.msra.mxu0 0.0
    %2131 = vmatprep.subr.mxu0 0.0
    %2132 = vmatpush1.xpose.msra.mxu0 0.0
    %2133 = vmatprep.subr.mxu0 0.0
    %2134 = vmatpush1.xpose.msra.mxu0 0.0
    %2135 = vmatprep.subr.mxu0 0.0
    %2136 = vmatpush1.xpose.msra.mxu0 0.0
    %2137 = vmatprep.subr.mxu0 0.0
    %2138 = vmatpush1.xpose.msra.mxu0 0.0
    %2139 = vmatprep.subr.mxu0 0.0
    %2140 = vmatpush1.xpose.msra.mxu0 0.0
    %2141 = vmatprep.subr.mxu0 0.0
    %2142 = vmatpush1.xpose.msra.mxu0 0.0
    %2143 = vmatprep.subr.mxu0 0.0
    %2144 = vmatpush1.xpose.msra.mxu0 0.0
    %2145 = vmatprep.subr.mxu0 0.0
    %2146 = vmatpush1.xpose.msra.mxu0 0.0
    %2147 = vmatprep.subr.mxu0 0.0
    %2148 = vmatpush1.xpose.msra.mxu0 0.0
    %2149 = vmatprep.subr.mxu0 0.0
    %2150 = vmatpush1.xpose.msra.mxu0 0.0
    %2151 = vmatprep.subr.mxu0 0.0
    %2152 = vmatpush1.xpose.msra.mxu0 0.0
    %2153 = vmatprep.subr.mxu0 0.0
    %2154 = vmatpush1.xpose.msra.mxu0 0.0
    %2155 = vmatprep.subr.mxu0 0.0
    %2156 = vmatpush1.xpose.msra.mxu0 0.0
    %2157 = vmatprep.mubr.f32.mxu0 0.0
    %2158 = vmatmul.mubr.f32.gmra.mrb[0].mxu0 %v2085
    %v2159 = vpop.f32.mrb[0].mxu0
    %v2160 = vadd.f32 0.0, %v2159
    %v2161 = vpop.f32.mrb[0].mxu0
    %2162 = vdwg.mxu0
    %v2164 = vsel %vm2018, %v281, 0
    %v2167 = vsel %vm2018, %v2070, 0
    %v2170 = vsel %vm2018, %v2071, 0
    %2172 = vmatprep.subr.mxu0 0.0
    %2173 = vmatpush1.xpose.msra.mxu0 %v2167
    %2174 = vmatprep.subr.mxu0 0.0
    %2175 = vmatpush1.xpose.msra.mxu0 %v2170
    %2176 = vmatprep.subr.mxu0 0.0
    %2177 = vmatpush1.xpose.msra.mxu0 0.0
    %2178 = vmatprep.subr.mxu0 0.0
    %2179 = vmatpush1.xpose.msra.mxu0 0.0
    %2180 = vmatprep.subr.mxu0 0.0
    %2181 = vmatpush1.xpose.msra.mxu0 0.0
    %2182 = vmatprep.subr.mxu0 0.0
    %2183 = vmatpush1.xpose.msra.mxu0 0.0
    %2184 = vmatprep.subr.mxu0 0.0
    %2185 = vmatpush1.xpose.msra.mxu0 0.0
    %2186 = vmatprep.subr.mxu0 0.0
    %2187 = vmatpush1.xpose.msra.mxu0 0.0
    %2188 = vmatprep.subr.mxu0 0.0
    %2189 = vmatpush1.xpose.msra.mxu0 0.0
    %2190 = vmatprep.subr.mxu0 0.0
    %2191 = vmatpush1.xpose.msra.mxu0 0.0
    %2192 = vmatprep.subr.mxu0 0.0
    %2193 = vmatpush1.xpose.msra.mxu0 0.0
    %2194 = vmatprep.subr.mxu0 0.0
    %2195 = vmatpush1.xpose.msra.mxu0 0.0
    %2196 = vmatprep.subr.mxu0 0.0
    %2197 = vmatpush1.xpose.msra.mxu0 0.0
    %2198 = vmatprep.subr.mxu0 0.0
    %2199 = vmatpush1.xpose.msra.mxu0 0.0
    %2200 = vmatprep.subr.mxu0 0.0
    %2201 = vmatpush1.xpose.msra.mxu0 0.0
    %2202 = vmatprep.subr.mxu0 0.0
    %2203 = vmatpush1.xpose.msra.mxu0 0.0
    %2204 = vmatprep.subr.mxu0 0.0
    %2205 = vmatpush1.xpose.msra.mxu0 0.0
    %2206 = vmatprep.subr.mxu0 0.0
    %2207 = vmatpush1.xpose.msra.mxu0 0.0
    %2208 = vmatprep.subr.mxu0 0.0
    %2209 = vmatpush1.xpose.msra.mxu0 0.0
    %2210 = vmatprep.subr.mxu0 0.0
    %2211 = vmatpush1.xpose.msra.mxu0 0.0
    %2212 = vmatprep.subr.mxu0 0.0
    %2213 = vmatpush1.xpose.msra.mxu0 0.0
    %2214 = vmatprep.subr.mxu0 0.0
    %2215 = vmatpush1.xpose.msra.mxu0 0.0
    %2216 = vmatprep.subr.mxu0 0.0
    %2217 = vmatpush1.xpose.msra.mxu0 0.0
    %2218 = vmatprep.subr.mxu0 0.0
    %2219 = vmatpush1.xpose.msra.mxu0 0.0
    %2220 = vmatprep.subr.mxu0 0.0
    %2221 = vmatpush1.xpose.msra.mxu0 0.0
    %2222 = vmatprep.subr.mxu0 0.0
    %2223 = vmatpush1.xpose.msra.mxu0 0.0
    %2224 = vmatprep.subr.mxu0 0.0
    %2225 = vmatpush1.xpose.msra.mxu0 0.0
    %2226 = vmatprep.subr.mxu0 0.0
    %2227 = vmatpush1.xpose.msra.mxu0 0.0
    %2228 = vmatprep.subr.mxu0 0.0
    %2229 = vmatpush1.xpose.msra.mxu0 0.0
    %2230 = vmatprep.subr.mxu0 0.0
    %2231 = vmatpush1.xpose.msra.mxu0 0.0
    %2232 = vmatprep.subr.mxu0 0.0
    %2233 = vmatpush1.xpose.msra.mxu0 0.0
    %2234 = vmatprep.subr.mxu0 0.0
    %2235 = vmatpush1.xpose.msra.mxu0 0.0
    %2236 = vmatprep.mubr.f32.mxu0 0.0
    %2237 = vmatmul.mubr.f32.gmra.mrb[0].mxu0 %v2164
    %v2238 = vpop.f32.mrb[0].mxu0
    %v2239 = vadd.f32 0.0, %v2238
    %v2240 = vpop.f32.mrb[0].mxu0
    %2241 = vdwg.mxu0
    %v2243 = vsel %vm2018, %v354, 0
    %v2246 = vsel %vm2018, %v2072, 0
    %v2249 = vsel %vm2018, %v2073, 0
    %2251 = vmatprep.subr.mxu0 0.0
    %2252 = vmatpush1.xpose.msra.mxu0 %v2246
    %2253 = vmatprep.subr.mxu0 0.0
    %2254 = vmatpush1.xpose.msra.mxu0 %v2249
    %2255 = vmatprep.subr.mxu0 0.0
    %2256 = vmatpush1.xpose.msra.mxu0 0.0
    %2257 = vmatprep.subr.mxu0 0.0
    %2258 = vmatpush1.xpose.msra.mxu0 0.0
    %2259 = vmatprep.subr.mxu0 0.0
    %2260 = vmatpush1.xpose.msra.mxu0 0.0
    %2261 = vmatprep.subr.mxu0 0.0
    %2262 = vmatpush1.xpose.msra.mxu0 0.0
    %2263 = vmatprep.subr.mxu0 0.0
    %2264 = vmatpush1.xpose.msra.mxu0 0.0
    %2265 = vmatprep.subr.mxu0 0.0
    %2266 = vmatpush1.xpose.msra.mxu0 0.0
    %2267 = vmatprep.subr.mxu0 0.0
    %2268 = vmatpush1.xpose.msra.mxu0 0.0
    %2269 = vmatprep.subr.mxu0 0.0
    %2270 = vmatpush1.xpose.msra.mxu0 0.0
    %2271 = vmatprep.subr.mxu0 0.0
    %2272 = vmatpush1.xpose.msra.mxu0 0.0
    %2273 = vmatprep.subr.mxu0 0.0
    %2274 = vmatpush1.xpose.msra.mxu0 0.0
    %2275 = vmatprep.subr.mxu0 0.0
    %2276 = vmatpush1.xpose.msra.mxu0 0.0
    %2277 = vmatprep.subr.mxu0 0.0
    %2278 = vmatpush1.xpose.msra.mxu0 0.0
    %2279 = vmatprep.subr.mxu0 0.0
    %2280 = vmatpush1.xpose.msra.mxu0 0.0
    %2281 = vmatprep.subr.mxu0 0.0
    %2282 = vmatpush1.xpose.msra.mxu0 0.0
    %2283 = vmatprep.subr.mxu0 0.0
    %2284 = vmatpush1.xpose.msra.mxu0 0.0
    %2285 = vmatprep.subr.mxu0 0.0
    %2286 = vmatpush1.xpose.msra.mxu0 0.0
    %2287 = vmatprep.subr.mxu0 0.0
    %2288 = vmatpush1.xpose.msra.mxu0 0.0
    %2289 = vmatprep.subr.mxu0 0.0
    %2290 = vmatpush1.xpose.msra.mxu0 0.0
    %2291 = vmatprep.subr.mxu0 0.0
    %2292 = vmatpush1.xpose.msra.mxu0 0.0
    %2293 = vmatprep.subr.mxu0 0.0
    %2294 = vmatpush1.xpose.msra.mxu0 0.0
    %2295 = vmatprep.subr.mxu0 0.0
    %2296 = vmatpush1.xpose.msra.mxu0 0.0
    %2297 = vmatprep.subr.mxu0 0.0
    %2298 = vmatpush1.xpose.msra.mxu0 0.0
    %2299 = vmatprep.subr.mxu0 0.0
    %2300 = vmatpush1.xpose.msra.mxu0 0.0
    %2301 = vmatprep.subr.mxu0 0.0
    %2302 = vmatpush1.xpose.msra.mxu0 0.0
    %2303 = vmatprep.subr.mxu0 0.0
    %2304 = vmatpush1.xpose.msra.mxu0 0.0
    %2305 = vmatprep.subr.mxu0 0.0
    %2306 = vmatpush1.xpose.msra.mxu0 0.0
    %2307 = vmatprep.subr.mxu0 0.0
    %2308 = vmatpush1.xpose.msra.mxu0 0.0
    %2309 = vmatprep.subr.mxu0 0.0
    %2310 = vmatpush1.xpose.msra.mxu0 0.0
    %2311 = vmatprep.subr.mxu0 0.0
    %2312 = vmatpush1.xpose.msra.mxu0 0.0
    %2313 = vmatprep.subr.mxu0 0.0
    %2314 = vmatpush1.xpose.msra.mxu0 0.0
    %2315 = vmatprep.mubr.f32.mxu0 0.0
    %2316 = vmatmul.mubr.f32.gmra.mrb[0].mxu0 %v2243
    %v2317 = vpop.f32.mrb[0].mxu0
    %v2318 = vadd.f32 0.0, %v2317
    %v2319 = vpop.f32.mrb[0].mxu0
    %2320 = vdwg.mxu0
    %v2322 = vsel %vm2018, %v427, 0
    %v2325 = vsel %vm2018, %v2074, 0
    %v2328 = vsel %vm2018, %v2075, 0
    %2330 = vmatprep.subr.mxu0 0.0
    %2331 = vmatpush1.xpose.msra.mxu0 %v2325
    %2332 = vmatprep.subr.mxu0 0.0
    %2333 = vmatpush1.xpose.msra.mxu0 %v2328
    %2334 = vmatprep.subr.mxu0 0.0
    %2335 = vmatpush1.xpose.msra.mxu0 0.0
    %2336 = vmatprep.subr.mxu0 0.0
    %2337 = vmatpush1.xpose.msra.mxu0 0.0
    %2338 = vmatprep.subr.mxu0 0.0
    %2339 = vmatpush1.xpose.msra.mxu0 0.0
    %2340 = vmatprep.subr.mxu0 0.0
    %2341 = vmatpush1.xpose.msra.mxu0 0.0
    %2342 = vmatprep.subr.mxu0 0.0
    %2343 = vmatpush1.xpose.msra.mxu0 0.0
    %2344 = vmatprep.subr.mxu0 0.0
    %2345 = vmatpush1.xpose.msra.mxu0 0.0
    %2346 = vmatprep.subr.mxu0 0.0
    %2347 = vmatpush1.xpose.msra.mxu0 0.0
    %2348 = vmatprep.subr.mxu0 0.0
    %2349 = vmatpush1.xpose.msra.mxu0 0.0
    %2350 = vmatprep.subr.mxu0 0.0
    %2351 = vmatpush1.xpose.msra.mxu0 0.0
    %2352 = vmatprep.subr.mxu0 0.0
    %2353 = vmatpush1.xpose.msra.mxu0 0.0
    %2354 = vmatprep.subr.mxu0 0.0
    %2355 = vmatpush1.xpose.msra.mxu0 0.0
    %2356 = vmatprep.subr.mxu0 0.0
    %2357 = vmatpush1.xpose.msra.mxu0 0.0
    %2358 = vmatprep.subr.mxu0 0.0
    %2359 = vmatpush1.xpose.msra.mxu0 0.0
    %2360 = vmatprep.subr.mxu0 0.0
    %2361 = vmatpush1.xpose.msra.mxu0 0.0
    %2362 = vmatprep.subr.mxu0 0.0
    %2363 = vmatpush1.xpose.msra.mxu0 0.0
    %2364 = vmatprep.subr.mxu0 0.0
    %2365 = vmatpush1.xpose.msra.mxu0 0.0
    %2366 = vmatprep.subr.mxu0 0.0
    %2367 = vmatpush1.xpose.msra.mxu0 0.0
    %2368 = vmatprep.subr.mxu0 0.0
    %2369 = vmatpush1.xpose.msra.mxu0 0.0
    %2370 = vmatprep.subr.mxu0 0.0
    %2371 = vmatpush1.xpose.msra.mxu0 0.0
    %2372 = vmatprep.subr.mxu0 0.0
    %2373 = vmatpush1.xpose.msra.mxu0 0.0
    %2374 = vmatprep.subr.mxu0 0.0
    %2375 = vmatpush1.xpose.msra.mxu0 0.0
    %2376 = vmatprep.subr.mxu0 0.0
    %2377 = vmatpush1.xpose.msra.mxu0 0.0
    %2378 = vmatprep.subr.mxu0 0.0
    %2379 = vmatpush1.xpose.msra.mxu0 0.0
    %2380 = vmatprep.subr.mxu0 0.0
    %2381 = vmatpush1.xpose.msra.mxu0 0.0
    %2382 = vmatprep.subr.mxu0 0.0
    %2383 = vmatpush1.xpose.msra.mxu0 0.0
    %2384 = vmatprep.subr.mxu0 0.0
    %2385 = vmatpush1.xpose.msra.mxu0 0.0
    %2386 = vmatprep.subr.mxu0 0.0
    %2387 = vmatpush1.xpose.msra.mxu0 0.0
    %2388 = vmatprep.subr.mxu0 0.0
    %2389 = vmatpush1.xpose.msra.mxu0 0.0
    %2390 = vmatprep.subr.mxu0 0.0
    %2391 = vmatpush1.xpose.msra.mxu0 0.0
    %2392 = vmatprep.subr.mxu0 0.0
    %2393 = vmatpush1.xpose.msra.mxu0 0.0
    %2394 = vmatprep.mubr.f32.mxu0 0.0
    %2395 = vmatmul.mubr.f32.gmra.mrb[0].mxu0 %v2322
    %v2396 = vpop.f32.mrb[0].mxu0
    %v2397 = vadd.f32 0.0, %v2396
    %v2398 = vpop.f32.mrb[0].mxu0
    %2399 = vdwg.mxu0
    %v2401 = vsel %vm2018, %v500, 0
    %v2404 = vsel %vm2018, %v2076, 0
    %v2407 = vsel %vm2018, %v2077, 0
    %2409 = vmatprep.subr.mxu0 0.0
    %2410 = vmatpush1.xpose.msra.mxu0 %v2404
    %2411 = vmatprep.subr.mxu0 0.0
    %2412 = vmatpush1.xpose.msra.mxu0 %v2407
    %2413 = vmatprep.subr.mxu0 0.0
    %2414 = vmatpush1.xpose.msra.mxu0 0.0
    %2415 = vmatprep.subr.mxu0 0.0
    %2416 = vmatpush1.xpose.msra.mxu0 0.0
    %2417 = vmatprep.subr.mxu0 0.0
    %2418 = vmatpush1.xpose.msra.mxu0 0.0
    %2419 = vmatprep.subr.mxu0 0.0
    %2420 = vmatpush1.xpose.msra.mxu0 0.0
    %2421 = vmatprep.subr.mxu0 0.0
    %2422 = vmatpush1.xpose.msra.mxu0 0.0
    %2423 = vmatprep.subr.mxu0 0.0
    %2424 = vmatpush1.xpose.msra.mxu0 0.0
    %2425 = vmatprep.subr.mxu0 0.0
    %2426 = vmatpush1.xpose.msra.mxu0 0.0
    %2427 = vmatprep.subr.mxu0 0.0
    %2428 = vmatpush1.xpose.msra.mxu0 0.0
    %2429 = vmatprep.subr.mxu0 0.0
    %2430 = vmatpush1.xpose.msra.mxu0 0.0
    %2431 = vmatprep.subr.mxu0 0.0
    %2432 = vmatpush1.xpose.msra.mxu0 0.0
    %2433 = vmatprep.subr.mxu0 0.0
    %2434 = vmatpush1.xpose.msra.mxu0 0.0
    %2435 = vmatprep.subr.mxu0 0.0
    %2436 = vmatpush1.xpose.msra.mxu0 0.0
    %2437 = vmatprep.subr.mxu0 0.0
    %2438 = vmatpush1.xpose.msra.mxu0 0.0
    %2439 = vmatprep.subr.mxu0 0.0
    %2440 = vmatpush1.xpose.msra.mxu0 0.0
    %2441 = vmatprep.subr.mxu0 0.0
    %2442 = vmatpush1.xpose.msra.mxu0 0.0
    %2443 = vmatprep.subr.mxu0 0.0
    %2444 = vmatpush1.xpose.msra.mxu0 0.0
    %2445 = vmatprep.subr.mxu0 0.0
    %2446 = vmatpush1.xpose.msra.mxu0 0.0
    %2447 = vmatprep.subr.mxu0 0.0
    %2448 = vmatpush1.xpose.msra.mxu0 0.0
    %2449 = vmatprep.subr.mxu0 0.0
    %2450 = vmatpush1.xpose.msra.mxu0 0.0
    %2451 = vmatprep.subr.mxu0 0.0
    %2452 = vmatpush1.xpose.msra.mxu0 0.0
    %2453 = vmatprep.subr.mxu0 0.0
    %2454 = vmatpush1.xpose.msra.mxu0 0.0
    %2455 = vmatprep.subr.mxu0 0.0
    %2456 = vmatpush1.xpose.msra.mxu0 0.0
    %2457 = vmatprep.subr.mxu0 0.0
    %2458 = vmatpush1.xpose.msra.mxu0 0.0
    %2459 = vmatprep.subr.mxu0 0.0
    %2460 = vmatpush1.xpose.msra.mxu0 0.0
    %2461 = vmatprep.subr.mxu0 0.0
    %2462 = vmatpush1.xpose.msra.mxu0 0.0
    %2463 = vmatprep.subr.mxu0 0.0
    %2464 = vmatpush1.xpose.msra.mxu0 0.0
    %2465 = vmatprep.subr.mxu0 0.0
    %2466 = vmatpush1.xpose.msra.mxu0 0.0
    %2467 = vmatprep.subr.mxu0 0.0
    %2468 = vmatpush1.xpose.msra.mxu0 0.0
    %2469 = vmatprep.subr.mxu0 0.0
    %2470 = vmatpush1.xpose.msra.mxu0 0.0
    %2471 = vmatprep.subr.mxu0 0.0
    %2472 = vmatpush1.xpose.msra.mxu0 0.0
    %2473 = vmatprep.mubr.f32.mxu0 0.0
    %2474 = vmatmul.mubr.f32.gmra.mrb[0].mxu0 %v2401
    %v2475 = vpop.f32.mrb[0].mxu0
    %v2476 = vadd.f32 0.0, %v2475
    %v2477 = vpop.f32.mrb[0].mxu0
    %2478 = vdwg.mxu0
    %v2480 = vsel %vm2018, %v573, 0
    %v2483 = vsel %vm2018, %v2078, 0
    %v2486 = vsel %vm2018, %v2079, 0
    %2488 = vmatprep.subr.mxu0 0.0
    %2489 = vmatpush1.xpose.msra.mxu0 %v2483
    %2490 = vmatprep.subr.mxu0 0.0
    %2491 = vmatpush1.xpose.msra.mxu0 %v2486
    %2492 = vmatprep.subr.mxu0 0.0
    %2493 = vmatpush1.xpose.msra.mxu0 0.0
    %2494 = vmatprep.subr.mxu0 0.0
    %2495 = vmatpush1.xpose.msra.mxu0 0.0
    %2496 = vmatprep.subr.mxu0 0.0
    %2497 = vmatpush1.xpose.msra.mxu0 0.0
    %2498 = vmatprep.subr.mxu0 0.0
    %2499 = vmatpush1.xpose.msra.mxu0 0.0
    %2500 = vmatprep.subr.mxu0 0.0
    %2501 = vmatpush1.xpose.msra.mxu0 0.0
    %2502 = vmatprep.subr.mxu0 0.0
    %2503 = vmatpush1.xpose.msra.mxu0 0.0
    %2504 = vmatprep.subr.mxu0 0.0
    %2505 = vmatpush1.xpose.msra.mxu0 0.0
    %2506 = vmatprep.subr.mxu0 0.0
    %2507 = vmatpush1.xpose.msra.mxu0 0.0
    %2508 = vmatprep.subr.mxu0 0.0
    %2509 = vmatpush1.xpose.msra.mxu0 0.0
    %2510 = vmatprep.subr.mxu0 0.0
    %2511 = vmatpush1.xpose.msra.mxu0 0.0
    %2512 = vmatprep.subr.mxu0 0.0
    %2513 = vmatpush1.xpose.msra.mxu0 0.0
    %2514 = vmatprep.subr.mxu0 0.0
    %2515 = vmatpush1.xpose.msra.mxu0 0.0
    %2516 = vmatprep.subr.mxu0 0.0
    %2517 = vmatpush1.xpose.msra.mxu0 0.0
    %2518 = vmatprep.subr.mxu0 0.0
    %2519 = vmatpush1.xpose.msra.mxu0 0.0
    %2520 = vmatprep.subr.mxu0 0.0
    %2521 = vmatpush1.xpose.msra.mxu0 0.0
    %2522 = vmatprep.subr.mxu0 0.0
    %2523 = vmatpush1.xpose.msra.mxu0 0.0
    %2524 = vmatprep.subr.mxu0 0.0
    %2525 = vmatpush1.xpose.msra.mxu0 0.0
    %2526 = vmatprep.subr.mxu0 0.0
    %2527 = vmatpush1.xpose.msra.mxu0 0.0
    %2528 = vmatprep.subr.mxu0 0.0
    %2529 = vmatpush1.xpose.msra.mxu0 0.0
    %2530 = vmatprep.subr.mxu0 0.0
    %2531 = vmatpush1.xpose.msra.mxu0 0.0
    %2532 = vmatprep.subr.mxu0 0.0
    %2533 = vmatpush1.xpose.msra.mxu0 0.0
    %2534 = vmatprep.subr.mxu0 0.0
    %2535 = vmatpush1.xpose.msra.mxu0 0.0
    %2536 = vmatprep.subr.mxu0 0.0
    %2537 = vmatpush1.xpose.msra.mxu0 0.0
    %2538 = vmatprep.subr.mxu0 0.0
    %2539 = vmatpush1.xpose.msra.mxu0 0.0
    %2540 = vmatprep.subr.mxu0 0.0
    %2541 = vmatpush1.xpose.msra.mxu0 0.0
    %2542 = vmatprep.subr.mxu0 0.0
    %2543 = vmatpush1.xpose.msra.mxu0 0.0
    %2544 = vmatprep.subr.mxu0 0.0
    %2545 = vmatpush1.xpose.msra.mxu0 0.0
    %2546 = vmatprep.subr.mxu0 0.0
    %2547 = vmatpush1.xpose.msra.mxu0 0.0
    %2548 = vmatprep.subr.mxu0 0.0
    %2549 = vmatpush1.xpose.msra.mxu0 0.0
    %2550 = vmatprep.subr.mxu0 0.0
    %2551 = vmatpush1.xpose.msra.mxu0 0.0
    %2552 = vmatprep.mubr.f32.mxu0 0.0
    %2553 = vmatmul.mubr.f32.gmra.mrb[0].mxu0 %v2480
    %v2554 = vpop.f32.mrb[0].mxu0
    %v2555 = vadd.f32 0.0, %v2554
    %v2556 = vpop.f32.mrb[0].mxu0
    %2557 = vdwg.mxu0
    %v2559 = vsel %vm2018, %v646, 0
    %v2562 = vsel %vm2018, %v2080, 0
    %v2565 = vsel %vm2018, %v2081, 0
    %2567 = vmatprep.subr.mxu0 0.0
    %2568 = vmatpush1.xpose.msra.mxu0 %v2562
    %2569 = vmatprep.subr.mxu0 0.0
    %2570 = vmatpush1.xpose.msra.mxu0 %v2565
    %2571 = vmatprep.subr.mxu0 0.0
    %2572 = vmatpush1.xpose.msra.mxu0 0.0
    %2573 = vmatprep.subr.mxu0 0.0
    %2574 = vmatpush1.xpose.msra.mxu0 0.0
    %2575 = vmatprep.subr.mxu0 0.0
    %2576 = vmatpush1.xpose.msra.mxu0 0.0
    %2577 = vmatprep.subr.mxu0 0.0
    %2578 = vmatpush1.xpose.msra.mxu0 0.0
    %2579 = vmatprep.subr.mxu0 0.0
    %2580 = vmatpush1.xpose.msra.mxu0 0.0
    %2581 = vmatprep.subr.mxu0 0.0
    %2582 = vmatpush1.xpose.msra.mxu0 0.0
    %2583 = vmatprep.subr.mxu0 0.0
    %2584 = vmatpush1.xpose.msra.mxu0 0.0
    %2585 = vmatprep.subr.mxu0 0.0
    %2586 = vmatpush1.xpose.msra.mxu0 0.0
    %2587 = vmatprep.subr.mxu0 0.0
    %2588 = vmatpush1.xpose.msra.mxu0 0.0
    %2589 = vmatprep.subr.mxu0 0.0
    %2590 = vmatpush1.xpose.msra.mxu0 0.0
    %2591 = vmatprep.subr.mxu0 0.0
    %2592 = vmatpush1.xpose.msra.mxu0 0.0
    %2593 = vmatprep.subr.mxu0 0.0
    %2594 = vmatpush1.xpose.msra.mxu0 0.0
    %2595 = vmatprep.subr.mxu0 0.0
    %2596 = vmatpush1.xpose.msra.mxu0 0.0
    %2597 = vmatprep.subr.mxu0 0.0
    %2598 = vmatpush1.xpose.msra.mxu0 0.0
    %2599 = vmatprep.subr.mxu0 0.0
    %2600 = vmatpush1.xpose.msra.mxu0 0.0
    %2601 = vmatprep.subr.mxu0 0.0
    %2602 = vmatpush1.xpose.msra.mxu0 0.0
    %2603 = vmatprep.subr.mxu0 0.0
    %2604 = vmatpush1.xpose.msra.mxu0 0.0
    %2605 = vmatprep.subr.mxu0 0.0
    %2606 = vmatpush1.xpose.msra.mxu0 0.0
    %2607 = vmatprep.subr.mxu0 0.0
    %2608 = vmatpush1.xpose.msra.mxu0 0.0
    %2609 = vmatprep.subr.mxu0 0.0
    %2610 = vmatpush1.xpose.msra.mxu0 0.0
    %2611 = vmatprep.subr.mxu0 0.0
    %2612 = vmatpush1.xpose.msra.mxu0 0.0
    %2613 = vmatprep.subr.mxu0 0.0
    %2614 = vmatpush1.xpose.msra.mxu0 0.0
    %2615 = vmatprep.subr.mxu0 0.0
    %2616 = vmatpush1.xpose.msra.mxu0 0.0
    %2617 = vmatprep.subr.mxu0 0.0
    %2618 = vmatpush1.xpose.msra.mxu0 0.0
    %2619 = vmatprep.subr.mxu0 0.0
    %2620 = vmatpush1.xpose.msra.mxu0 0.0
    %2621 = vmatprep.subr.mxu0 0.0
    %2622 = vmatpush1.xpose.msra.mxu0 0.0
    %2623 = vmatprep.subr.mxu0 0.0
    %2624 = vmatpush1.xpose.msra.mxu0 0.0
    %2625 = vmatprep.subr.mxu0 0.0
    %2626 = vmatpush1.xpose.msra.mxu0 0.0
    %2627 = vmatprep.subr.mxu0 0.0
    %2628 = vmatpush1.xpose.msra.mxu0 0.0
    %2629 = vmatprep.subr.mxu0 0.0
    %2630 = vmatpush1.xpose.msra.mxu0 0.0
    %2631 = vmatprep.mubr.f32.mxu0 0.0
    %2632 = vmatmul.mubr.f32.gmra.mrb[0].mxu0 %v2559
    %v2633 = vpop.f32.mrb[0].mxu0
    %v2634 = vadd.f32 0.0, %v2633
    %v2635 = vpop.f32.mrb[0].mxu0
    %2636 = vdwg.mxu0
    %v2638 = vsel %vm2018, %v719, 0
    %v2641 = vsel %vm2018, %v2082, 0
    %v2644 = vsel %vm2018, %v2083, 0
    %2646 = vmatprep.subr.mxu0 0.0
    %2647 = vmatpush1.xpose.msra.mxu0 %v2641
    %2648 = vmatprep.subr.mxu0 0.0
    %2649 = vmatpush1.xpose.msra.mxu0 %v2644
    %2650 = vmatprep.subr.mxu0 0.0
    %2651 = vmatpush1.xpose.msra.mxu0 0.0
    %2652 = vmatprep.subr.mxu0 0.0
    %2653 = vmatpush1.xpose.msra.mxu0 0.0
    %2654 = vmatprep.subr.mxu0 0.0
    %2655 = vmatpush1.xpose.msra.mxu0 0.0
    %2656 = vmatprep.subr.mxu0 0.0
    %2657 = vmatpush1.xpose.msra.mxu0 0.0
    %2658 = vmatprep.subr.mxu0 0.0
    %2659 = vmatpush1.xpose.msra.mxu0 0.0
    %2660 = vmatprep.subr.mxu0 0.0
    %2661 = vmatpush1.xpose.msra.mxu0 0.0
    %2662 = vmatprep.subr.mxu0 0.0
    %2663 = vmatpush1.xpose.msra.mxu0 0.0
    %2664 = vmatprep.subr.mxu0 0.0
    %2665 = vmatpush1.xpose.msra.mxu0 0.0
    %2666 = vmatprep.subr.mxu0 0.0
    %2667 = vmatpush1.xpose.msra.mxu0 0.0
    %2668 = vmatprep.subr.mxu0 0.0
    %2669 = vmatpush1.xpose.msra.mxu0 0.0
    %2670 = vmatprep.subr.mxu0 0.0
    %2671 = vmatpush1.xpose.msra.mxu0 0.0
    %2672 = vmatprep.subr.mxu0 0.0
    %2673 = vmatpush1.xpose.msra.mxu0 0.0
    %2674 = vmatprep.subr.mxu0 0.0
    %2675 = vmatpush1.xpose.msra.mxu0 0.0
    %2676 = vmatprep.subr.mxu0 0.0
    %2677 = vmatpush1.xpose.msra.mxu0 0.0
    %2678 = vmatprep.subr.mxu0 0.0
    %2679 = vmatpush1.xpose.msra.mxu0 0.0
    %2680 = vmatprep.subr.mxu0 0.0
    %2681 = vmatpush1.xpose.msra.mxu0 0.0
    %2682 = vmatprep.subr.mxu0 0.0
    %2683 = vmatpush1.xpose.msra.mxu0 0.0
    %2684 = vmatprep.subr.mxu0 0.0
    %2685 = vmatpush1.xpose.msra.mxu0 0.0
    %2686 = vmatprep.subr.mxu0 0.0
    %2687 = vmatpush1.xpose.msra.mxu0 0.0
    %2688 = vmatprep.subr.mxu0 0.0
    %2689 = vmatpush1.xpose.msra.mxu0 0.0
    %2690 = vmatprep.subr.mxu0 0.0
    %2691 = vmatpush1.xpose.msra.mxu0 0.0
    %2692 = vmatprep.subr.mxu0 0.0
    %2693 = vmatpush1.xpose.msra.mxu0 0.0
    %2694 = vmatprep.subr.mxu0 0.0
    %2695 = vmatpush1.xpose.msra.mxu0 0.0
    %2696 = vmatprep.subr.mxu0 0.0
    %2697 = vmatpush1.xpose.msra.mxu0 0.0
    %2698 = vmatprep.subr.mxu0 0.0
    %2699 = vmatpush1.xpose.msra.mxu0 0.0
    %2700 = vmatprep.subr.mxu0 0.0
    %2701 = vmatpush1.xpose.msra.mxu0 0.0
    %2702 = vmatprep.subr.mxu0 0.0
    %2703 = vmatpush1.xpose.msra.mxu0 0.0
    %2704 = vmatprep.subr.mxu0 0.0
    %2705 = vmatpush1.xpose.msra.mxu0 0.0
    %2706 = vmatprep.subr.mxu0 0.0
    %2707 = vmatpush1.xpose.msra.mxu0 0.0
    %2708 = vmatprep.subr.mxu0 0.0
    %2709 = vmatpush1.xpose.msra.mxu0 0.0
    %2710 = vmatprep.mubr.f32.mxu0 0.0
    %2711 = vmatmul.mubr.f32.gmra.mrb[0].mxu0 %v2638
    %v2712 = vpop.f32.mrb[0].mxu0
    %v2713 = vadd.f32 0.0, %v2712
    %v2714 = vpop.f32.mrb[0].mxu0
    %2715 = vdwg.mxu0
    %vm2716 = vcmask 72704
    %v2717 = vsel %vm2716, %v2160, -inf
    %2718 = vmax.xlane.f32.xlu0 %v2717
    %v2719 = vpop.xlane.xlu0 %2718
    %v2720 = vsel %vm2716, %v2239, -inf
    %2721 = vmax.xlane.f32.xlu0 %v2720
    %v2722 = vpop.xlane.xlu0 %2721
    %v2723 = vsel %vm2716, %v2318, -inf
    %2724 = vmax.xlane.f32.xlu0 %v2723
    %v2725 = vpop.xlane.xlu0 %2724
    %v2726 = vsel %vm2716, %v2397, -inf
    %2727 = vmax.xlane.f32.xlu0 %v2726
    %v2728 = vpop.xlane.xlu0 %2727
    %v2729 = vsel %vm2716, %v2476, -inf
    %2730 = vmax.xlane.f32.xlu0 %v2729
    %v2731 = vpop.xlane.xlu0 %2730
    %v2732 = vsel %vm2716, %v2555, -inf
    %2733 = vmax.xlane.f32.xlu0 %v2732
    %v2734 = vpop.xlane.xlu0 %2733
    %v2735 = vsel %vm2716, %v2634, -inf
    %2736 = vmax.xlane.f32.xlu0 %v2735
    %v2737 = vpop.xlane.xlu0 %2736
    %v2738 = vsel %vm2716, %v2713, -inf
    %2739 = vmax.xlane.f32.xlu0 %v2738
    %v2740 = vpop.xlane.xlu0 %2739
    %v2741 = vsub.f32 %v2160, %v2719
    %v2742 = vsub.f32 %v2239, %v2722
    %v2743 = vsub.f32 %v2318, %v2725
    %v2744 = vsub.f32 %v2397, %v2728
    %v2745 = vsub.f32 %v2476, %v2731
    %v2746 = vsub.f32 %v2555, %v2734
    %v2747 = vsub.f32 %v2634, %v2737
    %v2748 = vsub.f32 %v2713, %v2740
    %v2749 = vmul.f32 %v2741, 1.442695
    %v2750 = vpow.pop %v2749
    %v2751 = vmul.f32 %v2742, 1.442695
    %v2752 = vpow.pop %v2751
    %v2753 = vmul.f32 %v2743, 1.442695
    %v2754 = vpow.pop %v2753
    %v2755 = vmul.f32 %v2744, 1.442695
    %v2756 = vpow.pop %v2755
    %v2757 = vmul.f32 %v2745, 1.442695
    %v2758 = vpow.pop %v2757
    %v2759 = vmul.f32 %v2746, 1.442695
    %v2760 = vpow.pop %v2759
    %v2761 = vmul.f32 %v2747, 1.442695
    %v2762 = vpow.pop %v2761
    %v2763 = vmul.f32 %v2748, 1.442695
    %v2764 = vpow.pop %v2763
    %v2765 = vsel %vm2716, %v2750, 0.0
    %2766 = vadd.xlane.f32.xlu0 %v2765
    %v2767 = vpop.xlane.xlu0 %2766
    %v2768 = vsel %vm2716, %v2752, 0.0
    %2769 = vadd.xlane.f32.xlu0 %v2768
    %v2770 = vpop.xlane.xlu0 %2769
    %v2771 = vsel %vm2716, %v2754, 0.0
    %2772 = vadd.xlane.f32.xlu0 %v2771
    %v2773 = vpop.xlane.xlu0 %2772
    %v2774 = vsel %vm2716, %v2756, 0.0
    %2775 = vadd.xlane.f32.xlu0 %v2774
    %v2776 = vpop.xlane.xlu0 %2775
    %v2777 = vsel %vm2716, %v2758, 0.0
    %2778 = vadd.xlane.f32.xlu0 %v2777
    %v2779 = vpop.xlane.xlu0 %2778
    %v2780 = vsel %vm2716, %v2760, 0.0
    %2781 = vadd.xlane.f32.xlu0 %v2780
    %v2782 = vpop.xlane.xlu0 %2781
    %v2783 = vsel %vm2716, %v2762, 0.0
    %2784 = vadd.xlane.f32.xlu0 %v2783
    %v2785 = vpop.xlane.xlu0 %2784
    %v2786 = vsel %vm2716, %v2764, 0.0
    %2787 = vadd.xlane.f32.xlu0 %v2786
    %v2788 = vpop.xlane.xlu0 %2787
    %v2789 = vrcp.pop %v2767
    %v2790 = vrcp.pop %v2770
    %v2791 = vrcp.pop %v2773
    %v2792 = vrcp.pop %v2776
    %v2793 = vrcp.pop %v2779
    %v2794 = vrcp.pop %v2782
    %v2795 = vrcp.pop %v2785
    %v2796 = vrcp.pop %v2788
    %v2797 = vmul.f32 %v2750, %v2789
    %v2798 = vmul.f32 %v2752, %v2790
    %v2799 = vmul.f32 %v2754, %v2791
    %v2800 = vmul.f32 %v2756, %v2792
    %v2801 = vmul.f32 %v2758, %v2793
    %v2802 = vmul.f32 %v2760, %v2794
    %v2803 = vmul.f32 %v2762, %v2795
    %v2804 = vmul.f32 %v2764, %v2796
    %v2805 = vsel %vm2716, %v2797, 0.0
    %v2806 = vrot.slane %v2805, 4
    %v2807 = vadd.f32 %v2805, %v2806
    %v2808 = vrot.slane %v2807, 2
    %v2809 = vadd.f32 %v2807, %v2808
    %v2810 = vrot.slane %v2809, 1
    %v2811 = vadd.f32 %v2809, %v2810
    %v2812 = vsel %vm2716, %v2798, 0.0
    %v2813 = vrot.slane %v2812, 4
    %v2814 = vadd.f32 %v2812, %v2813
    %v2815 = vrot.slane %v2814, 2
    %v2816 = vadd.f32 %v2814, %v2815
    %v2817 = vrot.slane %v2816, 1
    %v2818 = vadd.f32 %v2816, %v2817
    %v2819 = vsel %vm2716, %v2799, 0.0
    %v2820 = vrot.slane %v2819, 4
    %v2821 = vadd.f32 %v2819, %v2820
    %v2822 = vrot.slane %v2821, 2
    %v2823 = vadd.f32 %v2821, %v2822
    %v2824 = vrot.slane %v2823, 1
    %v2825 = vadd.f32 %v2823, %v2824
    %v2826 = vsel %vm2716, %v2800, 0.0
    %v2827 = vrot.slane %v2826, 4
    %v2828 = vadd.f32 %v2826, %v2827
    %v2829 = vrot.slane %v2828, 2
    %v2830 = vadd.f32 %v2828, %v2829
    %v2831 = vrot.slane %v2830, 1
    %v2832 = vadd.f32 %v2830, %v2831
    %v2833 = vsel %vm2716, %v2801, 0.0
    %v2834 = vrot.slane %v2833, 4
    %v2835 = vadd.f32 %v2833, %v2834
    %v2836 = vrot.slane %v2835, 2
    %v2837 = vadd.f32 %v2835, %v2836
    %v2838 = vrot.slane %v2837, 1
    %v2839 = vadd.f32 %v2837, %v2838
    %v2840 = vsel %vm2716, %v2802, 0.0
    %v2841 = vrot.slane %v2840, 4
    %v2842 = vadd.f32 %v2840, %v2841
    %v2843 = vrot.slane %v2842, 2
    %v2844 = vadd.f32 %v2842, %v2843
    %v2845 = vrot.slane %v2844, 1
    %v2846 = vadd.f32 %v2844, %v2845
    %v2847 = vsel %vm2716, %v2803, 0.0
    %v2848 = vrot.slane %v2847, 4
    %v2849 = vadd.f32 %v2847, %v2848
    %v2850 = vrot.slane %v2849, 2
    %v2851 = vadd.f32 %v2849, %v2850
    %v2852 = vrot.slane %v2851, 1
    %v2853 = vadd.f32 %v2851, %v2852
    %v2854 = vsel %vm2716, %v2804, 0.0
    %v2855 = vrot.slane %v2854, 4
    %v2856 = vadd.f32 %v2854, %v2855
    %v2857 = vrot.slane %v2856, 2
    %v2858 = vadd.f32 %v2856, %v2857
    %v2859 = vrot.slane %v2858, 1
    %v2860 = vadd.f32 %v2858, %v2859
    %v2861 = vmul.f32 %v2811, 0.25
    %v2862 = vmul.f32 %v2818, 0.25
    %v2863 = vmul.f32 %v2825, 0.25
    %v2864 = vmul.f32 %v2832, 0.25
    %v2865 = vmul.f32 %v2839, 0.25
    %v2866 = vmul.f32 %v2846, 0.25
    %v2867 = vmul.f32 %v2853, 0.25
    %v2868 = vmul.f32 %v2860, 0.25
    %vm2869 = vcmask 65536
    %2870 = vst.msk [vmem:[#allocation4] sm:$0x1] %vm2869, %v2861
    %2871 = vst.msk [vmem:[#allocation4 + $0x1] sm:$0x1] %vm2869, %v2862
    %2872 = vst.msk [vmem:[#allocation4 + $0x2] sm:$0x1] %vm2869, %v2863
    %2873 = vst.msk [vmem:[#allocation4 + $0x3] sm:$0x1] %vm2869, %v2864
    %2874 = vst.msk [vmem:[#allocation4 + $0x4] sm:$0x1] %vm2869, %v2865
    %2875 = vst.msk [vmem:[#allocation4 + $0x5] sm:$0x1] %vm2869, %v2866
    %2876 = vst.msk [vmem:[#allocation4 + $0x6] sm:$0x1] %vm2869, %v2867
    %2877 = vst.msk [vmem:[#allocation4 + $0x7] sm:$0x1] %vm2869, %v2868
    %v2878 = vld [vmem:[#allocation3] sm:$0xff]
    %v2879 = vld [vmem:[#allocation3 + $0x8] sm:$0x1]
    %v2880 = vld [vmem:[#allocation3 + $0x10] sm:$0xff]
    %v2881 = vld [vmem:[#allocation3 + $0x18] sm:$0x1]
    %v2882 = vld [vmem:[#allocation3 + $0x20] sm:$0xff]
    %v2883 = vld [vmem:[#allocation3 + $0x28] sm:$0x1]
    %v2884 = vld [vmem:[#allocation3 + $0x30] sm:$0xff]
    %v2885 = vld [vmem:[#allocation3 + $0x38] sm:$0x1]
    %v2886 = vld [vmem:[#allocation3 + $0x40] sm:$0xff]
    %v2887 = vld [vmem:[#allocation3 + $0x48] sm:$0x1]
    %v2888 = vld [vmem:[#allocation3 + $0x50] sm:$0xff]
    %v2889 = vld [vmem:[#allocation3 + $0x58] sm:$0x1]
    %v2890 = vld [vmem:[#allocation3 + $0x60] sm:$0xff]
    %v2891 = vld [vmem:[#allocation3 + $0x68] sm:$0x1]
    %v2892 = vld [vmem:[#allocation3 + $0x70] sm:$0xff]
    %v2893 = vld [vmem:[#allocation3 + $0x78] sm:$0x1]
    %v2895 = vsel %vm2716, %v2797, 0
    %vm2897 = vcmask 1040384
    %v2899 = vsel %vm2897, %v2879, 0
    %2901 = vmatprep.subr.mxu0 0.0
    %2902 = vmatpush1.msra.mxu0 %v2878
    %2903 = vmatprep.subr.mxu0 0.0
    %2904 = vmatpush1.msra.mxu0 %v2899
    %2905 = vmatprep.subr.mxu0 0.0
    %2906 = vmatpush1.msra.mxu0 0.0
    %2907 = vmatprep.subr.mxu0 0.0
    %2908 = vmatpush1.msra.mxu0 0.0
    %2909 = vmatprep.subr.mxu0 0.0
    %2910 = vmatpush1.msra.mxu0 0.0
    %2911 = vmatprep.subr.mxu0 0.0
    %2912 = vmatpush1.msra.mxu0 0.0
    %2913 = vmatprep.subr.mxu0 0.0
    %2914 = vmatpush1.msra.mxu0 0.0
    %2915 = vmatprep.subr.mxu0 0.0
    %2916 = vmatpush1.msra.mxu0 0.0
    %2917 = vmatprep.subr.mxu0 0.0
    %2918 = vmatpush1.msra.mxu0 0.0
    %2919 = vmatprep.subr.mxu0 0.0
    %2920 = vmatpush1.msra.mxu0 0.0
    %2921 = vmatprep.subr.mxu0 0.0
    %2922 = vmatpush1.msra.mxu0 0.0
    %2923 = vmatprep.subr.mxu0 0.0
    %2924 = vmatpush1.msra.mxu0 0.0
    %2925 = vmatprep.subr.mxu0 0.0
    %2926 = vmatpush1.msra.mxu0 0.0
    %2927 = vmatprep.subr.mxu0 0.0
    %2928 = vmatpush1.msra.mxu0 0.0
    %2929 = vmatprep.subr.mxu0 0.0
    %2930 = vmatpush1.msra.mxu0 0.0
    %2931 = vmatprep.subr.mxu0 0.0
    %2932 = vmatpush1.msra.mxu0 0.0
    %2933 = vmatprep.subr.mxu0 0.0
    %2934 = vmatpush1.msra.mxu0 0.0
    %2935 = vmatprep.subr.mxu0 0.0
    %2936 = vmatpush1.msra.mxu0 0.0
    %2937 = vmatprep.subr.mxu0 0.0
    %2938 = vmatpush1.msra.mxu0 0.0
    %2939 = vmatprep.subr.mxu0 0.0
    %2940 = vmatpush1.msra.mxu0 0.0
    %2941 = vmatprep.subr.mxu0 0.0
    %2942 = vmatpush1.msra.mxu0 0.0
    %2943 = vmatprep.subr.mxu0 0.0
    %2944 = vmatpush1.msra.mxu0 0.0
    %2945 = vmatprep.subr.mxu0 0.0
    %2946 = vmatpush1.msra.mxu0 0.0
    %2947 = vmatprep.subr.mxu0 0.0
    %2948 = vmatpush1.msra.mxu0 0.0
    %2949 = vmatprep.subr.mxu0 0.0
    %2950 = vmatpush1.msra.mxu0 0.0
    %2951 = vmatprep.subr.mxu0 0.0
    %2952 = vmatpush1.msra.mxu0 0.0
    %2953 = vmatprep.subr.mxu0 0.0
    %2954 = vmatpush1.msra.mxu0 0.0
    %2955 = vmatprep.subr.mxu0 0.0
    %2956 = vmatpush1.msra.mxu0 0.0
    %2957 = vmatprep.subr.mxu0 0.0
    %2958 = vmatpush1.msra.mxu0 0.0
    %2959 = vmatprep.subr.mxu0 0.0
    %2960 = vmatpush1.msra.mxu0 0.0
    %2961 = vmatprep.subr.mxu0 0.0
    %2962 = vmatpush1.msra.mxu0 0.0
    %2963 = vmatprep.subr.mxu0 0.0
    %2964 = vmatpush1.msra.mxu0 0.0
    %2965 = vmatprep.mubr.f32.mxu0 0.0
    %2966 = vmatmul.mubr.f32.gmra.mrb[0].mxu0 %v2895
    %v2967 = vpop.f32.mrb[0].mxu0
    %v2968 = vadd.f32 0.0, %v2967
    %v2969 = vpop.f32.mrb[0].mxu0
    %2970 = vdwg.mxu0
    %v2972 = vsel %vm2716, %v2798, 0
    %v2975 = vsel %vm2897, %v2881, 0
    %2977 = vmatprep.subr.mxu0 0.0
    %2978 = vmatpush1.msra.mxu0 %v2880
    %2979 = vmatprep.subr.mxu0 0.0
    %2980 = vmatpush1.msra.mxu0 %v2975
    %2981 = vmatprep.subr.mxu0 0.0
    %2982 = vmatpush1.msra.mxu0 0.0
    %2983 = vmatprep.subr.mxu0 0.0
    %2984 = vmatpush1.msra.mxu0 0.0
    %2985 = vmatprep.subr.mxu0 0.0
    %2986 = vmatpush1.msra.mxu0 0.0
    %2987 = vmatprep.subr.mxu0 0.0
    %2988 = vmatpush1.msra.mxu0 0.0
    %2989 = vmatprep.subr.mxu0 0.0
    %2990 = vmatpush1.msra.mxu0 0.0
    %2991 = vmatprep.subr.mxu0 0.0
    %2992 = vmatpush1.msra.mxu0 0.0
    %2993 = vmatprep.subr.mxu0 0.0
    %2994 = vmatpush1.msra.mxu0 0.0
    %2995 = vmatprep.subr.mxu0 0.0
    %2996 = vmatpush1.msra.mxu0 0.0
    %2997 = vmatprep.subr.mxu0 0.0
    %2998 = vmatpush1.msra.mxu0 0.0
    %2999 = vmatprep.subr.mxu0 0.0
    %3000 = vmatpush1.msra.mxu0 0.0
    %3001 = vmatprep.subr.mxu0 0.0
    %3002 = vmatpush1.msra.mxu0 0.0
    %3003 = vmatprep.subr.mxu0 0.0
    %3004 = vmatpush1.msra.mxu0 0.0
    %3005 = vmatprep.subr.mxu0 0.0
    %3006 = vmatpush1.msra.mxu0 0.0
    %3007 = vmatprep.subr.mxu0 0.0
    %3008 = vmatpush1.msra.mxu0 0.0
    %3009 = vmatprep.subr.mxu0 0.0
    %3010 = vmatpush1.msra.mxu0 0.0
    %3011 = vmatprep.subr.mxu0 0.0
    %3012 = vmatpush1.msra.mxu0 0.0
    %3013 = vmatprep.subr.mxu0 0.0
    %3014 = vmatpush1.msra.mxu0 0.0
    %3015 = vmatprep.subr.mxu0 0.0
    %3016 = vmatpush1.msra.mxu0 0.0
    %3017 = vmatprep.subr.mxu0 0.0
    %3018 = vmatpush1.msra.mxu0 0.0
    %3019 = vmatprep.subr.mxu0 0.0
    %3020 = vmatpush1.msra.mxu0 0.0
    %3021 = vmatprep.subr.mxu0 0.0
    %3022 = vmatpush1.msra.mxu0 0.0
    %3023 = vmatprep.subr.mxu0 0.0
    %3024 = vmatpush1.msra.mxu0 0.0
    %3025 = vmatprep.subr.mxu0 0.0
    %3026 = vmatpush1.msra.mxu0 0.0
    %3027 = vmatprep.subr.mxu0 0.0
    %3028 = vmatpush1.msra.mxu0 0.0
    %3029 = vmatprep.subr.mxu0 0.0
    %3030 = vmatpush1.msra.mxu0 0.0
    %3031 = vmatprep.subr.mxu0 0.0
    %3032 = vmatpush1.msra.mxu0 0.0
    %3033 = vmatprep.subr.mxu0 0.0
    %3034 = vmatpush1.msra.mxu0 0.0
    %3035 = vmatprep.subr.mxu0 0.0
    %3036 = vmatpush1.msra.mxu0 0.0
    %3037 = vmatprep.subr.mxu0 0.0
    %3038 = vmatpush1.msra.mxu0 0.0
    %3039 = vmatprep.subr.mxu0 0.0
    %3040 = vmatpush1.msra.mxu0 0.0
    %3041 = vmatprep.mubr.f32.mxu0 0.0
    %3042 = vmatmul.mubr.f32.gmra.mrb[0].mxu0 %v2972
    %v3043 = vpop.f32.mrb[0].mxu0
    %v3044 = vadd.f32 0.0, %v3043
    %v3045 = vpop.f32.mrb[0].mxu0
    %3046 = vdwg.mxu0
    %v3048 = vsel %vm2716, %v2799, 0
    %v3051 = vsel %vm2897, %v2883, 0
    %3053 = vmatprep.subr.mxu0 0.0
    %3054 = vmatpush1.msra.mxu0 %v2882
    %3055 = vmatprep.subr.mxu0 0.0
    %3056 = vmatpush1.msra.mxu0 %v3051
    %3057 = vmatprep.subr.mxu0 0.0
    %3058 = vmatpush1.msra.mxu0 0.0
    %3059 = vmatprep.subr.mxu0 0.0
    %3060 = vmatpush1.msra.mxu0 0.0
    %3061 = vmatprep.subr.mxu0 0.0
    %3062 = vmatpush1.msra.mxu0 0.0
    %3063 = vmatprep.subr.mxu0 0.0
    %3064 = vmatpush1.msra.mxu0 0.0
    %3065 = vmatprep.subr.mxu0 0.0
    %3066 = vmatpush1.msra.mxu0 0.0
    %3067 = vmatprep.subr.mxu0 0.0
    %3068 = vmatpush1.msra.mxu0 0.0
    %3069 = vmatprep.subr.mxu0 0.0
    %3070 = vmatpush1.msra.mxu0 0.0
    %3071 = vmatprep.subr.mxu0 0.0
    %3072 = vmatpush1.msra.mxu0 0.0
    %3073 = vmatprep.subr.mxu0 0.0
    %3074 = vmatpush1.msra.mxu0 0.0
    %3075 = vmatprep.subr.mxu0 0.0
    %3076 = vmatpush1.msra.mxu0 0.0
    %3077 = vmatprep.subr.mxu0 0.0
    %3078 = vmatpush1.msra.mxu0 0.0
    %3079 = vmatprep.subr.mxu0 0.0
    %3080 = vmatpush1.msra.mxu0 0.0
    %3081 = vmatprep.subr.mxu0 0.0
    %3082 = vmatpush1.msra.mxu0 0.0
    %3083 = vmatprep.subr.mxu0 0.0
    %3084 = vmatpush1.msra.mxu0 0.0
    %3085 = vmatprep.subr.mxu0 0.0
    %3086 = vmatpush1.msra.mxu0 0.0
    %3087 = vmatprep.subr.mxu0 0.0
    %3088 = vmatpush1.msra.mxu0 0.0
    %3089 = vmatprep.subr.mxu0 0.0
    %3090 = vmatpush1.msra.mxu0 0.0
    %3091 = vmatprep.subr.mxu0 0.0
    %3092 = vmatpush1.msra.mxu0 0.0
    %3093 = vmatprep.subr.mxu0 0.0
    %3094 = vmatpush1.msra.mxu0 0.0
    %3095 = vmatprep.subr.mxu0 0.0
    %3096 = vmatpush1.msra.mxu0 0.0
    %3097 = vmatprep.subr.mxu0 0.0
    %3098 = vmatpush1.msra.mxu0 0.0
    %3099 = vmatprep.subr.mxu0 0.0
    %3100 = vmatpush1.msra.mxu0 0.0
    %3101 = vmatprep.subr.mxu0 0.0
    %3102 = vmatpush1.msra.mxu0 0.0
    %3103 = vmatprep.subr.mxu0 0.0
    %3104 = vmatpush1.msra.mxu0 0.0
    %3105 = vmatprep.subr.mxu0 0.0
    %3106 = vmatpush1.msra.mxu0 0.0
    %3107 = vmatprep.subr.mxu0 0.0
    %3108 = vmatpush1.msra.mxu0 0.0
    %3109 = vmatprep.subr.mxu0 0.0
    %3110 = vmatpush1.msra.mxu0 0.0
    %3111 = vmatprep.subr.mxu0 0.0
    %3112 = vmatpush1.msra.mxu0 0.0
    %3113 = vmatprep.subr.mxu0 0.0
    %3114 = vmatpush1.msra.mxu0 0.0
    %3115 = vmatprep.subr.mxu0 0.0
    %3116 = vmatpush1.msra.mxu0 0.0
    %3117 = vmatprep.mubr.f32.mxu0 0.0
    %3118 = vmatmul.mubr.f32.gmra.mrb[0].mxu0 %v3048
    %v3119 = vpop.f32.mrb[0].mxu0
    %v3120 = vadd.f32 0.0, %v3119
    %v3121 = vpop.f32.mrb[0].mxu0
    %3122 = vdwg.mxu0
    %v3124 = vsel %vm2716, %v2800, 0
    %v3127 = vsel %vm2897, %v2885, 0
    %3129 = vmatprep.subr.mxu0 0.0
    %3130 = vmatpush1.msra.mxu0 %v2884
    %3131 = vmatprep.subr.mxu0 0.0
    %3132 = vmatpush1.msra.mxu0 %v3127
    %3133 = vmatprep.subr.mxu0 0.0
    %3134 = vmatpush1.msra.mxu0 0.0
    %3135 = vmatprep.subr.mxu0 0.0
    %3136 = vmatpush1.msra.mxu0 0.0
    %3137 = vmatprep.subr.mxu0 0.0
    %3138 = vmatpush1.msra.mxu0 0.0
    %3139 = vmatprep.subr.mxu0 0.0
    %3140 = vmatpush1.msra.mxu0 0.0
    %3141 = vmatprep.subr.mxu0 0.0
    %3142 = vmatpush1.msra.mxu0 0.0
    %3143 = vmatprep.subr.mxu0 0.0
    %3144 = vmatpush1.msra.mxu0 0.0
    %3145 = vmatprep.subr.mxu0 0.0
    %3146 = vmatpush1.msra.mxu0 0.0
    %3147 = vmatprep.subr.mxu0 0.0
    %3148 = vmatpush1.msra.mxu0 0.0
    %3149 = vmatprep.subr.mxu0 0.0
    %3150 = vmatpush1.msra.mxu0 0.0
    %3151 = vmatprep.subr.mxu0 0.0
    %3152 = vmatpush1.msra.mxu0 0.0
    %3153 = vmatprep.subr.mxu0 0.0
    %3154 = vmatpush1.msra.mxu0 0.0
    %3155 = vmatprep.subr.mxu0 0.0
    %3156 = vmatpush1.msra.mxu0 0.0
    %3157 = vmatprep.subr.mxu0 0.0
    %3158 = vmatpush1.msra.mxu0 0.0
    %3159 = vmatprep.subr.mxu0 0.0
    %3160 = vmatpush1.msra.mxu0 0.0
    %3161 = vmatprep.subr.mxu0 0.0
    %3162 = vmatpush1.msra.mxu0 0.0
    %3163 = vmatprep.subr.mxu0 0.0
    %3164 = vmatpush1.msra.mxu0 0.0
    %3165 = vmatprep.subr.mxu0 0.0
    %3166 = vmatpush1.msra.mxu0 0.0
    %3167 = vmatprep.subr.mxu0 0.0
    %3168 = vmatpush1.msra.mxu0 0.0
    %3169 = vmatprep.subr.mxu0 0.0
    %3170 = vmatpush1.msra.mxu0 0.0
    %3171 = vmatprep.subr.mxu0 0.0
    %3172 = vmatpush1.msra.mxu0 0.0
    %3173 = vmatprep.subr.mxu0 0.0
    %3174 = vmatpush1.msra.mxu0 0.0
    %3175 = vmatprep.subr.mxu0 0.0
    %3176 = vmatpush1.msra.mxu0 0.0
    %3177 = vmatprep.subr.mxu0 0.0
    %3178 = vmatpush1.msra.mxu0 0.0
    %3179 = vmatprep.subr.mxu0 0.0
    %3180 = vmatpush1.msra.mxu0 0.0
    %3181 = vmatprep.subr.mxu0 0.0
    %3182 = vmatpush1.msra.mxu0 0.0
    %3183 = vmatprep.subr.mxu0 0.0
    %3184 = vmatpush1.msra.mxu0 0.0
    %3185 = vmatprep.subr.mxu0 0.0
    %3186 = vmatpush1.msra.mxu0 0.0
    %3187 = vmatprep.subr.mxu0 0.0
    %3188 = vmatpush1.msra.mxu0 0.0
    %3189 = vmatprep.subr.mxu0 0.0
    %3190 = vmatpush1.msra.mxu0 0.0
    %3191 = vmatprep.subr.mxu0 0.0
    %3192 = vmatpush1.msra.mxu0 0.0
    %3193 = vmatprep.mubr.f32.mxu0 0.0
    %3194 = vmatmul.mubr.f32.gmra.mrb[0].mxu0 %v3124
    %v3195 = vpop.f32.mrb[0].mxu0
    %v3196 = vadd.f32 0.0, %v3195
    %v3197 = vpop.f32.mrb[0].mxu0
    %3198 = vdwg.mxu0
    %v3200 = vsel %vm2716, %v2801, 0
    %v3203 = vsel %vm2897, %v2887, 0
    %3205 = vmatprep.subr.mxu0 0.0
    %3206 = vmatpush1.msra.mxu0 %v2886
    %3207 = vmatprep.subr.mxu0 0.0
    %3208 = vmatpush1.msra.mxu0 %v3203
    %3209 = vmatprep.subr.mxu0 0.0
    %3210 = vmatpush1.msra.mxu0 0.0
    %3211 = vmatprep.subr.mxu0 0.0
    %3212 = vmatpush1.msra.mxu0 0.0
    %3213 = vmatprep.subr.mxu0 0.0
    %3214 = vmatpush1.msra.mxu0 0.0
    %3215 = vmatprep.subr.mxu0 0.0
    %3216 = vmatpush1.msra.mxu0 0.0
    %3217 = vmatprep.subr.mxu0 0.0
    %3218 = vmatpush1.msra.mxu0 0.0
    %3219 = vmatprep.subr.mxu0 0.0
    %3220 = vmatpush1.msra.mxu0 0.0
    %3221 = vmatprep.subr.mxu0 0.0
    %3222 = vmatpush1.msra.mxu0 0.0
    %3223 = vmatprep.subr.mxu0 0.0
    %3224 = vmatpush1.msra.mxu0 0.0
    %3225 = vmatprep.subr.mxu0 0.0
    %3226 = vmatpush1.msra.mxu0 0.0
    %3227 = vmatprep.subr.mxu0 0.0
    %3228 = vmatpush1.msra.mxu0 0.0
    %3229 = vmatprep.subr.mxu0 0.0
    %3230 = vmatpush1.msra.mxu0 0.0
    %3231 = vmatprep.subr.mxu0 0.0
    %3232 = vmatpush1.msra.mxu0 0.0
    %3233 = vmatprep.subr.mxu0 0.0
    %3234 = vmatpush1.msra.mxu0 0.0
    %3235 = vmatprep.subr.mxu0 0.0
    %3236 = vmatpush1.msra.mxu0 0.0
    %3237 = vmatprep.subr.mxu0 0.0
    %3238 = vmatpush1.msra.mxu0 0.0
    %3239 = vmatprep.subr.mxu0 0.0
    %3240 = vmatpush1.msra.mxu0 0.0
    %3241 = vmatprep.subr.mxu0 0.0
    %3242 = vmatpush1.msra.mxu0 0.0
    %3243 = vmatprep.subr.mxu0 0.0
    %3244 = vmatpush1.msra.mxu0 0.0
    %3245 = vmatprep.subr.mxu0 0.0
    %3246 = vmatpush1.msra.mxu0 0.0
    %3247 = vmatprep.subr.mxu0 0.0
    %3248 = vmatpush1.msra.mxu0 0.0
    %3249 = vmatprep.subr.mxu0 0.0
    %3250 = vmatpush1.msra.mxu0 0.0
    %3251 = vmatprep.subr.mxu0 0.0
    %3252 = vmatpush1.msra.mxu0 0.0
    %3253 = vmatprep.subr.mxu0 0.0
    %3254 = vmatpush1.msra.mxu0 0.0
    %3255 = vmatprep.subr.mxu0 0.0
    %3256 = vmatpush1.msra.mxu0 0.0
    %3257 = vmatprep.subr.mxu0 0.0
    %3258 = vmatpush1.msra.mxu0 0.0
    %3259 = vmatprep.subr.mxu0 0.0
    %3260 = vmatpush1.msra.mxu0 0.0
    %3261 = vmatprep.subr.mxu0 0.0
    %3262 = vmatpush1.msra.mxu0 0.0
    %3263 = vmatprep.subr.mxu0 0.0
    %3264 = vmatpush1.msra.mxu0 0.0
    %3265 = vmatprep.subr.mxu0 0.0
    %3266 = vmatpush1.msra.mxu0 0.0
    %3267 = vmatprep.subr.mxu0 0.0
    %3268 = vmatpush1.msra.mxu0 0.0
    %3269 = vmatprep.mubr.f32.mxu0 0.0
    %3270 = vmatmul.mubr.f32.gmra.mrb[0].mxu0 %v3200
    %v3271 = vpop.f32.mrb[0].mxu0
    %v3272 = vadd.f32 0.0, %v3271
    %v3273 = vpop.f32.mrb[0].mxu0
    %3274 = vdwg.mxu0
    %v3276 = vsel %vm2716, %v2802, 0
    %v3279 = vsel %vm2897, %v2889, 0
    %3281 = vmatprep.subr.mxu0 0.0
    %3282 = vmatpush1.msra.mxu0 %v2888
    %3283 = vmatprep.subr.mxu0 0.0
    %3284 = vmatpush1.msra.mxu0 %v3279
    %3285 = vmatprep.subr.mxu0 0.0
    %3286 = vmatpush1.msra.mxu0 0.0
    %3287 = vmatprep.subr.mxu0 0.0
    %3288 = vmatpush1.msra.mxu0 0.0
    %3289 = vmatprep.subr.mxu0 0.0
    %3290 = vmatpush1.msra.mxu0 0.0
    %3291 = vmatprep.subr.mxu0 0.0
    %3292 = vmatpush1.msra.mxu0 0.0
    %3293 = vmatprep.subr.mxu0 0.0
    %3294 = vmatpush1.msra.mxu0 0.0
    %3295 = vmatprep.subr.mxu0 0.0
    %3296 = vmatpush1.msra.mxu0 0.0
    %3297 = vmatprep.subr.mxu0 0.0
    %3298 = vmatpush1.msra.mxu0 0.0
    %3299 = vmatprep.subr.mxu0 0.0
    %3300 = vmatpush1.msra.mxu0 0.0
    %3301 = vmatprep.subr.mxu0 0.0
    %3302 = vmatpush1.msra.mxu0 0.0
    %3303 = vmatprep.subr.mxu0 0.0
    %3304 = vmatpush1.msra.mxu0 0.0
    %3305 = vmatprep.subr.mxu0 0.0
    %3306 = vmatpush1.msra.mxu0 0.0
    %3307 = vmatprep.subr.mxu0 0.0
    %3308 = vmatpush1.msra.mxu0 0.0
    %3309 = vmatprep.subr.mxu0 0.0
    %3310 = vmatpush1.msra.mxu0 0.0
    %3311 = vmatprep.subr.mxu0 0.0
    %3312 = vmatpush1.msra.mxu0 0.0
    %3313 = vmatprep.subr.mxu0 0.0
    %3314 = vmatpush1.msra.mxu0 0.0
    %3315 = vmatprep.subr.mxu0 0.0
    %3316 = vmatpush1.msra.mxu0 0.0
    %3317 = vmatprep.subr.mxu0 0.0
    %3318 = vmatpush1.msra.mxu0 0.0
    %3319 = vmatprep.subr.mxu0 0.0
    %3320 = vmatpush1.msra.mxu0 0.0
    %3321 = vmatprep.subr.mxu0 0.0
    %3322 = vmatpush1.msra.mxu0 0.0
    %3323 = vmatprep.subr.mxu0 0.0
    %3324 = vmatpush1.msra.mxu0 0.0
    %3325 = vmatprep.subr.mxu0 0.0
    %3326 = vmatpush1.msra.mxu0 0.0
    %3327 = vmatprep.subr.mxu0 0.0
    %3328 = vmatpush1.msra.mxu0 0.0
    %3329 = vmatprep.subr.mxu0 0.0
    %3330 = vmatpush1.msra.mxu0 0.0
    %3331 = vmatprep.subr.mxu0 0.0
    %3332 = vmatpush1.msra.mxu0 0.0
    %3333 = vmatprep.subr.mxu0 0.0
    %3334 = vmatpush1.msra.mxu0 0.0
    %3335 = vmatprep.subr.mxu0 0.0
    %3336 = vmatpush1.msra.mxu0 0.0
    %3337 = vmatprep.subr.mxu0 0.0
    %3338 = vmatpush1.msra.mxu0 0.0
    %3339 = vmatprep.subr.mxu0 0.0
    %3340 = vmatpush1.msra.mxu0 0.0
    %3341 = vmatprep.subr.mxu0 0.0
    %3342 = vmatpush1.msra.mxu0 0.0
    %3343 = vmatprep.subr.mxu0 0.0
    %3344 = vmatpush1.msra.mxu0 0.0
    %3345 = vmatprep.mubr.f32.mxu0 0.0
    %3346 = vmatmul.mubr.f32.gmra.mrb[0].mxu0 %v3276
    %v3347 = vpop.f32.mrb[0].mxu0
    %v3348 = vadd.f32 0.0, %v3347
    %v3349 = vpop.f32.mrb[0].mxu0
    %3350 = vdwg.mxu0
    %v3352 = vsel %vm2716, %v2803, 0
    %v3355 = vsel %vm2897, %v2891, 0
    %3357 = vmatprep.subr.mxu0 0.0
    %3358 = vmatpush1.msra.mxu0 %v2890
    %3359 = vmatprep.subr.mxu0 0.0
    %3360 = vmatpush1.msra.mxu0 %v3355
    %3361 = vmatprep.subr.mxu0 0.0
    %3362 = vmatpush1.msra.mxu0 0.0
    %3363 = vmatprep.subr.mxu0 0.0
    %3364 = vmatpush1.msra.mxu0 0.0
    %3365 = vmatprep.subr.mxu0 0.0
    %3366 = vmatpush1.msra.mxu0 0.0
    %3367 = vmatprep.subr.mxu0 0.0
    %3368 = vmatpush1.msra.mxu0 0.0
    %3369 = vmatprep.subr.mxu0 0.0
    %3370 = vmatpush1.msra.mxu0 0.0
    %3371 = vmatprep.subr.mxu0 0.0
    %3372 = vmatpush1.msra.mxu0 0.0
    %3373 = vmatprep.subr.mxu0 0.0
    %3374 = vmatpush1.msra.mxu0 0.0
    %3375 = vmatprep.subr.mxu0 0.0
    %3376 = vmatpush1.msra.mxu0 0.0
    %3377 = vmatprep.subr.mxu0 0.0
    %3378 = vmatpush1.msra.mxu0 0.0
    %3379 = vmatprep.subr.mxu0 0.0
    %3380 = vmatpush1.msra.mxu0 0.0
    %3381 = vmatprep.subr.mxu0 0.0
    %3382 = vmatpush1.msra.mxu0 0.0
    %3383 = vmatprep.subr.mxu0 0.0
    %3384 = vmatpush1.msra.mxu0 0.0
    %3385 = vmatprep.subr.mxu0 0.0
    %3386 = vmatpush1.msra.mxu0 0.0
    %3387 = vmatprep.subr.mxu0 0.0
    %3388 = vmatpush1.msra.mxu0 0.0
    %3389 = vmatprep.subr.mxu0 0.0
    %3390 = vmatpush1.msra.mxu0 0.0
    %3391 = vmatprep.subr.mxu0 0.0
    %3392 = vmatpush1.msra.mxu0 0.0
    %3393 = vmatprep.subr.mxu0 0.0
    %3394 = vmatpush1.msra.mxu0 0.0
    %3395 = vmatprep.subr.mxu0 0.0
    %3396 = vmatpush1.msra.mxu0 0.0
    %3397 = vmatprep.subr.mxu0 0.0
    %3398 = vmatpush1.msra.mxu0 0.0
    %3399 = vmatprep.subr.mxu0 0.0
    %3400 = vmatpush1.msra.mxu0 0.0
    %3401 = vmatprep.subr.mxu0 0.0
    %3402 = vmatpush1.msra.mxu0 0.0
    %3403 = vmatprep.subr.mxu0 0.0
    %3404 = vmatpush1.msra.mxu0 0.0
    %3405 = vmatprep.subr.mxu0 0.0
    %3406 = vmatpush1.msra.mxu0 0.0
    %3407 = vmatprep.subr.mxu0 0.0
    %3408 = vmatpush1.msra.mxu0 0.0
    %3409 = vmatprep.subr.mxu0 0.0
    %3410 = vmatpush1.msra.mxu0 0.0
    %3411 = vmatprep.subr.mxu0 0.0
    %3412 = vmatpush1.msra.mxu0 0.0
    %3413 = vmatprep.subr.mxu0 0.0
    %3414 = vmatpush1.msra.mxu0 0.0
    %3415 = vmatprep.subr.mxu0 0.0
    %3416 = vmatpush1.msra.mxu0 0.0
    %3417 = vmatprep.subr.mxu0 0.0
    %3418 = vmatpush1.msra.mxu0 0.0
    %3419 = vmatprep.subr.mxu0 0.0
    %3420 = vmatpush1.msra.mxu0 0.0
    %3421 = vmatprep.mubr.f32.mxu0 0.0
    %3422 = vmatmul.mubr.f32.gmra.mrb[0].mxu0 %v3352
    %v3423 = vpop.f32.mrb[0].mxu0
    %v3424 = vadd.f32 0.0, %v3423
    %v3425 = vpop.f32.mrb[0].mxu0
    %3426 = vdwg.mxu0
    %v3428 = vsel %vm2716, %v2804, 0
    %v3431 = vsel %vm2897, %v2893, 0
    %3433 = vmatprep.subr.mxu0 0.0
    %3434 = vmatpush1.msra.mxu0 %v2892
    %3435 = vmatprep.subr.mxu0 0.0
    %3436 = vmatpush1.msra.mxu0 %v3431
    %3437 = vmatprep.subr.mxu0 0.0
    %3438 = vmatpush1.msra.mxu0 0.0
    %3439 = vmatprep.subr.mxu0 0.0
    %3440 = vmatpush1.msra.mxu0 0.0
    %3441 = vmatprep.subr.mxu0 0.0
    %3442 = vmatpush1.msra.mxu0 0.0
    %3443 = vmatprep.subr.mxu0 0.0
    %3444 = vmatpush1.msra.mxu0 0.0
    %3445 = vmatprep.subr.mxu0 0.0
    %3446 = vmatpush1.msra.mxu0 0.0
    %3447 = vmatprep.subr.mxu0 0.0
    %3448 = vmatpush1.msra.mxu0 0.0
    %3449 = vmatprep.subr.mxu0 0.0
    %3450 = vmatpush1.msra.mxu0 0.0
    %3451 = vmatprep.subr.mxu0 0.0
    %3452 = vmatpush1.msra.mxu0 0.0
    %3453 = vmatprep.subr.mxu0 0.0
    %3454 = vmatpush1.msra.mxu0 0.0
    %3455 = vmatprep.subr.mxu0 0.0
    %3456 = vmatpush1.msra.mxu0 0.0
    %3457 = vmatprep.subr.mxu0 0.0
    %3458 = vmatpush1.msra.mxu0 0.0
    %3459 = vmatprep.subr.mxu0 0.0
    %3460 = vmatpush1.msra.mxu0 0.0
    %3461 = vmatprep.subr.mxu0 0.0
    %3462 = vmatpush1.msra.mxu0 0.0
    %3463 = vmatprep.subr.mxu0 0.0
    %3464 = vmatpush1.msra.mxu0 0.0
    %3465 = vmatprep.subr.mxu0 0.0
    %3466 = vmatpush1.msra.mxu0 0.0
    %3467 = vmatprep.subr.mxu0 0.0
    %3468 = vmatpush1.msra.mxu0 0.0
    %3469 = vmatprep.subr.mxu0 0.0
    %3470 = vmatpush1.msra.mxu0 0.0
    %3471 = vmatprep.subr.mxu0 0.0
    %3472 = vmatpush1.msra.mxu0 0.0
    %3473 = vmatprep.subr.mxu0 0.0
    %3474 = vmatpush1.msra.mxu0 0.0
    %3475 = vmatprep.subr.mxu0 0.0
    %3476 = vmatpush1.msra.mxu0 0.0
    %3477 = vmatprep.subr.mxu0 0.0
    %3478 = vmatpush1.msra.mxu0 0.0
    %3479 = vmatprep.subr.mxu0 0.0
    %3480 = vmatpush1.msra.mxu0 0.0
    %3481 = vmatprep.subr.mxu0 0.0
    %3482 = vmatpush1.msra.mxu0 0.0
    %3483 = vmatprep.subr.mxu0 0.0
    %3484 = vmatpush1.msra.mxu0 0.0
    %3485 = vmatprep.subr.mxu0 0.0
    %3486 = vmatpush1.msra.mxu0 0.0
    %3487 = vmatprep.subr.mxu0 0.0
    %3488 = vmatpush1.msra.mxu0 0.0
    %3489 = vmatprep.subr.mxu0 0.0
    %3490 = vmatpush1.msra.mxu0 0.0
    %3491 = vmatprep.subr.mxu0 0.0
    %3492 = vmatpush1.msra.mxu0 0.0
    %3493 = vmatprep.subr.mxu0 0.0
    %3494 = vmatpush1.msra.mxu0 0.0
    %3495 = vmatprep.subr.mxu0 0.0
    %3496 = vmatpush1.msra.mxu0 0.0
    %3497 = vmatprep.mubr.f32.mxu0 0.0
    %3498 = vmatmul.mubr.f32.gmra.mrb[0].mxu0 %v3428
    %v3499 = vpop.f32.mrb[0].mxu0
    %v3500 = vadd.f32 0.0, %v3499
    %v3501 = vpop.f32.mrb[0].mxu0
    %3502 = vdwg.mxu0
    %v3503 = vld [vmem:[%s9] sm:$0xff]
    %v3504 = vld [vmem:[%s9 + $0x8] sm:$0xff]
    %v3505 = vld [vmem:[%s9 + $0x10] sm:$0xff]
    %v3506 = vld [vmem:[%s9 + $0x18] sm:$0xff]
    %v3507 = vld [vmem:[%s9 + $0x20] sm:$0xff]
    %v3508 = vld [vmem:[%s9 + $0x28] sm:$0xff]
    %v3509 = vld [vmem:[%s9 + $0x30] sm:$0xff]
    %v3510 = vld [vmem:[%s9 + $0x38] sm:$0xff]
    %v3512 = vsel %vm2018, %v2968, 0
    %3514 = vmatprep.subr.mxu0 0.0
    %3515 = vmatpush1.msra.mxu0 %v3503
    %3516 = vmatprep.subr.mxu0 0.0
    %3517 = vmatpush1.msra.mxu0 0.0
    %3518 = vmatprep.subr.mxu0 0.0
    %3519 = vmatpush1.msra.mxu0 0.0
    %3520 = vmatprep.subr.mxu0 0.0
    %3521 = vmatpush1.msra.mxu0 0.0
    %3522 = vmatprep.subr.mxu0 0.0
    %3523 = vmatpush1.msra.mxu0 0.0
    %3524 = vmatprep.subr.mxu0 0.0
    %3525 = vmatpush1.msra.mxu0 0.0
    %3526 = vmatprep.subr.mxu0 0.0
    %3527 = vmatpush1.msra.mxu0 0.0
    %3528 = vmatprep.subr.mxu0 0.0
    %3529 = vmatpush1.msra.mxu0 0.0
    %3530 = vmatprep.subr.mxu0 0.0
    %3531 = vmatpush1.msra.mxu0 0.0
    %3532 = vmatprep.subr.mxu0 0.0
    %3533 = vmatpush1.msra.mxu0 0.0
    %3534 = vmatprep.subr.mxu0 0.0
    %3535 = vmatpush1.msra.mxu0 0.0
    %3536 = vmatprep.subr.mxu0 0.0
    %3537 = vmatpush1.msra.mxu0 0.0
    %3538 = vmatprep.subr.mxu0 0.0
    %3539 = vmatpush1.msra.mxu0 0.0
    %3540 = vmatprep.subr.mxu0 0.0
    %3541 = vmatpush1.msra.mxu0 0.0
    %3542 = vmatprep.subr.mxu0 0.0
    %3543 = vmatpush1.msra.mxu0 0.0
    %3544 = vmatprep.subr.mxu0 0.0
    %3545 = vmatpush1.msra.mxu0 0.0
    %3546 = vmatprep.subr.mxu0 0.0
    %3547 = vmatpush1.msra.mxu0 0.0
    %3548 = vmatprep.subr.mxu0 0.0
    %3549 = vmatpush1.msra.mxu0 0.0
    %3550 = vmatprep.subr.mxu0 0.0
    %3551 = vmatpush1.msra.mxu0 0.0
    %3552 = vmatprep.subr.mxu0 0.0
    %3553 = vmatpush1.msra.mxu0 0.0
    %3554 = vmatprep.subr.mxu0 0.0
    %3555 = vmatpush1.msra.mxu0 0.0
    %3556 = vmatprep.subr.mxu0 0.0
    %3557 = vmatpush1.msra.mxu0 0.0
    %3558 = vmatprep.subr.mxu0 0.0
    %3559 = vmatpush1.msra.mxu0 0.0
    %3560 = vmatprep.subr.mxu0 0.0
    %3561 = vmatpush1.msra.mxu0 0.0
    %3562 = vmatprep.subr.mxu0 0.0
    %3563 = vmatpush1.msra.mxu0 0.0
    %3564 = vmatprep.subr.mxu0 0.0
    %3565 = vmatpush1.msra.mxu0 0.0
    %3566 = vmatprep.subr.mxu0 0.0
    %3567 = vmatpush1.msra.mxu0 0.0
    %3568 = vmatprep.subr.mxu0 0.0
    %3569 = vmatpush1.msra.mxu0 0.0
    %3570 = vmatprep.subr.mxu0 0.0
    %3571 = vmatpush1.msra.mxu0 0.0
    %3572 = vmatprep.subr.mxu0 0.0
    %3573 = vmatpush1.msra.mxu0 0.0
    %3574 = vmatprep.subr.mxu0 0.0
    %3575 = vmatpush1.msra.mxu0 0.0
    %3576 = vmatprep.subr.mxu0 0.0
    %3577 = vmatpush1.msra.mxu0 0.0
    %3578 = vmatprep.mubr.f32.mxu0 0.0
    %3579 = vmatmul.mubr.f32.gmra.mrb[0].mxu0 %v3512
    %v3580 = vpop.f32.mrb[0].mxu0
    %v3581 = vadd.f32 0.0, %v3580
    %v3582 = vpop.f32.mrb[0].mxu0
    %3583 = vdwg.mxu0
    %v3585 = vsel %vm2018, %v3044, 0
    %3587 = vmatprep.subr.mxu0 0.0
    %3588 = vmatpush1.msra.mxu0 %v3504
    %3589 = vmatprep.subr.mxu0 0.0
    %3590 = vmatpush1.msra.mxu0 0.0
    %3591 = vmatprep.subr.mxu0 0.0
    %3592 = vmatpush1.msra.mxu0 0.0
    %3593 = vmatprep.subr.mxu0 0.0
    %3594 = vmatpush1.msra.mxu0 0.0
    %3595 = vmatprep.subr.mxu0 0.0
    %3596 = vmatpush1.msra.mxu0 0.0
    %3597 = vmatprep.subr.mxu0 0.0
    %3598 = vmatpush1.msra.mxu0 0.0
    %3599 = vmatprep.subr.mxu0 0.0
    %3600 = vmatpush1.msra.mxu0 0.0
    %3601 = vmatprep.subr.mxu0 0.0
    %3602 = vmatpush1.msra.mxu0 0.0
    %3603 = vmatprep.subr.mxu0 0.0
    %3604 = vmatpush1.msra.mxu0 0.0
    %3605 = vmatprep.subr.mxu0 0.0
    %3606 = vmatpush1.msra.mxu0 0.0
    %3607 = vmatprep.subr.mxu0 0.0
    %3608 = vmatpush1.msra.mxu0 0.0
    %3609 = vmatprep.subr.mxu0 0.0
    %3610 = vmatpush1.msra.mxu0 0.0
    %3611 = vmatprep.subr.mxu0 0.0
    %3612 = vmatpush1.msra.mxu0 0.0
    %3613 = vmatprep.subr.mxu0 0.0
    %3614 = vmatpush1.msra.mxu0 0.0
    %3615 = vmatprep.subr.mxu0 0.0
    %3616 = vmatpush1.msra.mxu0 0.0
    %3617 = vmatprep.subr.mxu0 0.0
    %3618 = vmatpush1.msra.mxu0 0.0
    %3619 = vmatprep.subr.mxu0 0.0
    %3620 = vmatpush1.msra.mxu0 0.0
    %3621 = vmatprep.subr.mxu0 0.0
    %3622 = vmatpush1.msra.mxu0 0.0
    %3623 = vmatprep.subr.mxu0 0.0
    %3624 = vmatpush1.msra.mxu0 0.0
    %3625 = vmatprep.subr.mxu0 0.0
    %3626 = vmatpush1.msra.mxu0 0.0
    %3627 = vmatprep.subr.mxu0 0.0
    %3628 = vmatpush1.msra.mxu0 0.0
    %3629 = vmatprep.subr.mxu0 0.0
    %3630 = vmatpush1.msra.mxu0 0.0
    %3631 = vmatprep.subr.mxu0 0.0
    %3632 = vmatpush1.msra.mxu0 0.0
    %3633 = vmatprep.subr.mxu0 0.0
    %3634 = vmatpush1.msra.mxu0 0.0
    %3635 = vmatprep.subr.mxu0 0.0
    %3636 = vmatpush1.msra.mxu0 0.0
    %3637 = vmatprep.subr.mxu0 0.0
    %3638 = vmatpush1.msra.mxu0 0.0
    %3639 = vmatprep.subr.mxu0 0.0
    %3640 = vmatpush1.msra.mxu0 0.0
    %3641 = vmatprep.subr.mxu0 0.0
    %3642 = vmatpush1.msra.mxu0 0.0
    %3643 = vmatprep.subr.mxu0 0.0
    %3644 = vmatpush1.msra.mxu0 0.0
    %3645 = vmatprep.subr.mxu0 0.0
    %3646 = vmatpush1.msra.mxu0 0.0
    %3647 = vmatprep.subr.mxu0 0.0
    %3648 = vmatpush1.msra.mxu0 0.0
    %3649 = vmatprep.subr.mxu0 0.0
    %3650 = vmatpush1.msra.mxu0 0.0
    %3651 = vmatprep.mubr.f32.mxu0 0.0
    %3652 = vmatmul.mubr.f32.gmra.mrb[0].mxu0 %v3585
    %v3653 = vpop.f32.mrb[0].mxu0
    %v3654 = vadd.f32 0.0, %v3653
    %v3655 = vpop.f32.mrb[0].mxu0
    %3656 = vdwg.mxu0
    %v3658 = vsel %vm2018, %v3120, 0
    %3660 = vmatprep.subr.mxu0 0.0
    %3661 = vmatpush1.msra.mxu0 %v3505
    %3662 = vmatprep.subr.mxu0 0.0
    %3663 = vmatpush1.msra.mxu0 0.0
    %3664 = vmatprep.subr.mxu0 0.0
    %3665 = vmatpush1.msra.mxu0 0.0
    %3666 = vmatprep.subr.mxu0 0.0
    %3667 = vmatpush1.msra.mxu0 0.0
    %3668 = vmatprep.subr.mxu0 0.0
    %3669 = vmatpush1.msra.mxu0 0.0
    %3670 = vmatprep.subr.mxu0 0.0
    %3671 = vmatpush1.msra.mxu0 0.0
    %3672 = vmatprep.subr.mxu0 0.0
    %3673 = vmatpush1.msra.mxu0 0.0
    %3674 = vmatprep.subr.mxu0 0.0
    %3675 = vmatpush1.msra.mxu0 0.0
    %3676 = vmatprep.subr.mxu0 0.0
    %3677 = vmatpush1.msra.mxu0 0.0
    %3678 = vmatprep.subr.mxu0 0.0
    %3679 = vmatpush1.msra.mxu0 0.0
    %3680 = vmatprep.subr.mxu0 0.0
    %3681 = vmatpush1.msra.mxu0 0.0
    %3682 = vmatprep.subr.mxu0 0.0
    %3683 = vmatpush1.msra.mxu0 0.0
    %3684 = vmatprep.subr.mxu0 0.0
    %3685 = vmatpush1.msra.mxu0 0.0
    %3686 = vmatprep.subr.mxu0 0.0
    %3687 = vmatpush1.msra.mxu0 0.0
    %3688 = vmatprep.subr.mxu0 0.0
    %3689 = vmatpush1.msra.mxu0 0.0
    %3690 = vmatprep.subr.mxu0 0.0
    %3691 = vmatpush1.msra.mxu0 0.0
    %3692 = vmatprep.subr.mxu0 0.0
    %3693 = vmatpush1.msra.mxu0 0.0
    %3694 = vmatprep.subr.mxu0 0.0
    %3695 = vmatpush1.msra.mxu0 0.0
    %3696 = vmatprep.subr.mxu0 0.0
    %3697 = vmatpush1.msra.mxu0 0.0
    %3698 = vmatprep.subr.mxu0 0.0
    %3699 = vmatpush1.msra.mxu0 0.0
    %3700 = vmatprep.subr.mxu0 0.0
    %3701 = vmatpush1.msra.mxu0 0.0
    %3702 = vmatprep.subr.mxu0 0.0
    %3703 = vmatpush1.msra.mxu0 0.0
    %3704 = vmatprep.subr.mxu0 0.0
    %3705 = vmatpush1.msra.mxu0 0.0
    %3706 = vmatprep.subr.mxu0 0.0
    %3707 = vmatpush1.msra.mxu0 0.0
    %3708 = vmatprep.subr.mxu0 0.0
    %3709 = vmatpush1.msra.mxu0 0.0
    %3710 = vmatprep.subr.mxu0 0.0
    %3711 = vmatpush1.msra.mxu0 0.0
    %3712 = vmatprep.subr.mxu0 0.0
    %3713 = vmatpush1.msra.mxu0 0.0
    %3714 = vmatprep.subr.mxu0 0.0
    %3715 = vmatpush1.msra.mxu0 0.0
    %3716 = vmatprep.subr.mxu0 0.0
    %3717 = vmatpush1.msra.mxu0 0.0
    %3718 = vmatprep.subr.mxu0 0.0
    %3719 = vmatpush1.msra.mxu0 0.0
    %3720 = vmatprep.subr.mxu0 0.0
    %3721 = vmatpush1.msra.mxu0 0.0
    %3722 = vmatprep.subr.mxu0 0.0
    %3723 = vmatpush1.msra.mxu0 0.0
    %3724 = vmatprep.mubr.f32.mxu0 0.0
    %3725 = vmatmul.mubr.f32.gmra.mrb[0].mxu0 %v3658
    %v3726 = vpop.f32.mrb[0].mxu0
    %v3727 = vadd.f32 0.0, %v3726
    %v3728 = vpop.f32.mrb[0].mxu0
    %3729 = vdwg.mxu0
    %v3731 = vsel %vm2018, %v3196, 0
    %3733 = vmatprep.subr.mxu0 0.0
    %3734 = vmatpush1.msra.mxu0 %v3506
    %3735 = vmatprep.subr.mxu0 0.0
    %3736 = vmatpush1.msra.mxu0 0.0
    %3737 = vmatprep.subr.mxu0 0.0
    %3738 = vmatpush1.msra.mxu0 0.0
    %3739 = vmatprep.subr.mxu0 0.0
    %3740 = vmatpush1.msra.mxu0 0.0
    %3741 = vmatprep.subr.mxu0 0.0
    %3742 = vmatpush1.msra.mxu0 0.0
    %3743 = vmatprep.subr.mxu0 0.0
    %3744 = vmatpush1.msra.mxu0 0.0
    %3745 = vmatprep.subr.mxu0 0.0
    %3746 = vmatpush1.msra.mxu0 0.0
    %3747 = vmatprep.subr.mxu0 0.0
    %3748 = vmatpush1.msra.mxu0 0.0
    %3749 = vmatprep.subr.mxu0 0.0
    %3750 = vmatpush1.msra.mxu0 0.0
    %3751 = vmatprep.subr.mxu0 0.0
    %3752 = vmatpush1.msra.mxu0 0.0
    %3753 = vmatprep.subr.mxu0 0.0
    %3754 = vmatpush1.msra.mxu0 0.0
    %3755 = vmatprep.subr.mxu0 0.0
    %3756 = vmatpush1.msra.mxu0 0.0
    %3757 = vmatprep.subr.mxu0 0.0
    %3758 = vmatpush1.msra.mxu0 0.0
    %3759 = vmatprep.subr.mxu0 0.0
    %3760 = vmatpush1.msra.mxu0 0.0
    %3761 = vmatprep.subr.mxu0 0.0
    %3762 = vmatpush1.msra.mxu0 0.0
    %3763 = vmatprep.subr.mxu0 0.0
    %3764 = vmatpush1.msra.mxu0 0.0
    %3765 = vmatprep.subr.mxu0 0.0
    %3766 = vmatpush1.msra.mxu0 0.0
    %3767 = vmatprep.subr.mxu0 0.0
    %3768 = vmatpush1.msra.mxu0 0.0
    %3769 = vmatprep.subr.mxu0 0.0
    %3770 = vmatpush1.msra.mxu0 0.0
    %3771 = vmatprep.subr.mxu0 0.0
    %3772 = vmatpush1.msra.mxu0 0.0
    %3773 = vmatprep.subr.mxu0 0.0
    %3774 = vmatpush1.msra.mxu0 0.0
    %3775 = vmatprep.subr.mxu0 0.0
    %3776 = vmatpush1.msra.mxu0 0.0
    %3777 = vmatprep.subr.mxu0 0.0
    %3778 = vmatpush1.msra.mxu0 0.0
    %3779 = vmatprep.subr.mxu0 0.0
    %3780 = vmatpush1.msra.mxu0 0.0
    %3781 = vmatprep.subr.mxu0 0.0
    %3782 = vmatpush1.msra.mxu0 0.0
    %3783 = vmatprep.subr.mxu0 0.0
    %3784 = vmatpush1.msra.mxu0 0.0
    %3785 = vmatprep.subr.mxu0 0.0
    %3786 = vmatpush1.msra.mxu0 0.0
    %3787 = vmatprep.subr.mxu0 0.0
    %3788 = vmatpush1.msra.mxu0 0.0
    %3789 = vmatprep.subr.mxu0 0.0
    %3790 = vmatpush1.msra.mxu0 0.0
    %3791 = vmatprep.subr.mxu0 0.0
    %3792 = vmatpush1.msra.mxu0 0.0
    %3793 = vmatprep.subr.mxu0 0.0
    %3794 = vmatpush1.msra.mxu0 0.0
    %3795 = vmatprep.subr.mxu0 0.0
    %3796 = vmatpush1.msra.mxu0 0.0
    %3797 = vmatprep.mubr.f32.mxu0 0.0
    %3798 = vmatmul.mubr.f32.gmra.mrb[0].mxu0 %v3731
    %v3799 = vpop.f32.mrb[0].mxu0
    %v3800 = vadd.f32 0.0, %v3799
    %v3801 = vpop.f32.mrb[0].mxu0
    %3802 = vdwg.mxu0
    %v3804 = vsel %vm2018, %v3272, 0
    %3806 = vmatprep.subr.mxu0 0.0
    %3807 = vmatpush1.msra.mxu0 %v3507
    %3808 = vmatprep.subr.mxu0 0.0
    %3809 = vmatpush1.msra.mxu0 0.0
    %3810 = vmatprep.subr.mxu0 0.0
    %3811 = vmatpush1.msra.mxu0 0.0
    %3812 = vmatprep.subr.mxu0 0.0
    %3813 = vmatpush1.msra.mxu0 0.0
    %3814 = vmatprep.subr.mxu0 0.0
    %3815 = vmatpush1.msra.mxu0 0.0
    %3816 = vmatprep.subr.mxu0 0.0
    %3817 = vmatpush1.msra.mxu0 0.0
    %3818 = vmatprep.subr.mxu0 0.0
    %3819 = vmatpush1.msra.mxu0 0.0
    %3820 = vmatprep.subr.mxu0 0.0
    %3821 = vmatpush1.msra.mxu0 0.0
    %3822 = vmatprep.subr.mxu0 0.0
    %3823 = vmatpush1.msra.mxu0 0.0
    %3824 = vmatprep.subr.mxu0 0.0
    %3825 = vmatpush1.msra.mxu0 0.0
    %3826 = vmatprep.subr.mxu0 0.0
    %3827 = vmatpush1.msra.mxu0 0.0
    %3828 = vmatprep.subr.mxu0 0.0
    %3829 = vmatpush1.msra.mxu0 0.0
    %3830 = vmatprep.subr.mxu0 0.0
    %3831 = vmatpush1.msra.mxu0 0.0
    %3832 = vmatprep.subr.mxu0 0.0
    %3833 = vmatpush1.msra.mxu0 0.0
    %3834 = vmatprep.subr.mxu0 0.0
    %3835 = vmatpush1.msra.mxu0 0.0
    %3836 = vmatprep.subr.mxu0 0.0
    %3837 = vmatpush1.msra.mxu0 0.0
    %3838 = vmatprep.subr.mxu0 0.0
    %3839 = vmatpush1.msra.mxu0 0.0
    %3840 = vmatprep.subr.mxu0 0.0
    %3841 = vmatpush1.msra.mxu0 0.0
    %3842 = vmatprep.subr.mxu0 0.0
    %3843 = vmatpush1.msra.mxu0 0.0
    %3844 = vmatprep.subr.mxu0 0.0
    %3845 = vmatpush1.msra.mxu0 0.0
    %3846 = vmatprep.subr.mxu0 0.0
    %3847 = vmatpush1.msra.mxu0 0.0
    %3848 = vmatprep.subr.mxu0 0.0
    %3849 = vmatpush1.msra.mxu0 0.0
    %3850 = vmatprep.subr.mxu0 0.0
    %3851 = vmatpush1.msra.mxu0 0.0
    %3852 = vmatprep.subr.mxu0 0.0
    %3853 = vmatpush1.msra.mxu0 0.0
    %3854 = vmatprep.subr.mxu0 0.0
    %3855 = vmatpush1.msra.mxu0 0.0
    %3856 = vmatprep.subr.mxu0 0.0
    %3857 = vmatpush1.msra.mxu0 0.0
    %3858 = vmatprep.subr.mxu0 0.0
    %3859 = vmatpush1.msra.mxu0 0.0
    %3860 = vmatprep.subr.mxu0 0.0
    %3861 = vmatpush1.msra.mxu0 0.0
    %3862 = vmatprep.subr.mxu0 0.0
    %3863 = vmatpush1.msra.mxu0 0.0
    %3864 = vmatprep.subr.mxu0 0.0
    %3865 = vmatpush1.msra.mxu0 0.0
    %3866 = vmatprep.subr.mxu0 0.0
    %3867 = vmatpush1.msra.mxu0 0.0
    %3868 = vmatprep.subr.mxu0 0.0
    %3869 = vmatpush1.msra.mxu0 0.0
    %3870 = vmatprep.mubr.f32.mxu0 0.0
    %3871 = vmatmul.mubr.f32.gmra.mrb[0].mxu0 %v3804
    %v3872 = vpop.f32.mrb[0].mxu0
    %v3873 = vadd.f32 0.0, %v3872
    %v3874 = vpop.f32.mrb[0].mxu0
    %3875 = vdwg.mxu0
    %v3877 = vsel %vm2018, %v3348, 0
    %3879 = vmatprep.subr.mxu0 0.0
    %3880 = vmatpush1.msra.mxu0 %v3508
    %3881 = vmatprep.subr.mxu0 0.0
    %3882 = vmatpush1.msra.mxu0 0.0
    %3883 = vmatprep.subr.mxu0 0.0
    %3884 = vmatpush1.msra.mxu0 0.0
    %3885 = vmatprep.subr.mxu0 0.0
    %3886 = vmatpush1.msra.mxu0 0.0
    %3887 = vmatprep.subr.mxu0 0.0
    %3888 = vmatpush1.msra.mxu0 0.0
    %3889 = vmatprep.subr.mxu0 0.0
    %3890 = vmatpush1.msra.mxu0 0.0
    %3891 = vmatprep.subr.mxu0 0.0
    %3892 = vmatpush1.msra.mxu0 0.0
    %3893 = vmatprep.subr.mxu0 0.0
    %3894 = vmatpush1.msra.mxu0 0.0
    %3895 = vmatprep.subr.mxu0 0.0
    %3896 = vmatpush1.msra.mxu0 0.0
    %3897 = vmatprep.subr.mxu0 0.0
    %3898 = vmatpush1.msra.mxu0 0.0
    %3899 = vmatprep.subr.mxu0 0.0
    %3900 = vmatpush1.msra.mxu0 0.0
    %3901 = vmatprep.subr.mxu0 0.0
    %3902 = vmatpush1.msra.mxu0 0.0
    %3903 = vmatprep.subr.mxu0 0.0
    %3904 = vmatpush1.msra.mxu0 0.0
    %3905 = vmatprep.subr.mxu0 0.0
    %3906 = vmatpush1.msra.mxu0 0.0
    %3907 = vmatprep.subr.mxu0 0.0
    %3908 = vmatpush1.msra.mxu0 0.0
    %3909 = vmatprep.subr.mxu0 0.0
    %3910 = vmatpush1.msra.mxu0 0.0
    %3911 = vmatprep.subr.mxu0 0.0
    %3912 = vmatpush1.msra.mxu0 0.0
    %3913 = vmatprep.subr.mxu0 0.0
    %3914 = vmatpush1.msra.mxu0 0.0
    %3915 = vmatprep.subr.mxu0 0.0
    %3916 = vmatpush1.msra.mxu0 0.0
    %3917 = vmatprep.subr.mxu0 0.0
    %3918 = vmatpush1.msra.mxu0 0.0
    %3919 = vmatprep.subr.mxu0 0.0
    %3920 = vmatpush1.msra.mxu0 0.0
    %3921 = vmatprep.subr.mxu0 0.0
    %3922 = vmatpush1.msra.mxu0 0.0
    %3923 = vmatprep.subr.mxu0 0.0
    %3924 = vmatpush1.msra.mxu0 0.0
    %3925 = vmatprep.subr.mxu0 0.0
    %3926 = vmatpush1.msra.mxu0 0.0
    %3927 = vmatprep.subr.mxu0 0.0
    %3928 = vmatpush1.msra.mxu0 0.0
    %3929 = vmatprep.subr.mxu0 0.0
    %3930 = vmatpush1.msra.mxu0 0.0
    %3931 = vmatprep.subr.mxu0 0.0
    %3932 = vmatpush1.msra.mxu0 0.0
    %3933 = vmatprep.subr.mxu0 0.0
    %3934 = vmatpush1.msra.mxu0 0.0
    %3935 = vmatprep.subr.mxu0 0.0
    %3936 = vmatpush1.msra.mxu0 0.0
    %3937 = vmatprep.subr.mxu0 0.0
    %3938 = vmatpush1.msra.mxu0 0.0
    %3939 = vmatprep.subr.mxu0 0.0
    %3940 = vmatpush1.msra.mxu0 0.0
    %3941 = vmatprep.subr.mxu0 0.0
    %3942 = vmatpush1.msra.mxu0 0.0
    %3943 = vmatprep.mubr.f32.mxu0 0.0
    %3944 = vmatmul.mubr.f32.gmra.mrb[0].mxu0 %v3877
    %v3945 = vpop.f32.mrb[0].mxu0
    %v3946 = vadd.f32 0.0, %v3945
    %v3947 = vpop.f32.mrb[0].mxu0
    %3948 = vdwg.mxu0
    %v3950 = vsel %vm2018, %v3424, 0
    %3952 = vmatprep.subr.mxu0 0.0
    %3953 = vmatpush1.msra.mxu0 %v3509
    %3954 = vmatprep.subr.mxu0 0.0
    %3955 = vmatpush1.msra.mxu0 0.0
    %3956 = vmatprep.subr.mxu0 0.0
    %3957 = vmatpush1.msra.mxu0 0.0
    %3958 = vmatprep.subr.mxu0 0.0
    %3959 = vmatpush1.msra.mxu0 0.0
    %3960 = vmatprep.subr.mxu0 0.0
    %3961 = vmatpush1.msra.mxu0 0.0
    %3962 = vmatprep.subr.mxu0 0.0
    %3963 = vmatpush1.msra.mxu0 0.0
    %3964 = vmatprep.subr.mxu0 0.0
    %3965 = vmatpush1.msra.mxu0 0.0
    %3966 = vmatprep.subr.mxu0 0.0
    %3967 = vmatpush1.msra.mxu0 0.0
    %3968 = vmatprep.subr.mxu0 0.0
    %3969 = vmatpush1.msra.mxu0 0.0
    %3970 = vmatprep.subr.mxu0 0.0
    %3971 = vmatpush1.msra.mxu0 0.0
    %3972 = vmatprep.subr.mxu0 0.0
    %3973 = vmatpush1.msra.mxu0 0.0
    %3974 = vmatprep.subr.mxu0 0.0
    %3975 = vmatpush1.msra.mxu0 0.0
    %3976 = vmatprep.subr.mxu0 0.0
    %3977 = vmatpush1.msra.mxu0 0.0
    %3978 = vmatprep.subr.mxu0 0.0
    %3979 = vmatpush1.msra.mxu0 0.0
    %3980 = vmatprep.subr.mxu0 0.0
    %3981 = vmatpush1.msra.mxu0 0.0
    %3982 = vmatprep.subr.mxu0 0.0
    %3983 = vmatpush1.msra.mxu0 0.0
    %3984 = vmatprep.subr.mxu0 0.0
    %3985 = vmatpush1.msra.mxu0 0.0
    %3986 = vmatprep.subr.mxu0 0.0
    %3987 = vmatpush1.msra.mxu0 0.0
    %3988 = vmatprep.subr.mxu0 0.0
    %3989 = vmatpush1.msra.mxu0 0.0
    %3990 = vmatprep.subr.mxu0 0.0
    %3991 = vmatpush1.msra.mxu0 0.0
    %3992 = vmatprep.subr.mxu0 0.0
    %3993 = vmatpush1.msra.mxu0 0.0
    %3994 = vmatprep.subr.mxu0 0.0
    %3995 = vmatpush1.msra.mxu0 0.0
    %3996 = vmatprep.subr.mxu0 0.0
    %3997 = vmatpush1.msra.mxu0 0.0
    %3998 = vmatprep.subr.mxu0 0.0
    %3999 = vmatpush1.msra.mxu0 0.0
    %4000 = vmatprep.subr.mxu0 0.0
    %4001 = vmatpush1.msra.mxu0 0.0
    %4002 = vmatprep.subr.mxu0 0.0
    %4003 = vmatpush1.msra.mxu0 0.0
    %4004 = vmatprep.subr.mxu0 0.0
    %4005 = vmatpush1.msra.mxu0 0.0
    %4006 = vmatprep.subr.mxu0 0.0
    %4007 = vmatpush1.msra.mxu0 0.0
    %4008 = vmatprep.subr.mxu0 0.0
    %4009 = vmatpush1.msra.mxu0 0.0
    %4010 = vmatprep.subr.mxu0 0.0
    %4011 = vmatpush1.msra.mxu0 0.0
    %4012 = vmatprep.subr.mxu0 0.0
    %4013 = vmatpush1.msra.mxu0 0.0
    %4014 = vmatprep.subr.mxu0 0.0
    %4015 = vmatpush1.msra.mxu0 0.0
    %4016 = vmatprep.mubr.f32.mxu0 0.0
    %4017 = vmatmul.mubr.f32.gmra.mrb[0].mxu0 %v3950
    %v4018 = vpop.f32.mrb[0].mxu0
    %v4019 = vadd.f32 0.0, %v4018
    %v4020 = vpop.f32.mrb[0].mxu0
    %4021 = vdwg.mxu0
    %v4023 = vsel %vm2018, %v3500, 0
    %4025 = vmatprep.subr.mxu0 0.0
    %4026 = vmatpush1.msra.mxu0 %v3510
    %4027 = vmatprep.subr.mxu0 0.0
    %4028 = vmatpush1.msra.mxu0 0.0
    %4029 = vmatprep.subr.mxu0 0.0
    %4030 = vmatpush1.msra.mxu0 0.0
    %4031 = vmatprep.subr.mxu0 0.0
    %4032 = vmatpush1.msra.mxu0 0.0
    %4033 = vmatprep.subr.mxu0 0.0
    %4034 = vmatpush1.msra.mxu0 0.0
    %4035 = vmatprep.subr.mxu0 0.0
    %4036 = vmatpush1.msra.mxu0 0.0
    %4037 = vmatprep.subr.mxu0 0.0
    %4038 = vmatpush1.msra.mxu0 0.0
    %4039 = vmatprep.subr.mxu0 0.0
    %4040 = vmatpush1.msra.mxu0 0.0
    %4041 = vmatprep.subr.mxu0 0.0
    %4042 = vmatpush1.msra.mxu0 0.0
    %4043 = vmatprep.subr.mxu0 0.0
    %4044 = vmatpush1.msra.mxu0 0.0
    %4045 = vmatprep.subr.mxu0 0.0
    %4046 = vmatpush1.msra.mxu0 0.0
    %4047 = vmatprep.subr.mxu0 0.0
    %4048 = vmatpush1.msra.mxu0 0.0
    %4049 = vmatprep.subr.mxu0 0.0
    %4050 = vmatpush1.msra.mxu0 0.0
    %4051 = vmatprep.subr.mxu0 0.0
    %4052 = vmatpush1.msra.mxu0 0.0
    %4053 = vmatprep.subr.mxu0 0.0
    %4054 = vmatpush1.msra.mxu0 0.0
    %4055 = vmatprep.subr.mxu0 0.0
    %4056 = vmatpush1.msra.mxu0 0.0
    %4057 = vmatprep.subr.mxu0 0.0
    %4058 = vmatpush1.msra.mxu0 0.0
    %4059 = vmatprep.subr.mxu0 0.0
    %4060 = vmatpush1.msra.mxu0 0.0
    %4061 = vmatprep.subr.mxu0 0.0
    %4062 = vmatpush1.msra.mxu0 0.0
    %4063 = vmatprep.subr.mxu0 0.0
    %4064 = vmatpush1.msra.mxu0 0.0
    %4065 = vmatprep.subr.mxu0 0.0
    %4066 = vmatpush1.msra.mxu0 0.0
    %4067 = vmatprep.subr.mxu0 0.0
    %4068 = vmatpush1.msra.mxu0 0.0
    %4069 = vmatprep.subr.mxu0 0.0
    %4070 = vmatpush1.msra.mxu0 0.0
    %4071 = vmatprep.subr.mxu0 0.0
    %4072 = vmatpush1.msra.mxu0 0.0
    %4073 = vmatprep.subr.mxu0 0.0
    %4074 = vmatpush1.msra.mxu0 0.0
    %4075 = vmatprep.subr.mxu0 0.0
    %4076 = vmatpush1.msra.mxu0 0.0
    %4077 = vmatprep.subr.mxu0 0.0
    %4078 = vmatpush1.msra.mxu0 0.0
    %4079 = vmatprep.subr.mxu0 0.0
    %4080 = vmatpush1.msra.mxu0 0.0
    %4081 = vmatprep.subr.mxu0 0.0
    %4082 = vmatpush1.msra.mxu0 0.0
    %4083 = vmatprep.subr.mxu0 0.0
    %4084 = vmatpush1.msra.mxu0 0.0
    %4085 = vmatprep.subr.mxu0 0.0
    %4086 = vmatpush1.msra.mxu0 0.0
    %4087 = vmatprep.subr.mxu0 0.0
    %4088 = vmatpush1.msra.mxu0 0.0
    %4089 = vmatprep.mubr.f32.mxu0 0.0
    %4090 = vmatmul.mubr.f32.gmra.mrb[0].mxu0 %v4023
    %v4091 = vpop.f32.mrb[0].mxu0
    %v4092 = vadd.f32 0.0, %v4091
    %v4093 = vpop.f32.mrb[0].mxu0
    %4094 = vdwg.mxu0
    %v4095 = vsel %vm137, %v3581, 0.0
    %v4096 = vsel %vm137, %v3654, 0.0
    %v4097 = vadd.f32 %v4095, %v4096
    %v4098 = vsel %vm137, %v3727, 0.0
    %v4099 = vadd.f32 %v4097, %v4098
    %v4100 = vsel %vm137, %v3800, 0.0
    %v4101 = vadd.f32 %v4099, %v4100
    %v4102 = vsel %vm137, %v3873, 0.0
    %v4103 = vsel %vm137, %v3946, 0.0
    %v4104 = vadd.f32 %v4102, %v4103
    %v4105 = vsel %vm137, %v4019, 0.0
    %v4106 = vadd.f32 %v4104, %v4105
    %v4107 = vsel %vm137, %v4092, 0.0
    %v4108 = vadd.f32 %v4106, %v4107
    %v4109 = vld [vmem:[%s10] sm:$0x1]
    %v4111 = vlaneseq
    %v4112 = vshrl.u32 %v4111, 7
    %v4113 = vsub.s32 0, %v4112
    %v4114 = vrot.slane %v4109, %v4113
    %v4116 = vadd.f32 %v4101, %v4114
    %v4117 = vadd.f32 %v4108, %v4114
    %4118 = vst.msk [vmem:[%s11] sm:$0xff] %vm137, %v4116
    %4119 = vst.msk [vmem:[%s11 + $0x8] sm:$0xff] %vm137, %v4117
    // Predicated region
    $region46: #{multi_head_attention.1} parent=1 // pred_check
      _
    $region47: #{multi_head_attention.1} parent=1 // pred_check_branch
      %4121 = sbr.rel (0) target = $region49
    $region48: #{multi_head_attention.1} parent=1 // pred_region
      _
    $region49: #{multi_head_attention.1} parent=1 // pred_fallthru
      _
    // Predicated region
    $region50: #{multi_head_attention.1} parent=1 // pred_check
      _
    $region51: #{multi_head_attention.1} parent=1 // pred_check_branch
      %4123 = sbr.rel (0) target = $region53
    $region52: #{multi_head_attention.1} parent=1 // pred_region
      %s4125 = ssub.s32 128, 128
      %4126 = vsyncadd [#allocation5], %s4125
      %s4127 = sshll.u32 [#allocation4], 4
      %s4128 = int_to_ptr.vmem [resolvable:$true] %s4127
      %4133 = dma.vmem_to_hbm [thread:$0]  %s4128, 128, %s12, [#allocation5], 16, 16, 1
    $region53: #{multi_head_attention.1} parent=1 // pred_fallthru
      _
    // Predicated region
    $region54: #{multi_head_attention.1} parent=1 // pred_check
      _
    $region55: #{multi_head_attention.1} parent=1 // pred_check_branch
      %4135 = sbr.rel (0) target = $region57
    $region56: #{multi_head_attention.1} parent=1 // pred_region
      _
    $region57: #{multi_head_attention.1} parent=1 // pred_fallthru
      _
    // Predicated region
    $region58: #{multi_head_attention.1} parent=1 // pred_check
      _
    $region59: #{multi_head_attention.1} parent=1 // pred_check_branch
      %4137 = sbr.rel (0) target = $region61
    $region60: #{multi_head_attention.1} parent=1 // pred_region
      %4138 = dma.done [#allocation5], 128
    $region61: #{multi_head_attention.1} parent=1 // pred_fallthru
      _
    %4139 = vsyncpa [#allocation5], 1

</llo_original>
